<compile_context>
chip_gen: v6e
topology: v6e:2x2x1
jax: 0.10.0
libtpu: 0.0.40
codegen_flags: <defaults>
</compile_context>

<pallas_src>
import functools

import jax
import jax.numpy as jnp
from jax.experimental import pallas as pl
from jax.experimental.pallas import tpu as pltpu

_HP = jax.lax.Precision.HIGHEST


def _round_up(x, m):
    return (x + m - 1) // m * m


def _common_attention_kernel(self_ref, neigh_ref, ws_ref, wn_ref, b_ref,
                             wg_ref, bg_ref, out_ref, *, act):
    """One batch block of the CommonAttention forward.

    self_ref, neigh_ref : (Et, H*C)   flattened per-head inputs
    ws_ref, wn_ref      : (H*C, H*D)  block-diagonal per-head attention weights
    b_ref               : (1, H*D)    combined per-head biases (b_self + b_neigh)
    wg_ref              : (H*D, H)    block-diagonal general_layer weight
    bg_ref              : (1, 1)      general_layer bias
    out_ref             : (Et, H)     per-head attention coefficients
    """
    x_s = self_ref[...]
    x_n = neigh_ref[...]

    # Hidden projections for all heads at once: one lane-dense (Et, H*D) slab.
    g = (jnp.dot(x_s, ws_ref[...], precision=_HP,
                 preferred_element_type=jnp.float32)
         + jnp.dot(x_n, wn_ref[...], precision=_HP,
                   preferred_element_type=jnp.float32)
         + b_ref[...])

    # general_layer for all heads via the block-diagonal (H*D, H) projection.
    alpha = jnp.dot(act(g), wg_ref[...], precision=_HP,
                    preferred_element_type=jnp.float32) + bg_ref[...]
    out_ref[...] = alpha.astype(out_ref.dtype)


def prepare_params(w_self, b_self, w_neigh, b_neigh, w_general, b_general):
    """One-time weight prep (outside the hot path).

    PyTorch layout in:
      w_self, w_neigh : (H, D, C)   nn.Linear weights per head
      b_self, b_neigh : (H, D)
      w_general       : (1, D)
      b_general       : (1,)
    Out: block-diagonal, transposed weights ready for the kernel.
    """
    H, D, C = w_self.shape
    ws_bd = jax.scipy.linalg.block_diag(
        *[w_self[h].T for h in range(H)]).astype(jnp.float32)      # (H*C, H*D)
    wn_bd = jax.scipy.linalg.block_diag(
        *[w_neigh[h].T for h in range(H)]).astype(jnp.float32)     # (H*C, H*D)
    wg_bd = jax.scipy.linalg.block_diag(
        *([w_general.T.astype(jnp.float32)] * H))                  # (H*D, H)
    b_flat = (b_self + b_neigh).reshape(1, H * D).astype(jnp.float32)
    bg = b_general.reshape(1, 1).astype(jnp.float32)
    return ws_bd, wn_bd, b_flat, wg_bd, bg


def common_attention(neighbor_vecs, self_vecs, prepared, *, num_heads,
                     out_channels, hidden_dim, act=lambda x: x, block_e=128):
    """Wrapper: layout plumbing in JAX, hot path in the Pallas kernel."""
    ws_bd, wn_bd, b_flat, wg_bd, bg = prepared
    E, H, C = self_vecs.shape
    assert H == num_heads and C == out_channels
    D = hidden_dim
    HC, HD = H * C, H * D

    # Lane-dense 2D layout: heads folded into the lane axis.
    x_s = self_vecs.reshape(E, HC).astype(jnp.float32)
    x_n = neighbor_vecs.reshape(E, HC).astype(jnp.float32)

    Et = min(block_e, _round_up(E, 8))
    E_pad = _round_up(E, Et)
    if E_pad != E:
        pad = ((0, E_pad - E), (0, 0))
        x_s = jnp.pad(x_s, pad)
        x_n = jnp.pad(x_n, pad)

    kernel = functools.partial(_common_attention_kernel, act=act)

    out = pl.pallas_call(
        kernel,
        out_shape=jax.ShapeDtypeStruct((E_pad, H), jnp.float32),
        grid=(E_pad // Et,),
        in_specs=[
            pl.BlockSpec((Et, HC), lambda i: (i, 0)),    # self_vecs block
            pl.BlockSpec((Et, HC), lambda i: (i, 0)),    # neighbor_vecs block
            pl.BlockSpec((HC, HD), lambda i: (0, 0)),    # W_self (block-diag)
            pl.BlockSpec((HC, HD), lambda i: (0, 0)),    # W_neigh (block-diag)
            pl.BlockSpec((1, HD), lambda i: (0, 0)),     # combined bias
            pl.BlockSpec((HD, H), lambda i: (0, 0)),     # W_general (block-diag)
            pl.BlockSpec((1, 1), lambda i: (0, 0)),      # b_general
        ],
        out_specs=pl.BlockSpec((Et, H), lambda i: (i, 0)),
        compiler_params=pltpu.CompilerParams(
            dimension_semantics=("parallel",)),
    )(x_s, x_n, ws_bd, wn_bd, b_flat, wg_bd, bg)

    return out[:E]


def common_attention_ref(neighbor_vecs, self_vecs, torch_params,
                         act=lambda x: x):
    """Pure-JAX reference matching the PyTorch module's forward."""
    w_self, b_self, w_neigh, b_neigh, w_g, b_g = torch_params
    H = w_self.shape[0]
    cols = []
    for i in range(H):
        t_s = jnp.dot(self_vecs[:, i, :], w_self[i].T, precision=_HP) + b_self[i]
        t_n = jnp.dot(neighbor_vecs[:, i, :], w_neigh[i].T, precision=_HP) + b_neigh[i]
        cols.append(jnp.dot(act(t_s + t_n), w_g.T, precision=_HP) + b_g)
    return jnp.concatenate(cols, axis=-1)


if __name__ == "__main__":
    # Small shapes consistent with the module's forward:
    #   E nodes/edges, num_heads heads, out_channels features, hidden_dim.
    E, H, C, D = 200, 4, 16, 32           # E deliberately not a multiple of 128

    key = jax.random.PRNGKey(0)
    keys = jax.random.split(key, 7)
    self_vecs = jax.random.normal(keys[0], (E, H, C), jnp.float32)
    neighbor_vecs = jax.random.normal(keys[1], (E, H, C), jnp.float32)

    # Deterministic parameters (glorot-like scale; nonzero biases to exercise
    # the bias path even though reset_parameters() zeros them at init).
    s_att = (2.0 / (C + D)) ** 0.5
    s_gen = (2.0 / (D + 1)) ** 0.5
    w_self = jax.random.normal(keys[2], (H, D, C), jnp.float32) * s_att
    w_neigh = jax.random.normal(keys[3], (H, D, C), jnp.float32) * s_att
    b_self = jax.random.normal(keys[4], (H, D), jnp.float32) * 0.1
    b_neigh = jax.random.normal(keys[5], (H, D), jnp.float32) * 0.1
    w_g = jax.random.normal(keys[6], (1, D), jnp.float32) * s_gen
    b_g = jnp.zeros((1,), jnp.float32)

    torch_params = (w_self, b_self, w_neigh, b_neigh, w_g, b_g)
    prepared = prepare_params(*torch_params)

    kwargs = dict(num_heads=H, out_channels=C, hidden_dim=D)

    # Default activation (identity, as in the module's default).
    out = common_attention(neighbor_vecs, self_vecs, prepared, **kwargs)
    jax.block_until_ready(out)
    ref = common_attention_ref(neighbor_vecs, self_vecs, torch_params)
    assert out.shape == (E, H)
    assert jnp.allclose(out, ref, atol=1e-4, rtol=1e-4), \
        float(jnp.max(jnp.abs(out - ref)))

    # Non-identity activation path (module accepts an arbitrary elementwise act).
    out_t = common_attention(neighbor_vecs, self_vecs, prepared,
                             act=jnp.tanh, **kwargs)
    jax.block_until_ready(out_t)
    ref_t = common_attention_ref(neighbor_vecs, self_vecs, torch_params,
                                 act=jnp.tanh)
    assert jnp.allclose(out_t, ref_t, atol=1e-4, rtol=1e-4), \
        float(jnp.max(jnp.abs(out_t - ref_t)))

    print("KERNEL_OK")
</pallas_src>

<mosaic_0001>
module attributes {stable_mosaic.version = 11 : i64} {
  func.func @_common_attention_kernel(%arg0: i32, %arg1: memref<128x64xf32, #tpu.memory_space<vmem>>, %arg2: memref<128x64xf32, #tpu.memory_space<vmem>>, %arg3: memref<64x128xf32, #tpu.memory_space<vmem>>, %arg4: memref<64x128xf32, #tpu.memory_space<vmem>>, %arg5: memref<1x128xf32, #tpu.memory_space<vmem>>, %arg6: memref<128x4xf32, #tpu.memory_space<vmem>>, %arg7: memref<1x1xf32, #tpu.memory_space<vmem>>, %arg8: memref<128x4xf32, #tpu.memory_space<vmem>>) attributes {dimension_semantics = [#tpu.dimension_semantics<parallel>], iteration_bounds = array<i64: 2>, scalar_prefetch = 0 : i64, scratch_operands = 0 : i64, tpu.core_type = #tpu.core_type<tc>, window_params = [{transform_indices = @transform_0, window_bounds = array<i64: 128, 64>}, {transform_indices = @transform_1, window_bounds = array<i64: 128, 64>}, {pipeline_mode = #tpu.pipeline_mode<synchronous>, transform_indices = @transform_2, window_bounds = array<i64: 64, 128>}, {pipeline_mode = #tpu.pipeline_mode<synchronous>, transform_indices = @transform_3, window_bounds = array<i64: 64, 128>}, {pipeline_mode = #tpu.pipeline_mode<synchronous>, transform_indices = @transform_4, window_bounds = array<i64: 1, 128>}, {pipeline_mode = #tpu.pipeline_mode<synchronous>, transform_indices = @transform_5, window_bounds = array<i64: 128, 4>}, {pipeline_mode = #tpu.pipeline_mode<synchronous>, transform_indices = @transform_6, window_bounds = array<i64: 1, 1>}, {transform_indices = @transform_7, window_bounds = array<i64: 128, 4>}]} {
    %c0 = arith.constant 0 : index
    %c0_0 = arith.constant 0 : index
    %0 = vector.load %arg1[%c0, %c0_0] : memref<128x64xf32, #tpu.memory_space<vmem>>, vector<128x64xf32>
    %c0_1 = arith.constant 0 : index
    %c0_2 = arith.constant 0 : index
    %1 = vector.load %arg2[%c0_1, %c0_2] : memref<128x64xf32, #tpu.memory_space<vmem>>, vector<128x64xf32>
    %c0_3 = arith.constant 0 : index
    %c0_4 = arith.constant 0 : index
    %2 = vector.load %arg3[%c0_3, %c0_4] : memref<64x128xf32, #tpu.memory_space<vmem>>, vector<64x128xf32>
    %cst = arith.constant dense<0.000000e+00> : vector<128x128xf32>
    %3 = tpu.matmul %0, %2, %cst {dimension_numbers = #tpu.dot_dimension_numbers<[1], [0], [0], [1], [0, 0, 1, 1], [], []>, precision = #tpu.contract_precision<fp32>} : vector<128x64xf32>, vector<64x128xf32>, vector<128x128xf32> -> vector<128x128xf32>
    %c0_5 = arith.constant 0 : index
    %c0_6 = arith.constant 0 : index
    %4 = vector.load %arg4[%c0_5, %c0_6] : memref<64x128xf32, #tpu.memory_space<vmem>>, vector<64x128xf32>
    %cst_7 = arith.constant dense<0.000000e+00> : vector<128x128xf32>
    %5 = tpu.matmul %1, %4, %cst_7 {dimension_numbers = #tpu.dot_dimension_numbers<[1], [0], [0], [1], [0, 0, 1, 1], [], []>, precision = #tpu.contract_precision<fp32>} : vector<128x64xf32>, vector<64x128xf32>, vector<128x128xf32> -> vector<128x128xf32>
    %6 = arith.addf %3, %5 : vector<128x128xf32>
    %c0_8 = arith.constant 0 : index
    %c0_9 = arith.constant 0 : index
    %7 = vector.load %arg5[%c0_8, %c0_9] : memref<1x128xf32, #tpu.memory_space<vmem>>, vector<1x128xf32>
    %8 = vector.broadcast %7 : vector<1x128xf32> to vector<128x128xf32>
    %9 = arith.addf %6, %8 : vector<128x128xf32>
    %c0_10 = arith.constant 0 : index
    %c0_11 = arith.constant 0 : index
    %10 = vector.load %arg6[%c0_10, %c0_11] : memref<128x4xf32, #tpu.memory_space<vmem>>, vector<128x4xf32>
    %cst_12 = arith.constant dense<0.000000e+00> : vector<128x4xf32>
    %11 = tpu.matmul %9, %10, %cst_12 {dimension_numbers = #tpu.dot_dimension_numbers<[1], [0], [0], [1], [0, 0, 1, 1], [], []>, precision = #tpu.contract_precision<fp32>} : vector<128x128xf32>, vector<128x4xf32>, vector<128x4xf32> -> vector<128x4xf32>
    %c0_13 = arith.constant 0 : index
    %c0_14 = arith.constant 0 : index
    %12 = vector.load %arg7[%c0_13, %c0_14] : memref<1x1xf32, #tpu.memory_space<vmem>>, vector<1x1xf32>
    %13 = vector.broadcast %12 : vector<1x1xf32> to vector<128x4xf32>
    %14 = arith.addf %11, %13 : vector<128x4xf32>
    %c0_15 = arith.constant 0 : index
    %c0_16 = arith.constant 0 : index
    %15 = vector.load %arg8[%c0_15, %c0_16] : memref<128x4xf32, #tpu.memory_space<vmem>>, vector<128x4xf32>
    tpu.vector_store %arg8[%c0_15, %c0_16], %14 {strides = array<i32>} : memref<128x4xf32, #tpu.memory_space<vmem>>, vector<128x4xf32>,
    return
  }
  func.func @transform_0(%arg0: i32) -> (i32, i32) {
    %c0_i32 = arith.constant 0 : i32
    %c0_i32_0 = arith.constant 0 : i32
    return %arg0, %c0_i32 : i32, i32
  }
  func.func @transform_1(%arg0: i32) -> (i32, i32) {
    %c0_i32 = arith.constant 0 : i32
    %c0_i32_0 = arith.constant 0 : i32
    return %arg0, %c0_i32 : i32, i32
  }
  func.func @transform_2(%arg0: i32) -> (i32, i32) {
    %c0_i32 = arith.constant 0 : i32
    %c0_i32_0 = arith.constant 0 : i32
    %c0_i32_1 = arith.constant 0 : i32
    return %c0_i32, %c0_i32_0 : i32, i32
  }
  func.func @transform_3(%arg0: i32) -> (i32, i32) {
    %c0_i32 = arith.constant 0 : i32
    %c0_i32_0 = arith.constant 0 : i32
    %c0_i32_1 = arith.constant 0 : i32
    return %c0_i32, %c0_i32_0 : i32, i32
  }
  func.func @transform_4(%arg0: i32) -> (i32, i32) {
    %c0_i32 = arith.constant 0 : i32
    %c0_i32_0 = arith.constant 0 : i32
    %c0_i32_1 = arith.constant 0 : i32
    return %c0_i32, %c0_i32_0 : i32, i32
  }
  func.func @transform_5(%arg0: i32) -> (i32, i32) {
    %c0_i32 = arith.constant 0 : i32
    %c0_i32_0 = arith.constant 0 : i32
    %c0_i32_1 = arith.constant 0 : i32
    return %c0_i32, %c0_i32_0 : i32, i32
  }
  func.func @transform_6(%arg0: i32) -> (i32, i32) {
    %c0_i32 = arith.constant 0 : i32
    %c0_i32_0 = arith.constant 0 : i32
    %c0_i32_1 = arith.constant 0 : i32
    return %c0_i32, %c0_i32_0 : i32, i32
  }
  func.func @transform_7(%arg0: i32) -> (i32, i32) {
    %c0_i32 = arith.constant 0 : i32
    %c0_i32_0 = arith.constant 0 : i32
    return %arg0, %c0_i32 : i32, i32
  }
}

</mosaic_0001>

<llo_original>
// kernel: tpu_custom_call.1
$region0: #{tpu_custom_call.1}
  #allocation0 [shape = 'u32[]', space=smem, size = 0x4, offset = 0x4, fixed_abs, tag = 'smem constant byte address 0x4 - core index']
  #allocation1 [shape = 'u32[144,128]{1,0:T(1,128)}', space=vmem, size = 0x12000, scoped, tag = 'internal scratch']
  #allocation2 [shape = 'f32[1,1]{1,0:T(1,128)S(1)}', space=vmem, size = 0x200, scoped, tag = 'scoped memory for tpu_custom_call.1']
  %s0 = inlined_call_operand.vmem [shape: f32[256,64], index: 0, kind: input, shape index: {}]
  %s1 = inlined_call_operand.vmem [shape: f32[256,64], index: 1, kind: input, shape index: {}]
  %s2 = inlined_call_operand.vmem [shape: f32[64,128], index: 2, kind: input, shape index: {}]
  %s3 = inlined_call_operand.vmem [shape: f32[64,128], index: 3, kind: input, shape index: {}]
  %s4 = inlined_call_operand.vmem [shape: f32[1,128], index: 4, kind: input, shape index: {}]
  %s5 = inlined_call_operand.vmem [shape: f32[128,4], index: 5, kind: input, shape index: {}]
  %s6 = inlined_call_operand.<no memory space> [shape: f32[1,1], index: 6, kind: input, shape index: {}]
  %s7 = inlined_call_operand.vmem [shape: f32[256,4], index: 7, kind: output, shape index: {}]
  %s8 = sld [smem:[#allocation0]]
  $region61: #{tpu_custom_call.1} parent=0
    _
  %s10 = ssub.s32 1, %s8
  %s11 = scalar_select 0, %s10, %s8
  %v12 = vstv %s6
  %13 = vst [vmem:[#allocation2] sm:$0x1] %v12
  loop: start=0, step=1, limit=4
  $region2: #{tpu_custom_call.1} parent=0 // loop_pre_header
    _
  $region3: #{tpu_custom_call.1} parent=0 // loop_header
    %s15 = sphi 0, %s19
    %p16 = scmp.ge.s32.totalorder %s15, 4
    %s25 = sphi 0, %s27
    %s28 = sphi 0, %s25
    %s29 = sphi 0, %s28
    %s45 = sphi 0, %s29
    %s51 = sphi 0, %s53
    %s54 = sphi 0, %s51
    %s55 = sphi 0, %s54
    %s71 = sphi 0, %s55
    %s75 = sphi 0, %s75
    %s77 = sphi 0, %s75
    %s78 = sphi 0, %s77
    %s92 = sphi 0, %s78
    %s96 = sphi 0, %s96
    %s98 = sphi 0, %s96
    %s99 = sphi 0, %s98
    %s113 = sphi 0, %s99
    %s117 = sphi 0, %s117
    %s119 = sphi 0, %s117
    %s120 = sphi 0, %s119
    %s134 = sphi 0, %s120
    %s138 = sphi 0, %s138
    %s140 = sphi 0, %s138
    %s141 = sphi 0, %s140
    %s155 = sphi 0, %s141
    %s159 = sphi 0, %s159
    %s161 = sphi 0, %s159
    %s162 = sphi 0, %s161
    %s176 = sphi 0, %s162
    %s182 = sphi 0, %s184
    %s185 = sphi 0, %s182
    %s186 = sphi 0, %s185
    %s202 = sphi 0, %s186
  $region4: #{tpu_custom_call.1} parent=0 // loop_header_branch
    %18 = sbr.rel (%p16) target = $region8
  $region5: #{tpu_custom_call.1} parent=0 // loop_body
    %s20 = ssub.s32 %s15, 1
    %s21 = ssub.s32 %s15, 2
    %s22 = sadd.s32 %s15, 1
    %s23 = ssub.s32 %s15, %s22
    %p24 = scmp.eq.s32.totalorder %s23, 0
    %s26 = sadd.s32 %s25, 1
    %s27 = scalar_select %p24, %s25, %s26
    %p30 = pneg %p24
    %p31 = scmp.eq.s32.totalorder %s15, 1
    %p32 = por %p30, %p31
    %p33 = scmp.ne.s32.totalorder %s25, %s28
    %p34 = scmp.eq.s32.totalorder %s15, 0
    %p35 = por %p33, %p34
    %p36 = scmp.ne.s32.totalorder %s25, %s28
    %p37 = scmp.eq.s32.totalorder %s20, 1
    %p38 = por %p36, %p37
    %p39 = scmp.ne.s32.totalorder %s28, %s29
    %p40 = scmp.eq.s32.totalorder %s20, 0
    %p41 = por %p39, %p40
    %p42 = scmp.ne.s32.totalorder %s28, %s29
    %p43 = scmp.eq.s32.totalorder %s21, 1
    %p44 = por %p42, %p43
    %p46 = scmp.ne.s32.totalorder %s29, %s45
    %p47 = scmp.eq.s32.totalorder %s21, 0
    %p48 = por %p46, %p47
    %s49 = ssub.s32 %s15, %s22
    %p50 = scmp.eq.s32.totalorder %s49, 0
    %s52 = sadd.s32 %s51, 1
    %s53 = scalar_select %p50, %s51, %s52
    %p56 = pneg %p50
    %p57 = scmp.eq.s32.totalorder %s15, 1
    %p58 = por %p56, %p57
    %p59 = scmp.ne.s32.totalorder %s51, %s54
    %p60 = scmp.eq.s32.totalorder %s15, 0
    %p61 = por %p59, %p60
    %p62 = scmp.ne.s32.totalorder %s51, %s54
    %p63 = scmp.eq.s32.totalorder %s20, 1
    %p64 = por %p62, %p63
    %p65 = scmp.ne.s32.totalorder %s54, %s55
    %p66 = scmp.eq.s32.totalorder %s20, 0
    %p67 = por %p65, %p66
    %p68 = scmp.ne.s32.totalorder %s54, %s55
    %p69 = scmp.eq.s32.totalorder %s21, 1
    %p70 = por %p68, %p69
    %p72 = scmp.ne.s32.totalorder %s55, %s71
    %p73 = scmp.eq.s32.totalorder %s21, 0
    %p74 = por %p72, %p73
    %s76 = sadd.s32 %s75, 1
    %p79 = scmp.eq.s32.totalorder %s15, 1
    %p80 = scmp.ne.s32.totalorder %s75, %s77
    %p81 = scmp.eq.s32.totalorder %s15, 0
    %p82 = por %p80, %p81
    %p83 = scmp.ne.s32.totalorder %s75, %s77
    %p84 = scmp.eq.s32.totalorder %s20, 1
    %p85 = por %p83, %p84
    %p86 = scmp.ne.s32.totalorder %s77, %s78
    %p87 = scmp.eq.s32.totalorder %s20, 0
    %p88 = por %p86, %p87
    %p89 = scmp.ne.s32.totalorder %s77, %s78
    %p90 = scmp.eq.s32.totalorder %s21, 1
    %p91 = por %p89, %p90
    %p93 = scmp.ne.s32.totalorder %s78, %s92
    %p94 = scmp.eq.s32.totalorder %s21, 0
    %p95 = por %p93, %p94
    %s97 = sadd.s32 %s96, 1
    %p100 = scmp.eq.s32.totalorder %s15, 1
    %p101 = scmp.ne.s32.totalorder %s96, %s98
    %p102 = scmp.eq.s32.totalorder %s15, 0
    %p103 = por %p101, %p102
    %p104 = scmp.ne.s32.totalorder %s96, %s98
    %p105 = scmp.eq.s32.totalorder %s20, 1
    %p106 = por %p104, %p105
    %p107 = scmp.ne.s32.totalorder %s98, %s99
    %p108 = scmp.eq.s32.totalorder %s20, 0
    %p109 = por %p107, %p108
    %p110 = scmp.ne.s32.totalorder %s98, %s99
    %p111 = scmp.eq.s32.totalorder %s21, 1
    %p112 = por %p110, %p111
    %p114 = scmp.ne.s32.totalorder %s99, %s113
    %p115 = scmp.eq.s32.totalorder %s21, 0
    %p116 = por %p114, %p115
    %s118 = sadd.s32 %s117, 1
    %p121 = scmp.eq.s32.totalorder %s15, 1
    %p122 = scmp.ne.s32.totalorder %s117, %s119
    %p123 = scmp.eq.s32.totalorder %s15, 0
    %p124 = por %p122, %p123
    %p125 = scmp.ne.s32.totalorder %s117, %s119
    %p126 = scmp.eq.s32.totalorder %s20, 1
    %p127 = por %p125, %p126
    %p128 = scmp.ne.s32.totalorder %s119, %s120
    %p129 = scmp.eq.s32.totalorder %s20, 0
    %p130 = por %p128, %p129
    %p131 = scmp.ne.s32.totalorder %s119, %s120
    %p132 = scmp.eq.s32.totalorder %s21, 1
    %p133 = por %p131, %p132
    %p135 = scmp.ne.s32.totalorder %s120, %s134
    %p136 = scmp.eq.s32.totalorder %s21, 0
    %p137 = por %p135, %p136
    %s139 = sadd.s32 %s138, 1
    %p142 = scmp.eq.s32.totalorder %s15, 1
    %p143 = scmp.ne.s32.totalorder %s138, %s140
    %p144 = scmp.eq.s32.totalorder %s15, 0
    %p145 = por %p143, %p144
    %p146 = scmp.ne.s32.totalorder %s138, %s140
    %p147 = scmp.eq.s32.totalorder %s20, 1
    %p148 = por %p146, %p147
    %p149 = scmp.ne.s32.totalorder %s140, %s141
    %p150 = scmp.eq.s32.totalorder %s20, 0
    %p151 = por %p149, %p150
    %p152 = scmp.ne.s32.totalorder %s140, %s141
    %p153 = scmp.eq.s32.totalorder %s21, 1
    %p154 = por %p152, %p153
    %p156 = scmp.ne.s32.totalorder %s141, %s155
    %p157 = scmp.eq.s32.totalorder %s21, 0
    %p158 = por %p156, %p157
    %s160 = sadd.s32 %s159, 1
    %p163 = scmp.eq.s32.totalorder %s15, 1
    %p164 = scmp.ne.s32.totalorder %s159, %s161
    %p165 = scmp.eq.s32.totalorder %s15, 0
    %p166 = por %p164, %p165
    %p167 = scmp.ne.s32.totalorder %s159, %s161
    %p168 = scmp.eq.s32.totalorder %s20, 1
    %p169 = por %p167, %p168
    %p170 = scmp.ne.s32.totalorder %s161, %s162
    %p171 = scmp.eq.s32.totalorder %s20, 0
    %p172 = por %p170, %p171
    %p173 = scmp.ne.s32.totalorder %s161, %s162
    %p174 = scmp.eq.s32.totalorder %s21, 1
    %p175 = por %p173, %p174
    %p177 = scmp.ne.s32.totalorder %s162, %s176
    %p178 = scmp.eq.s32.totalorder %s21, 0
    %p179 = por %p177, %p178
    %s180 = ssub.s32 %s15, %s22
    %p181 = scmp.eq.s32.totalorder %s180, 0
    %s183 = sadd.s32 %s182, 1
    %s184 = scalar_select %p181, %s182, %s183
    %p187 = pneg %p181
    %p188 = scmp.eq.s32.totalorder %s15, 1
    %p189 = por %p187, %p188
    %p190 = scmp.ne.s32.totalorder %s182, %s185
    %p191 = scmp.eq.s32.totalorder %s15, 0
    %p192 = por %p190, %p191
    %p193 = scmp.ne.s32.totalorder %s182, %s185
    %p194 = scmp.eq.s32.totalorder %s20, 1
    %p195 = por %p193, %p194
    %p196 = scmp.ne.s32.totalorder %s185, %s186
    %p197 = scmp.eq.s32.totalorder %s20, 0
    %p198 = por %p196, %p197
    %p199 = scmp.ne.s32.totalorder %s185, %s186
    %p200 = scmp.eq.s32.totalorder %s21, 1
    %p201 = por %p199, %p200
    %p203 = scmp.ne.s32.totalorder %s186, %s202
    %p204 = scmp.eq.s32.totalorder %s21, 0
    %p205 = por %p203, %p204
    %p206 = scmp.le.s32.totalorder 1, %s15
    %p207 = scmp.lt.s32.totalorder %s15, 3
    %p208 = pnand %p206, %p207
    %p209 = pneg %p208
    // Predicated region
    $region9: #{tpu_custom_call.1} parent=5 // pred_check
      _
    $region10: #{tpu_custom_call.1} parent=5 // pred_check_branch
      %211 = sbr.rel (%p208) target = $region12
    $region11: #{tpu_custom_call.1} parent=5 // pred_region
      %s212 = ssub.s32 %s15, 1
      // Predicated region
      $region13: #{tpu_custom_call.1} parent=11 // pred_check
        %p213 = pneg %p88
      $region14: #{tpu_custom_call.1} parent=11 // pred_check_branch
        %215 = sbr.rel (%p213) target = $region16
      $region15: #{tpu_custom_call.1} parent=11 // pred_region
        _
      $region16: #{tpu_custom_call.1} parent=11 // pred_fallthru
        _
      // Predicated region
      $region17: #{tpu_custom_call.1} parent=11 // pred_check
        %p216 = pneg %p109
      $region18: #{tpu_custom_call.1} parent=11 // pred_check_branch
        %218 = sbr.rel (%p216) target = $region20
      $region19: #{tpu_custom_call.1} parent=11 // pred_region
        _
      $region20: #{tpu_custom_call.1} parent=11 // pred_fallthru
        _
      // Predicated region
      $region21: #{tpu_custom_call.1} parent=11 // pred_check
        %p219 = pneg %p130
      $region22: #{tpu_custom_call.1} parent=11 // pred_check_branch
        %221 = sbr.rel (%p219) target = $region24
      $region23: #{tpu_custom_call.1} parent=11 // pred_region
        _
      $region24: #{tpu_custom_call.1} parent=11 // pred_fallthru
        _
      // Predicated region
      $region25: #{tpu_custom_call.1} parent=11 // pred_check
        %p222 = pneg %p151
      $region26: #{tpu_custom_call.1} parent=11 // pred_check_branch
        %224 = sbr.rel (%p222) target = $region28
      $region27: #{tpu_custom_call.1} parent=11 // pred_region
        _
      $region28: #{tpu_custom_call.1} parent=11 // pred_fallthru
        _
      // Predicated region
      $region29: #{tpu_custom_call.1} parent=11 // pred_check
        %p225 = pneg %p172
      $region30: #{tpu_custom_call.1} parent=11 // pred_check_branch
        %227 = sbr.rel (%p225) target = $region32
      $region31: #{tpu_custom_call.1} parent=11 // pred_region
        _
      $region32: #{tpu_custom_call.1} parent=11 // pred_fallthru
        _
    $region12: #{tpu_custom_call.1} parent=5 // pred_fallthru
      _
    %p228 = scmp.lt.s32.totalorder %s15, 2
    // Predicated region
    $region33: #{tpu_custom_call.1} parent=5 // pred_check
      %p229 = pneg %p228
    $region34: #{tpu_custom_call.1} parent=5 // pred_check_branch
      %231 = sbr.rel (%p229) target = $region36
    $region35: #{tpu_custom_call.1} parent=5 // pred_region
      // Predicated region
      $region37: #{tpu_custom_call.1} parent=35 // pred_check
        %p232 = pneg %p35
      $region38: #{tpu_custom_call.1} parent=35 // pred_check_branch
        %234 = sbr.rel (%p232) target = $region40
      $region39: #{tpu_custom_call.1} parent=35 // pred_region
        %s235 = smul.u32 16, %s15
        %p236 = scmp.lt.s32.totalorder %s235, 31
        %s237 = scalar_select %p236, %s235, 31
        %s238 = smul.addr %s237, 8
        %s239 = scalar_lea.vmem %s0, %s238
        %s240 = smul.u32 16, %s15
      $region40: #{tpu_custom_call.1} parent=35 // pred_fallthru
        _
      // Predicated region
      $region41: #{tpu_custom_call.1} parent=35 // pred_check
        %p241 = pneg %p61
      $region42: #{tpu_custom_call.1} parent=35 // pred_check_branch
        %243 = sbr.rel (%p241) target = $region44
      $region43: #{tpu_custom_call.1} parent=35 // pred_region
        %s244 = smul.u32 16, %s15
        %p245 = scmp.lt.s32.totalorder %s244, 31
        %s246 = scalar_select %p245, %s244, 31
        %s247 = smul.addr %s246, 8
        %s248 = scalar_lea.vmem %s1, %s247
        %s249 = smul.u32 16, %s15
      $region44: #{tpu_custom_call.1} parent=35 // pred_fallthru
        _
    $region36: #{tpu_custom_call.1} parent=5 // pred_fallthru
      _
    %p250 = scmp.le.s32.totalorder 1, %s15
    %p251 = scmp.lt.s32.totalorder %s15, 3
    %p252 = pnand %p250, %p251
    %p253 = pneg %p252
    // Predicated region
    $region45: #{tpu_custom_call.1} parent=5 // pred_check
      _
    $region46: #{tpu_custom_call.1} parent=5 // pred_check_branch
      %255 = sbr.rel (%p252) target = $region48
    $region47: #{tpu_custom_call.1} parent=5 // pred_region
      %s256 = ssub.s32 %s15, 1
      %s257 = smul.u32 16, %s20
      %p258 = scmp.lt.s32.totalorder %s257, 31
      %s259 = scalar_select %p258, %s257, 31
      %s260 = smul.addr %s259, 8
      %s261 = scalar_lea.vmem %s0, %s260
      %p262 = pneg %p41
      %p263 = pneg %p38
      %s264 = smul.u32 16, %s20
      %p265 = scmp.lt.s32.totalorder %s264, 31
      %s266 = scalar_select %p265, %s264, 31
      %s267 = smul.addr %s266, 8
      %s268 = scalar_lea.vmem %s1, %s267
      %p269 = pneg %p67
      %p270 = pneg %p64
      %p271 = pneg %p88
      %p272 = pneg %p85
      %p273 = pneg %p109
      %p274 = pneg %p106
      %p275 = pneg %p130
      %p276 = pneg %p127
      %p277 = pneg %p151
      %p278 = pneg %p148
      %p279 = pneg %p172
      %p280 = pneg %p169
      %p281 = pneg %p198
      %p282 = pneg %p195
      %s283 = smul.u32 16, %s20
      %p284 = scmp.lt.s32.totalorder %s283, 31
      %s285 = scalar_select %p284, %s283, 31
      %s286 = smul.addr %s285, 8
      %s287 = scalar_lea.vmem %s7, %s286
      %s288 = smul.u32 16, %s20
      %p289 = scmp.lt.s32.totalorder %s288, 31
      %s290 = scalar_select %p289, %s288, 31
      %s291 = smul.addr %s290, 8
      %s292 = scalar_lea.vmem %s0, %s291
      %s293 = smul.u32 16, %s20
      %s294 = smul.u32 16, %s20
      %p295 = scmp.lt.s32.totalorder %s294, 31
      %s296 = scalar_select %p295, %s294, 31
      %s297 = smul.addr %s296, 8
      %s298 = scalar_lea.vmem %s1, %s297
      %s299 = smul.u32 16, %s20
      %s300 = smul.u32 16, %s20
      %p301 = scmp.lt.s32.totalorder %s300, 31
      %s302 = scalar_select %p301, %s300, 31
      %s303 = smul.addr %s302, 8
      %s304 = scalar_lea.vmem %s7, %s303
      %s305 = smul.u32 16, %s20
      %v306 = vld [vmem:[%s292] sm:$0xff]
      %v307 = vld [vmem:[%s292 + $0x8] sm:$0xff]
      %v308 = vld [vmem:[%s292 + $0x10] sm:$0xff]
      %v309 = vld [vmem:[%s292 + $0x18] sm:$0xff]
      %v310 = vld [vmem:[%s292 + $0x20] sm:$0xff]
      %v311 = vld [vmem:[%s292 + $0x28] sm:$0xff]
      %v312 = vld [vmem:[%s292 + $0x30] sm:$0xff]
      %v313 = vld [vmem:[%s292 + $0x38] sm:$0xff]
      %v314 = vld [vmem:[%s292 + $0x40] sm:$0xff]
      %v315 = vld [vmem:[%s292 + $0x48] sm:$0xff]
      %v316 = vld [vmem:[%s292 + $0x50] sm:$0xff]
      %v317 = vld [vmem:[%s292 + $0x58] sm:$0xff]
      %v318 = vld [vmem:[%s292 + $0x60] sm:$0xff]
      %v319 = vld [vmem:[%s292 + $0x68] sm:$0xff]
      %v320 = vld [vmem:[%s292 + $0x70] sm:$0xff]
      %v321 = vld [vmem:[%s292 + $0x78] sm:$0xff]
      %v322 = vld [vmem:[%s298] sm:$0xff]
      %v323 = vld [vmem:[%s298 + $0x8] sm:$0xff]
      %v324 = vld [vmem:[%s298 + $0x10] sm:$0xff]
      %v325 = vld [vmem:[%s298 + $0x18] sm:$0xff]
      %v326 = vld [vmem:[%s298 + $0x20] sm:$0xff]
      %v327 = vld [vmem:[%s298 + $0x28] sm:$0xff]
      %v328 = vld [vmem:[%s298 + $0x30] sm:$0xff]
      %v329 = vld [vmem:[%s298 + $0x38] sm:$0xff]
      %v330 = vld [vmem:[%s298 + $0x40] sm:$0xff]
      %v331 = vld [vmem:[%s298 + $0x48] sm:$0xff]
      %v332 = vld [vmem:[%s298 + $0x50] sm:$0xff]
      %v333 = vld [vmem:[%s298 + $0x58] sm:$0xff]
      %v334 = vld [vmem:[%s298 + $0x60] sm:$0xff]
      %v335 = vld [vmem:[%s298 + $0x68] sm:$0xff]
      %v336 = vld [vmem:[%s298 + $0x70] sm:$0xff]
      %v337 = vld [vmem:[%s298 + $0x78] sm:$0xff]
      %v338 = vld [vmem:[%s2] sm:$0xff]
      %v339 = vld [vmem:[%s2 + $0x8] sm:$0xff]
      %v340 = vld [vmem:[%s2 + $0x10] sm:$0xff]
      %v341 = vld [vmem:[%s2 + $0x18] sm:$0xff]
      %v342 = vld [vmem:[%s2 + $0x20] sm:$0xff]
      %v343 = vld [vmem:[%s2 + $0x28] sm:$0xff]
      %v344 = vld [vmem:[%s2 + $0x30] sm:$0xff]
      %v345 = vld [vmem:[%s2 + $0x38] sm:$0xff]
      %v346 = vld [vmem:[%s3] sm:$0xff]
      %v347 = vld [vmem:[%s3 + $0x8] sm:$0xff]
      %v348 = vld [vmem:[%s3 + $0x10] sm:$0xff]
      %v349 = vld [vmem:[%s3 + $0x18] sm:$0xff]
      %v350 = vld [vmem:[%s3 + $0x20] sm:$0xff]
      %v351 = vld [vmem:[%s3 + $0x28] sm:$0xff]
      %v352 = vld [vmem:[%s3 + $0x30] sm:$0xff]
      %v353 = vld [vmem:[%s3 + $0x38] sm:$0xff]
      %vm354 = vcmask 523264
      %v356 = vsel %vm354, %v322, 0
      %v359 = vsel %vm354, %v323, 0
      %v362 = vsel %vm354, %v324, 0
      %v365 = vsel %vm354, %v325, 0
      %v368 = vsel %vm354, %v326, 0
      %v371 = vsel %vm354, %v327, 0
      %v374 = vsel %vm354, %v328, 0
      %v377 = vsel %vm354, %v329, 0
      %v380 = vsel %vm354, %v330, 0
      %v383 = vsel %vm354, %v331, 0
      %v386 = vsel %vm354, %v332, 0
      %v389 = vsel %vm354, %v333, 0
      %v392 = vsel %vm354, %v334, 0
      %v395 = vsel %vm354, %v335, 0
      %v398 = vsel %vm354, %v336, 0
      %v401 = vsel %vm354, %v337, 0
      %403 = vmatprep.subr.mxu0 0.0
      %404 = vmatpush1.msra.mxu0 0.0
      %405 = vmatprep.subr.mxu0 0.0
      %406 = vmatpush1.msra.mxu0 0.0
      %407 = vmatprep.subr.mxu0 0.0
      %408 = vmatpush1.msra.mxu0 0.0
      %409 = vmatprep.subr.mxu0 0.0
      %410 = vmatpush1.msra.mxu0 0.0
      %411 = vmatprep.subr.mxu0 0.0
      %412 = vmatpush1.msra.mxu0 0.0
      %413 = vmatprep.subr.mxu0 0.0
      %414 = vmatpush1.msra.mxu0 0.0
      %415 = vmatprep.subr.mxu0 0.0
      %416 = vmatpush1.msra.mxu0 0.0
      %417 = vmatprep.subr.mxu0 0.0
      %418 = vmatpush1.msra.mxu0 0.0
      %419 = vmatprep.subr.mxu0 0.0
      %v420 = vand.u32 %v353, 4294901760
      %421 = vmatpush1.msra.mxu0 %v420
      %422 = vmatprep.subr.mxu0 0.0
      %v423 = vand.u32 %v352, 4294901760
      %424 = vmatpush1.msra.mxu0 %v423
      %425 = vmatprep.subr.mxu0 0.0
      %v426 = vand.u32 %v351, 4294901760
      %427 = vmatpush1.msra.mxu0 %v426
      %428 = vmatprep.subr.mxu0 0.0
      %v429 = vand.u32 %v350, 4294901760
      %430 = vmatpush1.msra.mxu0 %v429
      %431 = vmatprep.subr.mxu0 0.0
      %v432 = vand.u32 %v349, 4294901760
      %433 = vmatpush1.msra.mxu0 %v432
      %434 = vmatprep.subr.mxu0 0.0
      %v435 = vand.u32 %v348, 4294901760
      %436 = vmatpush1.msra.mxu0 %v435
      %437 = vmatprep.subr.mxu0 0.0
      %v438 = vand.u32 %v347, 4294901760
      %439 = vmatpush1.msra.mxu0 %v438
      %440 = vmatprep.subr.mxu0 0.0
      %v441 = vand.u32 %v346, 4294901760
      %442 = vmatpush1.msra.mxu0 %v441
      %443 = vmatprep.subr.mxu0 0.0
      %444 = vmatpush2.msra.mxu0 0.0
      %445 = vmatprep.subr.mxu0 0.0
      %446 = vmatpush2.msra.mxu0 0.0
      %447 = vmatprep.subr.mxu0 0.0
      %448 = vmatpush2.msra.mxu0 0.0
      %449 = vmatprep.subr.mxu0 0.0
      %450 = vmatpush2.msra.mxu0 0.0
      %451 = vmatprep.subr.mxu0 0.0
      %452 = vmatpush2.msra.mxu0 0.0
      %453 = vmatprep.subr.mxu0 0.0
      %454 = vmatpush2.msra.mxu0 0.0
      %455 = vmatprep.subr.mxu0 0.0
      %456 = vmatpush2.msra.mxu0 0.0
      %457 = vmatprep.subr.mxu0 0.0
      %458 = vmatpush2.msra.mxu0 0.0
      %459 = vmatprep.subr.mxu0 0.0
      %460 = vmatpush2.msra.mxu0 0.0
      %461 = vmatprep.subr.mxu0 0.0
      %462 = vmatpush2.msra.mxu0 0.0
      %463 = vmatprep.subr.mxu0 0.0
      %464 = vmatpush2.msra.mxu0 0.0
      %465 = vmatprep.subr.mxu0 0.0
      %466 = vmatpush2.msra.mxu0 0.0
      %467 = vmatprep.subr.mxu0 0.0
      %468 = vmatpush2.msra.mxu0 0.0
      %469 = vmatprep.subr.mxu0 0.0
      %470 = vmatpush2.msra.mxu0 0.0
      %471 = vmatprep.subr.mxu0 0.0
      %472 = vmatpush2.msra.mxu0 0.0
      %473 = vmatprep.subr.mxu0 0.0
      %474 = vmatpush2.msra.mxu0 0.0
      %475 = vmatprep.mubr.f32.mxu0 0.0
      %v476 = vand.u32 %v356, 4294901760
      %v477 = vsub.f32 %v356, %v476
      %v478 = vand.u32 %v477, 4294901760
      %v479 = vsub.f32 %v477, %v478
      %v480 = vand.u32 %v479, 4294901760
      %481 = vmatmul.mubr.f32.gmra.mxu0 %v480
      %v482 = vpop.f32.mrf.mxu0
      %v483 = vadd.f32 0.0, %v482
      %v484 = vpop.f32.mrf.mxu0
      %485 = vmatprep.mubr.f32.mxu0 0.0
      %v486 = vand.u32 %v359, 4294901760
      %v487 = vsub.f32 %v359, %v486
      %v488 = vand.u32 %v487, 4294901760
      %v489 = vsub.f32 %v487, %v488
      %v490 = vand.u32 %v489, 4294901760
      %491 = vmatmul.mubr.f32.gmra.mxu0 %v490
      %v492 = vpop.f32.mrf.mxu0
      %v493 = vadd.f32 0.0, %v492
      %v494 = vpop.f32.mrf.mxu0
      %495 = vmatprep.mubr.f32.mxu0 0.0
      %v496 = vand.u32 %v362, 4294901760
      %v497 = vsub.f32 %v362, %v496
      %v498 = vand.u32 %v497, 4294901760
      %v499 = vsub.f32 %v497, %v498
      %v500 = vand.u32 %v499, 4294901760
      %501 = vmatmul.mubr.f32.gmra.mxu0 %v500
      %v502 = vpop.f32.mrf.mxu0
      %v503 = vadd.f32 0.0, %v502
      %v504 = vpop.f32.mrf.mxu0
      %505 = vmatprep.mubr.f32.mxu0 0.0
      %v506 = vand.u32 %v365, 4294901760
      %v507 = vsub.f32 %v365, %v506
      %v508 = vand.u32 %v507, 4294901760
      %v509 = vsub.f32 %v507, %v508
      %v510 = vand.u32 %v509, 4294901760
      %511 = vmatmul.mubr.f32.gmra.mxu0 %v510
      %v512 = vpop.f32.mrf.mxu0
      %v513 = vadd.f32 0.0, %v512
      %v514 = vpop.f32.mrf.mxu0
      %515 = vmatprep.mubr.f32.mxu0 0.0
      %v516 = vand.u32 %v368, 4294901760
      %v517 = vsub.f32 %v368, %v516
      %v518 = vand.u32 %v517, 4294901760
      %v519 = vsub.f32 %v517, %v518
      %v520 = vand.u32 %v519, 4294901760
      %521 = vmatmul.mubr.f32.gmra.mxu0 %v520
      %v522 = vpop.f32.mrf.mxu0
      %v523 = vadd.f32 0.0, %v522
      %v524 = vpop.f32.mrf.mxu0
      %525 = vmatprep.mubr.f32.mxu0 0.0
      %v526 = vand.u32 %v371, 4294901760
      %v527 = vsub.f32 %v371, %v526
      %v528 = vand.u32 %v527, 4294901760
      %v529 = vsub.f32 %v527, %v528
      %v530 = vand.u32 %v529, 4294901760
      %531 = vmatmul.mubr.f32.gmra.mxu0 %v530
      %v532 = vpop.f32.mrf.mxu0
      %v533 = vadd.f32 0.0, %v532
      %v534 = vpop.f32.mrf.mxu0
      %535 = vmatprep.mubr.f32.mxu0 0.0
      %v536 = vand.u32 %v374, 4294901760
      %v537 = vsub.f32 %v374, %v536
      %v538 = vand.u32 %v537, 4294901760
      %v539 = vsub.f32 %v537, %v538
      %v540 = vand.u32 %v539, 4294901760
      %541 = vmatmul.mubr.f32.gmra.mxu0 %v540
      %v542 = vpop.f32.mrf.mxu0
      %v543 = vadd.f32 0.0, %v542
      %v544 = vpop.f32.mrf.mxu0
      %545 = vmatprep.mubr.f32.mxu0 0.0
      %v546 = vand.u32 %v377, 4294901760
      %v547 = vsub.f32 %v377, %v546
      %v548 = vand.u32 %v547, 4294901760
      %v549 = vsub.f32 %v547, %v548
      %v550 = vand.u32 %v549, 4294901760
      %551 = vmatmul.mubr.f32.gmra.mxu0 %v550
      %v552 = vpop.f32.mrf.mxu0
      %v553 = vadd.f32 0.0, %v552
      %v554 = vpop.f32.mrf.mxu0
      %555 = vmatprep.mubr.f32.mxu0 0.0
      %v556 = vand.u32 %v380, 4294901760
      %v557 = vsub.f32 %v380, %v556
      %v558 = vand.u32 %v557, 4294901760
      %v559 = vsub.f32 %v557, %v558
      %v560 = vand.u32 %v559, 4294901760
      %561 = vmatmul.mubr.f32.gmra.mxu0 %v560
      %v562 = vpop.f32.mrf.mxu0
      %v563 = vadd.f32 0.0, %v562
      %v564 = vpop.f32.mrf.mxu0
      %565 = vmatprep.mubr.f32.mxu0 0.0
      %v566 = vand.u32 %v383, 4294901760
      %v567 = vsub.f32 %v383, %v566
      %v568 = vand.u32 %v567, 4294901760
      %v569 = vsub.f32 %v567, %v568
      %v570 = vand.u32 %v569, 4294901760
      %571 = vmatmul.mubr.f32.gmra.mxu0 %v570
      %v572 = vpop.f32.mrf.mxu0
      %v573 = vadd.f32 0.0, %v572
      %v574 = vpop.f32.mrf.mxu0
      %575 = vmatprep.mubr.f32.mxu0 0.0
      %v576 = vand.u32 %v386, 4294901760
      %v577 = vsub.f32 %v386, %v576
      %v578 = vand.u32 %v577, 4294901760
      %v579 = vsub.f32 %v577, %v578
      %v580 = vand.u32 %v579, 4294901760
      %581 = vmatmul.mubr.f32.gmra.mxu0 %v580
      %v582 = vpop.f32.mrf.mxu0
      %v583 = vadd.f32 0.0, %v582
      %v584 = vpop.f32.mrf.mxu0
      %585 = vmatprep.mubr.f32.mxu0 0.0
      %v586 = vand.u32 %v389, 4294901760
      %v587 = vsub.f32 %v389, %v586
      %v588 = vand.u32 %v587, 4294901760
      %v589 = vsub.f32 %v587, %v588
      %v590 = vand.u32 %v589, 4294901760
      %591 = vmatmul.mubr.f32.gmra.mxu0 %v590
      %v592 = vpop.f32.mrf.mxu0
      %v593 = vadd.f32 0.0, %v592
      %v594 = vpop.f32.mrf.mxu0
      %595 = vmatprep.mubr.f32.mxu0 0.0
      %v596 = vand.u32 %v392, 4294901760
      %v597 = vsub.f32 %v392, %v596
      %v598 = vand.u32 %v597, 4294901760
      %v599 = vsub.f32 %v597, %v598
      %v600 = vand.u32 %v599, 4294901760
      %601 = vmatmul.mubr.f32.gmra.mxu0 %v600
      %v602 = vpop.f32.mrf.mxu0
      %v603 = vadd.f32 0.0, %v602
      %v604 = vpop.f32.mrf.mxu0
      %605 = vmatprep.mubr.f32.mxu0 0.0
      %v606 = vand.u32 %v395, 4294901760
      %v607 = vsub.f32 %v395, %v606
      %v608 = vand.u32 %v607, 4294901760
      %v609 = vsub.f32 %v607, %v608
      %v610 = vand.u32 %v609, 4294901760
      %611 = vmatmul.mubr.f32.gmra.mxu0 %v610
      %v612 = vpop.f32.mrf.mxu0
      %v613 = vadd.f32 0.0, %v612
      %v614 = vpop.f32.mrf.mxu0
      %615 = vmatprep.mubr.f32.mxu0 0.0
      %v616 = vand.u32 %v398, 4294901760
      %v617 = vsub.f32 %v398, %v616
      %v618 = vand.u32 %v617, 4294901760
      %v619 = vsub.f32 %v617, %v618
      %v620 = vand.u32 %v619, 4294901760
      %621 = vmatmul.mubr.f32.gmra.mxu0 %v620
      %v622 = vpop.f32.mrf.mxu0
      %v623 = vadd.f32 0.0, %v622
      %v624 = vpop.f32.mrf.mxu0
      %625 = vmatprep.mubr.f32.mxu0 0.0
      %v626 = vand.u32 %v401, 4294901760
      %v627 = vsub.f32 %v401, %v626
      %v628 = vand.u32 %v627, 4294901760
      %v629 = vsub.f32 %v627, %v628
      %v630 = vand.u32 %v629, 4294901760
      %631 = vmatmul.mubr.f32.gmra.mxu0 %v630
      %v632 = vpop.f32.mrf.mxu0
      %v633 = vadd.f32 0.0, %v632
      %v634 = vpop.f32.mrf.mxu0
      %635 = vdwg.mxu0
      %636 = vmatprep.subr.mxu0 0.0
      %637 = vmatpush1.msra.mxu0 0.0
      %638 = vmatprep.subr.mxu0 0.0
      %639 = vmatpush1.msra.mxu0 0.0
      %640 = vmatprep.subr.mxu0 0.0
      %641 = vmatpush1.msra.mxu0 0.0
      %642 = vmatprep.subr.mxu0 0.0
      %643 = vmatpush1.msra.mxu0 0.0
      %644 = vmatprep.subr.mxu0 0.0
      %645 = vmatpush1.msra.mxu0 0.0
      %646 = vmatprep.subr.mxu0 0.0
      %647 = vmatpush1.msra.mxu0 0.0
      %648 = vmatprep.subr.mxu0 0.0
      %649 = vmatpush1.msra.mxu0 0.0
      %650 = vmatprep.subr.mxu0 0.0
      %651 = vmatpush1.msra.mxu0 0.0
      %652 = vmatprep.subr.mxu0 0.0
      %v653 = vand.u32 %v353, 4294901760
      %v654 = vsub.f32 %v353, %v653
      %v655 = vand.u32 %v654, 4294901760
      %v656 = vsub.f32 %v654, %v655
      %v657 = vand.u32 %v656, 4294901760
      %658 = vmatpush1.msra.mxu0 %v657
      %659 = vmatprep.subr.mxu0 0.0
      %v660 = vand.u32 %v352, 4294901760
      %v661 = vsub.f32 %v352, %v660
      %v662 = vand.u32 %v661, 4294901760
      %v663 = vsub.f32 %v661, %v662
      %v664 = vand.u32 %v663, 4294901760
      %665 = vmatpush1.msra.mxu0 %v664
      %666 = vmatprep.subr.mxu0 0.0
      %v667 = vand.u32 %v351, 4294901760
      %v668 = vsub.f32 %v351, %v667
      %v669 = vand.u32 %v668, 4294901760
      %v670 = vsub.f32 %v668, %v669
      %v671 = vand.u32 %v670, 4294901760
      %672 = vmatpush1.msra.mxu0 %v671
      %673 = vmatprep.subr.mxu0 0.0
      %v674 = vand.u32 %v350, 4294901760
      %v675 = vsub.f32 %v350, %v674
      %v676 = vand.u32 %v675, 4294901760
      %v677 = vsub.f32 %v675, %v676
      %v678 = vand.u32 %v677, 4294901760
      %679 = vmatpush1.msra.mxu0 %v678
      %680 = vmatprep.subr.mxu0 0.0
      %v681 = vand.u32 %v349, 4294901760
      %v682 = vsub.f32 %v349, %v681
      %v683 = vand.u32 %v682, 4294901760
      %v684 = vsub.f32 %v682, %v683
      %v685 = vand.u32 %v684, 4294901760
      %686 = vmatpush1.msra.mxu0 %v685
      %687 = vmatprep.subr.mxu0 0.0
      %v688 = vand.u32 %v348, 4294901760
      %v689 = vsub.f32 %v348, %v688
      %v690 = vand.u32 %v689, 4294901760
      %v691 = vsub.f32 %v689, %v690
      %v692 = vand.u32 %v691, 4294901760
      %693 = vmatpush1.msra.mxu0 %v692
      %694 = vmatprep.subr.mxu0 0.0
      %v695 = vand.u32 %v347, 4294901760
      %v696 = vsub.f32 %v347, %v695
      %v697 = vand.u32 %v696, 4294901760
      %v698 = vsub.f32 %v696, %v697
      %v699 = vand.u32 %v698, 4294901760
      %700 = vmatpush1.msra.mxu0 %v699
      %701 = vmatprep.subr.mxu0 0.0
      %v702 = vand.u32 %v346, 4294901760
      %v703 = vsub.f32 %v346, %v702
      %v704 = vand.u32 %v703, 4294901760
      %v705 = vsub.f32 %v703, %v704
      %v706 = vand.u32 %v705, 4294901760
      %707 = vmatpush1.msra.mxu0 %v706
      %708 = vmatprep.subr.mxu0 0.0
      %709 = vmatpush2.msra.mxu0 0.0
      %710 = vmatprep.subr.mxu0 0.0
      %711 = vmatpush2.msra.mxu0 0.0
      %712 = vmatprep.subr.mxu0 0.0
      %713 = vmatpush2.msra.mxu0 0.0
      %714 = vmatprep.subr.mxu0 0.0
      %715 = vmatpush2.msra.mxu0 0.0
      %716 = vmatprep.subr.mxu0 0.0
      %717 = vmatpush2.msra.mxu0 0.0
      %718 = vmatprep.subr.mxu0 0.0
      %719 = vmatpush2.msra.mxu0 0.0
      %720 = vmatprep.subr.mxu0 0.0
      %721 = vmatpush2.msra.mxu0 0.0
      %722 = vmatprep.subr.mxu0 0.0
      %723 = vmatpush2.msra.mxu0 0.0
      %724 = vmatprep.subr.mxu0 0.0
      %725 = vmatpush2.msra.mxu0 0.0
      %726 = vmatprep.subr.mxu0 0.0
      %727 = vmatpush2.msra.mxu0 0.0
      %728 = vmatprep.subr.mxu0 0.0
      %729 = vmatpush2.msra.mxu0 0.0
      %730 = vmatprep.subr.mxu0 0.0
      %731 = vmatpush2.msra.mxu0 0.0
      %732 = vmatprep.subr.mxu0 0.0
      %733 = vmatpush2.msra.mxu0 0.0
      %734 = vmatprep.subr.mxu0 0.0
      %735 = vmatpush2.msra.mxu0 0.0
      %736 = vmatprep.subr.mxu0 0.0
      %737 = vmatpush2.msra.mxu0 0.0
      %738 = vmatprep.subr.mxu0 0.0
      %739 = vmatpush2.msra.mxu0 0.0
      %740 = vmatprep.mubr.f32.mxu0 0.0
      %v741 = vand.u32 %v356, 4294901760
      %742 = vmatmul.mubr.f32.gmra.mxu0 %v741
      %v743 = vpop.f32.mrf.mxu0
      %v744 = vadd.f32 %v483, %v743
      %v745 = vpop.f32.mrf.mxu0
      %746 = vmatprep.mubr.f32.mxu0 0.0
      %v747 = vand.u32 %v359, 4294901760
      %748 = vmatmul.mubr.f32.gmra.mxu0 %v747
      %v749 = vpop.f32.mrf.mxu0
      %v750 = vadd.f32 %v493, %v749
      %v751 = vpop.f32.mrf.mxu0
      %752 = vmatprep.mubr.f32.mxu0 0.0
      %v753 = vand.u32 %v362, 4294901760
      %754 = vmatmul.mubr.f32.gmra.mxu0 %v753
      %v755 = vpop.f32.mrf.mxu0
      %v756 = vadd.f32 %v503, %v755
      %v757 = vpop.f32.mrf.mxu0
      %758 = vmatprep.mubr.f32.mxu0 0.0
      %v759 = vand.u32 %v365, 4294901760
      %760 = vmatmul.mubr.f32.gmra.mxu0 %v759
      %v761 = vpop.f32.mrf.mxu0
      %v762 = vadd.f32 %v513, %v761
      %v763 = vpop.f32.mrf.mxu0
      %764 = vmatprep.mubr.f32.mxu0 0.0
      %v765 = vand.u32 %v368, 4294901760
      %766 = vmatmul.mubr.f32.gmra.mxu0 %v765
      %v767 = vpop.f32.mrf.mxu0
      %v768 = vadd.f32 %v523, %v767
      %v769 = vpop.f32.mrf.mxu0
      %770 = vmatprep.mubr.f32.mxu0 0.0
      %v771 = vand.u32 %v371, 4294901760
      %772 = vmatmul.mubr.f32.gmra.mxu0 %v771
      %v773 = vpop.f32.mrf.mxu0
      %v774 = vadd.f32 %v533, %v773
      %v775 = vpop.f32.mrf.mxu0
      %776 = vmatprep.mubr.f32.mxu0 0.0
      %v777 = vand.u32 %v374, 4294901760
      %778 = vmatmul.mubr.f32.gmra.mxu0 %v777
      %v779 = vpop.f32.mrf.mxu0
      %v780 = vadd.f32 %v543, %v779
      %v781 = vpop.f32.mrf.mxu0
      %782 = vmatprep.mubr.f32.mxu0 0.0
      %v783 = vand.u32 %v377, 4294901760
      %784 = vmatmul.mubr.f32.gmra.mxu0 %v783
      %v785 = vpop.f32.mrf.mxu0
      %v786 = vadd.f32 %v553, %v785
      %v787 = vpop.f32.mrf.mxu0
      %788 = vmatprep.mubr.f32.mxu0 0.0
      %v789 = vand.u32 %v380, 4294901760
      %790 = vmatmul.mubr.f32.gmra.mxu0 %v789
      %v791 = vpop.f32.mrf.mxu0
      %v792 = vadd.f32 %v563, %v791
      %v793 = vpop.f32.mrf.mxu0
      %794 = vmatprep.mubr.f32.mxu0 0.0
      %v795 = vand.u32 %v383, 4294901760
      %796 = vmatmul.mubr.f32.gmra.mxu0 %v795
      %v797 = vpop.f32.mrf.mxu0
      %v798 = vadd.f32 %v573, %v797
      %v799 = vpop.f32.mrf.mxu0
      %800 = vmatprep.mubr.f32.mxu0 0.0
      %v801 = vand.u32 %v386, 4294901760
      %802 = vmatmul.mubr.f32.gmra.mxu0 %v801
      %v803 = vpop.f32.mrf.mxu0
      %v804 = vadd.f32 %v583, %v803
      %v805 = vpop.f32.mrf.mxu0
      %806 = vmatprep.mubr.f32.mxu0 0.0
      %v807 = vand.u32 %v389, 4294901760
      %808 = vmatmul.mubr.f32.gmra.mxu0 %v807
      %v809 = vpop.f32.mrf.mxu0
      %v810 = vadd.f32 %v593, %v809
      %v811 = vpop.f32.mrf.mxu0
      %812 = vmatprep.mubr.f32.mxu0 0.0
      %v813 = vand.u32 %v392, 4294901760
      %814 = vmatmul.mubr.f32.gmra.mxu0 %v813
      %v815 = vpop.f32.mrf.mxu0
      %v816 = vadd.f32 %v603, %v815
      %v817 = vpop.f32.mrf.mxu0
      %818 = vmatprep.mubr.f32.mxu0 0.0
      %v819 = vand.u32 %v395, 4294901760
      %820 = vmatmul.mubr.f32.gmra.mxu0 %v819
      %v821 = vpop.f32.mrf.mxu0
      %v822 = vadd.f32 %v613, %v821
      %v823 = vpop.f32.mrf.mxu0
      %824 = vmatprep.mubr.f32.mxu0 0.0
      %v825 = vand.u32 %v398, 4294901760
      %826 = vmatmul.mubr.f32.gmra.mxu0 %v825
      %v827 = vpop.f32.mrf.mxu0
      %v828 = vadd.f32 %v623, %v827
      %v829 = vpop.f32.mrf.mxu0
      %830 = vmatprep.mubr.f32.mxu0 0.0
      %v831 = vand.u32 %v401, 4294901760
      %832 = vmatmul.mubr.f32.gmra.mxu0 %v831
      %v833 = vpop.f32.mrf.mxu0
      %v834 = vadd.f32 %v633, %v833
      %v835 = vpop.f32.mrf.mxu0
      %836 = vdwg.mxu0
      %837 = vmatprep.subr.mxu0 0.0
      %838 = vmatpush1.msra.mxu0 0.0
      %839 = vmatprep.subr.mxu0 0.0
      %840 = vmatpush1.msra.mxu0 0.0
      %841 = vmatprep.subr.mxu0 0.0
      %842 = vmatpush1.msra.mxu0 0.0
      %843 = vmatprep.subr.mxu0 0.0
      %844 = vmatpush1.msra.mxu0 0.0
      %845 = vmatprep.subr.mxu0 0.0
      %846 = vmatpush1.msra.mxu0 0.0
      %847 = vmatprep.subr.mxu0 0.0
      %848 = vmatpush1.msra.mxu0 0.0
      %849 = vmatprep.subr.mxu0 0.0
      %850 = vmatpush1.msra.mxu0 0.0
      %851 = vmatprep.subr.mxu0 0.0
      %852 = vmatpush1.msra.mxu0 0.0
      %853 = vmatprep.subr.mxu0 0.0
      %v854 = vand.u32 %v353, 4294901760
      %v855 = vsub.f32 %v353, %v854
      %856 = vmatpush1.msra.mxu0 %v855
      %857 = vmatprep.subr.mxu0 0.0
      %v858 = vand.u32 %v352, 4294901760
      %v859 = vsub.f32 %v352, %v858
      %860 = vmatpush1.msra.mxu0 %v859
      %861 = vmatprep.subr.mxu0 0.0
      %v862 = vand.u32 %v351, 4294901760
      %v863 = vsub.f32 %v351, %v862
      %864 = vmatpush1.msra.mxu0 %v863
      %865 = vmatprep.subr.mxu0 0.0
      %v866 = vand.u32 %v350, 4294901760
      %v867 = vsub.f32 %v350, %v866
      %868 = vmatpush1.msra.mxu0 %v867
      %869 = vmatprep.subr.mxu0 0.0
      %v870 = vand.u32 %v349, 4294901760
      %v871 = vsub.f32 %v349, %v870
      %872 = vmatpush1.msra.mxu0 %v871
      %873 = vmatprep.subr.mxu0 0.0
      %v874 = vand.u32 %v348, 4294901760
      %v875 = vsub.f32 %v348, %v874
      %876 = vmatpush1.msra.mxu0 %v875
      %877 = vmatprep.subr.mxu0 0.0
      %v878 = vand.u32 %v347, 4294901760
      %v879 = vsub.f32 %v347, %v878
      %880 = vmatpush1.msra.mxu0 %v879
      %881 = vmatprep.subr.mxu0 0.0
      %v882 = vand.u32 %v346, 4294901760
      %v883 = vsub.f32 %v346, %v882
      %884 = vmatpush1.msra.mxu0 %v883
      %885 = vmatprep.subr.mxu0 0.0
      %886 = vmatpush2.msra.mxu0 0.0
      %887 = vmatprep.subr.mxu0 0.0
      %888 = vmatpush2.msra.mxu0 0.0
      %889 = vmatprep.subr.mxu0 0.0
      %890 = vmatpush2.msra.mxu0 0.0
      %891 = vmatprep.subr.mxu0 0.0
      %892 = vmatpush2.msra.mxu0 0.0
      %893 = vmatprep.subr.mxu0 0.0
      %894 = vmatpush2.msra.mxu0 0.0
      %895 = vmatprep.subr.mxu0 0.0
      %896 = vmatpush2.msra.mxu0 0.0
      %897 = vmatprep.subr.mxu0 0.0
      %898 = vmatpush2.msra.mxu0 0.0
      %899 = vmatprep.subr.mxu0 0.0
      %900 = vmatpush2.msra.mxu0 0.0
      %901 = vmatprep.subr.mxu0 0.0
      %902 = vmatpush2.msra.mxu0 0.0
      %903 = vmatprep.subr.mxu0 0.0
      %904 = vmatpush2.msra.mxu0 0.0
      %905 = vmatprep.subr.mxu0 0.0
      %906 = vmatpush2.msra.mxu0 0.0
      %907 = vmatprep.subr.mxu0 0.0
      %908 = vmatpush2.msra.mxu0 0.0
      %909 = vmatprep.subr.mxu0 0.0
      %910 = vmatpush2.msra.mxu0 0.0
      %911 = vmatprep.subr.mxu0 0.0
      %912 = vmatpush2.msra.mxu0 0.0
      %913 = vmatprep.subr.mxu0 0.0
      %914 = vmatpush2.msra.mxu0 0.0
      %915 = vmatprep.subr.mxu0 0.0
      %916 = vmatpush2.msra.mxu0 0.0
      %917 = vmatprep.mubr.f32.mxu0 0.0
      %v918 = vand.u32 %v356, 4294901760
      %v919 = vsub.f32 %v356, %v918
      %920 = vmatmul.mubr.f32.gmra.mxu0 %v919
      %v921 = vpop.f32.mrf.mxu0
      %v922 = vadd.f32 %v744, %v921
      %v923 = vpop.f32.mrf.mxu0
      %924 = vmatprep.mubr.f32.mxu0 0.0
      %v925 = vand.u32 %v359, 4294901760
      %v926 = vsub.f32 %v359, %v925
      %927 = vmatmul.mubr.f32.gmra.mxu0 %v926
      %v928 = vpop.f32.mrf.mxu0
      %v929 = vadd.f32 %v750, %v928
      %v930 = vpop.f32.mrf.mxu0
      %931 = vmatprep.mubr.f32.mxu0 0.0
      %v932 = vand.u32 %v362, 4294901760
      %v933 = vsub.f32 %v362, %v932
      %934 = vmatmul.mubr.f32.gmra.mxu0 %v933
      %v935 = vpop.f32.mrf.mxu0
      %v936 = vadd.f32 %v756, %v935
      %v937 = vpop.f32.mrf.mxu0
      %938 = vmatprep.mubr.f32.mxu0 0.0
      %v939 = vand.u32 %v365, 4294901760
      %v940 = vsub.f32 %v365, %v939
      %941 = vmatmul.mubr.f32.gmra.mxu0 %v940
      %v942 = vpop.f32.mrf.mxu0
      %v943 = vadd.f32 %v762, %v942
      %v944 = vpop.f32.mrf.mxu0
      %945 = vmatprep.mubr.f32.mxu0 0.0
      %v946 = vand.u32 %v368, 4294901760
      %v947 = vsub.f32 %v368, %v946
      %948 = vmatmul.mubr.f32.gmra.mxu0 %v947
      %v949 = vpop.f32.mrf.mxu0
      %v950 = vadd.f32 %v768, %v949
      %v951 = vpop.f32.mrf.mxu0
      %952 = vmatprep.mubr.f32.mxu0 0.0
      %v953 = vand.u32 %v371, 4294901760
      %v954 = vsub.f32 %v371, %v953
      %955 = vmatmul.mubr.f32.gmra.mxu0 %v954
      %v956 = vpop.f32.mrf.mxu0
      %v957 = vadd.f32 %v774, %v956
      %v958 = vpop.f32.mrf.mxu0
      %959 = vmatprep.mubr.f32.mxu0 0.0
      %v960 = vand.u32 %v374, 4294901760
      %v961 = vsub.f32 %v374, %v960
      %962 = vmatmul.mubr.f32.gmra.mxu0 %v961
      %v963 = vpop.f32.mrf.mxu0
      %v964 = vadd.f32 %v780, %v963
      %v965 = vpop.f32.mrf.mxu0
      %966 = vmatprep.mubr.f32.mxu0 0.0
      %v967 = vand.u32 %v377, 4294901760
      %v968 = vsub.f32 %v377, %v967
      %969 = vmatmul.mubr.f32.gmra.mxu0 %v968
      %v970 = vpop.f32.mrf.mxu0
      %v971 = vadd.f32 %v786, %v970
      %v972 = vpop.f32.mrf.mxu0
      %973 = vmatprep.mubr.f32.mxu0 0.0
      %v974 = vand.u32 %v380, 4294901760
      %v975 = vsub.f32 %v380, %v974
      %976 = vmatmul.mubr.f32.gmra.mxu0 %v975
      %v977 = vpop.f32.mrf.mxu0
      %v978 = vadd.f32 %v792, %v977
      %v979 = vpop.f32.mrf.mxu0
      %980 = vmatprep.mubr.f32.mxu0 0.0
      %v981 = vand.u32 %v383, 4294901760
      %v982 = vsub.f32 %v383, %v981
      %983 = vmatmul.mubr.f32.gmra.mxu0 %v982
      %v984 = vpop.f32.mrf.mxu0
      %v985 = vadd.f32 %v798, %v984
      %v986 = vpop.f32.mrf.mxu0
      %987 = vmatprep.mubr.f32.mxu0 0.0
      %v988 = vand.u32 %v386, 4294901760
      %v989 = vsub.f32 %v386, %v988
      %990 = vmatmul.mubr.f32.gmra.mxu0 %v989
      %v991 = vpop.f32.mrf.mxu0
      %v992 = vadd.f32 %v804, %v991
      %v993 = vpop.f32.mrf.mxu0
      %994 = vmatprep.mubr.f32.mxu0 0.0
      %v995 = vand.u32 %v389, 4294901760
      %v996 = vsub.f32 %v389, %v995
      %997 = vmatmul.mubr.f32.gmra.mxu0 %v996
      %v998 = vpop.f32.mrf.mxu0
      %v999 = vadd.f32 %v810, %v998
      %v1000 = vpop.f32.mrf.mxu0
      %1001 = vmatprep.mubr.f32.mxu0 0.0
      %v1002 = vand.u32 %v392, 4294901760
      %v1003 = vsub.f32 %v392, %v1002
      %1004 = vmatmul.mubr.f32.gmra.mxu0 %v1003
      %v1005 = vpop.f32.mrf.mxu0
      %v1006 = vadd.f32 %v816, %v1005
      %v1007 = vpop.f32.mrf.mxu0
      %1008 = vmatprep.mubr.f32.mxu0 0.0
      %v1009 = vand.u32 %v395, 4294901760
      %v1010 = vsub.f32 %v395, %v1009
      %1011 = vmatmul.mubr.f32.gmra.mxu0 %v1010
      %v1012 = vpop.f32.mrf.mxu0
      %v1013 = vadd.f32 %v822, %v1012
      %v1014 = vpop.f32.mrf.mxu0
      %1015 = vmatprep.mubr.f32.mxu0 0.0
      %v1016 = vand.u32 %v398, 4294901760
      %v1017 = vsub.f32 %v398, %v1016
      %1018 = vmatmul.mubr.f32.gmra.mxu0 %v1017
      %v1019 = vpop.f32.mrf.mxu0
      %v1020 = vadd.f32 %v828, %v1019
      %v1021 = vpop.f32.mrf.mxu0
      %1022 = vmatprep.mubr.f32.mxu0 0.0
      %v1023 = vand.u32 %v401, 4294901760
      %v1024 = vsub.f32 %v401, %v1023
      %1025 = vmatmul.mubr.f32.gmra.mxu0 %v1024
      %v1026 = vpop.f32.mrf.mxu0
      %v1027 = vadd.f32 %v834, %v1026
      %v1028 = vpop.f32.mrf.mxu0
      %1029 = vdwg.mxu0
      %1030 = vmatprep.subr.mxu0 0.0
      %1031 = vmatpush1.msra.mxu0 0.0
      %1032 = vmatprep.subr.mxu0 0.0
      %1033 = vmatpush1.msra.mxu0 0.0
      %1034 = vmatprep.subr.mxu0 0.0
      %1035 = vmatpush1.msra.mxu0 0.0
      %1036 = vmatprep.subr.mxu0 0.0
      %1037 = vmatpush1.msra.mxu0 0.0
      %1038 = vmatprep.subr.mxu0 0.0
      %1039 = vmatpush1.msra.mxu0 0.0
      %1040 = vmatprep.subr.mxu0 0.0
      %1041 = vmatpush1.msra.mxu0 0.0
      %1042 = vmatprep.subr.mxu0 0.0
      %1043 = vmatpush1.msra.mxu0 0.0
      %1044 = vmatprep.subr.mxu0 0.0
      %1045 = vmatpush1.msra.mxu0 0.0
      %1046 = vmatprep.subr.mxu0 0.0
      %v1047 = vand.u32 %v353, 4294901760
      %1048 = vmatpush1.msra.mxu0 %v1047
      %1049 = vmatprep.subr.mxu0 0.0
      %v1050 = vand.u32 %v352, 4294901760
      %1051 = vmatpush1.msra.mxu0 %v1050
      %1052 = vmatprep.subr.mxu0 0.0
      %v1053 = vand.u32 %v351, 4294901760
      %1054 = vmatpush1.msra.mxu0 %v1053
      %1055 = vmatprep.subr.mxu0 0.0
      %v1056 = vand.u32 %v350, 4294901760
      %1057 = vmatpush1.msra.mxu0 %v1056
      %1058 = vmatprep.subr.mxu0 0.0
      %v1059 = vand.u32 %v349, 4294901760
      %1060 = vmatpush1.msra.mxu0 %v1059
      %1061 = vmatprep.subr.mxu0 0.0
      %v1062 = vand.u32 %v348, 4294901760
      %1063 = vmatpush1.msra.mxu0 %v1062
      %1064 = vmatprep.subr.mxu0 0.0
      %v1065 = vand.u32 %v347, 4294901760
      %1066 = vmatpush1.msra.mxu0 %v1065
      %1067 = vmatprep.subr.mxu0 0.0
      %v1068 = vand.u32 %v346, 4294901760
      %1069 = vmatpush1.msra.mxu0 %v1068
      %1070 = vmatprep.subr.mxu0 0.0
      %1071 = vmatpush2.msra.mxu0 0.0
      %1072 = vmatprep.subr.mxu0 0.0
      %1073 = vmatpush2.msra.mxu0 0.0
      %1074 = vmatprep.subr.mxu0 0.0
      %1075 = vmatpush2.msra.mxu0 0.0
      %1076 = vmatprep.subr.mxu0 0.0
      %1077 = vmatpush2.msra.mxu0 0.0
      %1078 = vmatprep.subr.mxu0 0.0
      %1079 = vmatpush2.msra.mxu0 0.0
      %1080 = vmatprep.subr.mxu0 0.0
      %1081 = vmatpush2.msra.mxu0 0.0
      %1082 = vmatprep.subr.mxu0 0.0
      %1083 = vmatpush2.msra.mxu0 0.0
      %1084 = vmatprep.subr.mxu0 0.0
      %1085 = vmatpush2.msra.mxu0 0.0
      %1086 = vmatprep.subr.mxu0 0.0
      %1087 = vmatpush2.msra.mxu0 0.0
      %1088 = vmatprep.subr.mxu0 0.0
      %1089 = vmatpush2.msra.mxu0 0.0
      %1090 = vmatprep.subr.mxu0 0.0
      %1091 = vmatpush2.msra.mxu0 0.0
      %1092 = vmatprep.subr.mxu0 0.0
      %1093 = vmatpush2.msra.mxu0 0.0
      %1094 = vmatprep.subr.mxu0 0.0
      %1095 = vmatpush2.msra.mxu0 0.0
      %1096 = vmatprep.subr.mxu0 0.0
      %1097 = vmatpush2.msra.mxu0 0.0
      %1098 = vmatprep.subr.mxu0 0.0
      %1099 = vmatpush2.msra.mxu0 0.0
      %1100 = vmatprep.subr.mxu0 0.0
      %1101 = vmatpush2.msra.mxu0 0.0
      %1102 = vmatprep.mubr.f32.mxu0 0.0
      %v1103 = vand.u32 %v356, 4294901760
      %v1104 = vsub.f32 %v356, %v1103
      %v1105 = vand.u32 %v1104, 4294901760
      %1106 = vmatmul.mubr.f32.gmra.mxu0 %v1105
      %v1107 = vpop.f32.mrf.mxu0
      %v1108 = vadd.f32 %v922, %v1107
      %v1109 = vpop.f32.mrf.mxu0
      %1110 = vmatprep.mubr.f32.mxu0 0.0
      %v1111 = vand.u32 %v359, 4294901760
      %v1112 = vsub.f32 %v359, %v1111
      %v1113 = vand.u32 %v1112, 4294901760
      %1114 = vmatmul.mubr.f32.gmra.mxu0 %v1113
      %v1115 = vpop.f32.mrf.mxu0
      %v1116 = vadd.f32 %v929, %v1115
      %v1117 = vpop.f32.mrf.mxu0
      %1118 = vmatprep.mubr.f32.mxu0 0.0
      %v1119 = vand.u32 %v362, 4294901760
      %v1120 = vsub.f32 %v362, %v1119
      %v1121 = vand.u32 %v1120, 4294901760
      %1122 = vmatmul.mubr.f32.gmra.mxu0 %v1121
      %v1123 = vpop.f32.mrf.mxu0
      %v1124 = vadd.f32 %v936, %v1123
      %v1125 = vpop.f32.mrf.mxu0
      %1126 = vmatprep.mubr.f32.mxu0 0.0
      %v1127 = vand.u32 %v365, 4294901760
      %v1128 = vsub.f32 %v365, %v1127
      %v1129 = vand.u32 %v1128, 4294901760
      %1130 = vmatmul.mubr.f32.gmra.mxu0 %v1129
      %v1131 = vpop.f32.mrf.mxu0
      %v1132 = vadd.f32 %v943, %v1131
      %v1133 = vpop.f32.mrf.mxu0
      %1134 = vmatprep.mubr.f32.mxu0 0.0
      %v1135 = vand.u32 %v368, 4294901760
      %v1136 = vsub.f32 %v368, %v1135
      %v1137 = vand.u32 %v1136, 4294901760
      %1138 = vmatmul.mubr.f32.gmra.mxu0 %v1137
      %v1139 = vpop.f32.mrf.mxu0
      %v1140 = vadd.f32 %v950, %v1139
      %v1141 = vpop.f32.mrf.mxu0
      %1142 = vmatprep.mubr.f32.mxu0 0.0
      %v1143 = vand.u32 %v371, 4294901760
      %v1144 = vsub.f32 %v371, %v1143
      %v1145 = vand.u32 %v1144, 4294901760
      %1146 = vmatmul.mubr.f32.gmra.mxu0 %v1145
      %v1147 = vpop.f32.mrf.mxu0
      %v1148 = vadd.f32 %v957, %v1147
      %v1149 = vpop.f32.mrf.mxu0
      %1150 = vmatprep.mubr.f32.mxu0 0.0
      %v1151 = vand.u32 %v374, 4294901760
      %v1152 = vsub.f32 %v374, %v1151
      %v1153 = vand.u32 %v1152, 4294901760
      %1154 = vmatmul.mubr.f32.gmra.mxu0 %v1153
      %v1155 = vpop.f32.mrf.mxu0
      %v1156 = vadd.f32 %v964, %v1155
      %v1157 = vpop.f32.mrf.mxu0
      %1158 = vmatprep.mubr.f32.mxu0 0.0
      %v1159 = vand.u32 %v377, 4294901760
      %v1160 = vsub.f32 %v377, %v1159
      %v1161 = vand.u32 %v1160, 4294901760
      %1162 = vmatmul.mubr.f32.gmra.mxu0 %v1161
      %v1163 = vpop.f32.mrf.mxu0
      %v1164 = vadd.f32 %v971, %v1163
      %v1165 = vpop.f32.mrf.mxu0
      %1166 = vmatprep.mubr.f32.mxu0 0.0
      %v1167 = vand.u32 %v380, 4294901760
      %v1168 = vsub.f32 %v380, %v1167
      %v1169 = vand.u32 %v1168, 4294901760
      %1170 = vmatmul.mubr.f32.gmra.mxu0 %v1169
      %v1171 = vpop.f32.mrf.mxu0
      %v1172 = vadd.f32 %v978, %v1171
      %v1173 = vpop.f32.mrf.mxu0
      %1174 = vmatprep.mubr.f32.mxu0 0.0
      %v1175 = vand.u32 %v383, 4294901760
      %v1176 = vsub.f32 %v383, %v1175
      %v1177 = vand.u32 %v1176, 4294901760
      %1178 = vmatmul.mubr.f32.gmra.mxu0 %v1177
      %v1179 = vpop.f32.mrf.mxu0
      %v1180 = vadd.f32 %v985, %v1179
      %v1181 = vpop.f32.mrf.mxu0
      %1182 = vmatprep.mubr.f32.mxu0 0.0
      %v1183 = vand.u32 %v386, 4294901760
      %v1184 = vsub.f32 %v386, %v1183
      %v1185 = vand.u32 %v1184, 4294901760
      %1186 = vmatmul.mubr.f32.gmra.mxu0 %v1185
      %v1187 = vpop.f32.mrf.mxu0
      %v1188 = vadd.f32 %v992, %v1187
      %v1189 = vpop.f32.mrf.mxu0
      %1190 = vmatprep.mubr.f32.mxu0 0.0
      %v1191 = vand.u32 %v389, 4294901760
      %v1192 = vsub.f32 %v389, %v1191
      %v1193 = vand.u32 %v1192, 4294901760
      %1194 = vmatmul.mubr.f32.gmra.mxu0 %v1193
      %v1195 = vpop.f32.mrf.mxu0
      %v1196 = vadd.f32 %v999, %v1195
      %v1197 = vpop.f32.mrf.mxu0
      %1198 = vmatprep.mubr.f32.mxu0 0.0
      %v1199 = vand.u32 %v392, 4294901760
      %v1200 = vsub.f32 %v392, %v1199
      %v1201 = vand.u32 %v1200, 4294901760
      %1202 = vmatmul.mubr.f32.gmra.mxu0 %v1201
      %v1203 = vpop.f32.mrf.mxu0
      %v1204 = vadd.f32 %v1006, %v1203
      %v1205 = vpop.f32.mrf.mxu0
      %1206 = vmatprep.mubr.f32.mxu0 0.0
      %v1207 = vand.u32 %v395, 4294901760
      %v1208 = vsub.f32 %v395, %v1207
      %v1209 = vand.u32 %v1208, 4294901760
      %1210 = vmatmul.mubr.f32.gmra.mxu0 %v1209
      %v1211 = vpop.f32.mrf.mxu0
      %v1212 = vadd.f32 %v1013, %v1211
      %v1213 = vpop.f32.mrf.mxu0
      %1214 = vmatprep.mubr.f32.mxu0 0.0
      %v1215 = vand.u32 %v398, 4294901760
      %v1216 = vsub.f32 %v398, %v1215
      %v1217 = vand.u32 %v1216, 4294901760
      %1218 = vmatmul.mubr.f32.gmra.mxu0 %v1217
      %v1219 = vpop.f32.mrf.mxu0
      %v1220 = vadd.f32 %v1020, %v1219
      %v1221 = vpop.f32.mrf.mxu0
      %1222 = vmatprep.mubr.f32.mxu0 0.0
      %v1223 = vand.u32 %v401, 4294901760
      %v1224 = vsub.f32 %v401, %v1223
      %v1225 = vand.u32 %v1224, 4294901760
      %1226 = vmatmul.mubr.f32.gmra.mxu0 %v1225
      %v1227 = vpop.f32.mrf.mxu0
      %v1228 = vadd.f32 %v1027, %v1227
      %v1229 = vpop.f32.mrf.mxu0
      %1230 = vdwg.mxu0
      %1231 = vmatprep.subr.mxu0 0.0
      %1232 = vmatpush1.msra.mxu0 0.0
      %1233 = vmatprep.subr.mxu0 0.0
      %1234 = vmatpush1.msra.mxu0 0.0
      %1235 = vmatprep.subr.mxu0 0.0
      %1236 = vmatpush1.msra.mxu0 0.0
      %1237 = vmatprep.subr.mxu0 0.0
      %1238 = vmatpush1.msra.mxu0 0.0
      %1239 = vmatprep.subr.mxu0 0.0
      %1240 = vmatpush1.msra.mxu0 0.0
      %1241 = vmatprep.subr.mxu0 0.0
      %1242 = vmatpush1.msra.mxu0 0.0
      %1243 = vmatprep.subr.mxu0 0.0
      %1244 = vmatpush1.msra.mxu0 0.0
      %1245 = vmatprep.subr.mxu0 0.0
      %1246 = vmatpush1.msra.mxu0 0.0
      %1247 = vmatprep.subr.mxu0 0.0
      %v1248 = vand.u32 %v353, 4294901760
      %v1249 = vsub.f32 %v353, %v1248
      %v1250 = vand.u32 %v1249, 4294901760
      %1251 = vmatpush1.msra.mxu0 %v1250
      %1252 = vmatprep.subr.mxu0 0.0
      %v1253 = vand.u32 %v352, 4294901760
      %v1254 = vsub.f32 %v352, %v1253
      %v1255 = vand.u32 %v1254, 4294901760
      %1256 = vmatpush1.msra.mxu0 %v1255
      %1257 = vmatprep.subr.mxu0 0.0
      %v1258 = vand.u32 %v351, 4294901760
      %v1259 = vsub.f32 %v351, %v1258
      %v1260 = vand.u32 %v1259, 4294901760
      %1261 = vmatpush1.msra.mxu0 %v1260
      %1262 = vmatprep.subr.mxu0 0.0
      %v1263 = vand.u32 %v350, 4294901760
      %v1264 = vsub.f32 %v350, %v1263
      %v1265 = vand.u32 %v1264, 4294901760
      %1266 = vmatpush1.msra.mxu0 %v1265
      %1267 = vmatprep.subr.mxu0 0.0
      %v1268 = vand.u32 %v349, 4294901760
      %v1269 = vsub.f32 %v349, %v1268
      %v1270 = vand.u32 %v1269, 4294901760
      %1271 = vmatpush1.msra.mxu0 %v1270
      %1272 = vmatprep.subr.mxu0 0.0
      %v1273 = vand.u32 %v348, 4294901760
      %v1274 = vsub.f32 %v348, %v1273
      %v1275 = vand.u32 %v1274, 4294901760
      %1276 = vmatpush1.msra.mxu0 %v1275
      %1277 = vmatprep.subr.mxu0 0.0
      %v1278 = vand.u32 %v347, 4294901760
      %v1279 = vsub.f32 %v347, %v1278
      %v1280 = vand.u32 %v1279, 4294901760
      %1281 = vmatpush1.msra.mxu0 %v1280
      %1282 = vmatprep.subr.mxu0 0.0
      %v1283 = vand.u32 %v346, 4294901760
      %v1284 = vsub.f32 %v346, %v1283
      %v1285 = vand.u32 %v1284, 4294901760
      %1286 = vmatpush1.msra.mxu0 %v1285
      %1287 = vmatprep.subr.mxu0 0.0
      %1288 = vmatpush2.msra.mxu0 0.0
      %1289 = vmatprep.subr.mxu0 0.0
      %1290 = vmatpush2.msra.mxu0 0.0
      %1291 = vmatprep.subr.mxu0 0.0
      %1292 = vmatpush2.msra.mxu0 0.0
      %1293 = vmatprep.subr.mxu0 0.0
      %1294 = vmatpush2.msra.mxu0 0.0
      %1295 = vmatprep.subr.mxu0 0.0
      %1296 = vmatpush2.msra.mxu0 0.0
      %1297 = vmatprep.subr.mxu0 0.0
      %1298 = vmatpush2.msra.mxu0 0.0
      %1299 = vmatprep.subr.mxu0 0.0
      %1300 = vmatpush2.msra.mxu0 0.0
      %1301 = vmatprep.subr.mxu0 0.0
      %1302 = vmatpush2.msra.mxu0 0.0
      %1303 = vmatprep.subr.mxu0 0.0
      %1304 = vmatpush2.msra.mxu0 0.0
      %1305 = vmatprep.subr.mxu0 0.0
      %1306 = vmatpush2.msra.mxu0 0.0
      %1307 = vmatprep.subr.mxu0 0.0
      %1308 = vmatpush2.msra.mxu0 0.0
      %1309 = vmatprep.subr.mxu0 0.0
      %1310 = vmatpush2.msra.mxu0 0.0
      %1311 = vmatprep.subr.mxu0 0.0
      %1312 = vmatpush2.msra.mxu0 0.0
      %1313 = vmatprep.subr.mxu0 0.0
      %1314 = vmatpush2.msra.mxu0 0.0
      %1315 = vmatprep.subr.mxu0 0.0
      %1316 = vmatpush2.msra.mxu0 0.0
      %1317 = vmatprep.subr.mxu0 0.0
      %1318 = vmatpush2.msra.mxu0 0.0
      %1319 = vmatprep.mubr.f32.mxu0 0.0
      %v1320 = vand.u32 %v356, 4294901760
      %1321 = vmatmul.mubr.f32.gmra.mxu0 %v1320
      %v1322 = vpop.f32.mrf.mxu0
      %v1323 = vadd.f32 %v1108, %v1322
      %v1324 = vpop.f32.mrf.mxu0
      %1325 = vmatprep.mubr.f32.mxu0 0.0
      %v1326 = vand.u32 %v359, 4294901760
      %1327 = vmatmul.mubr.f32.gmra.mxu0 %v1326
      %v1328 = vpop.f32.mrf.mxu0
      %v1329 = vadd.f32 %v1116, %v1328
      %v1330 = vpop.f32.mrf.mxu0
      %1331 = vmatprep.mubr.f32.mxu0 0.0
      %v1332 = vand.u32 %v362, 4294901760
      %1333 = vmatmul.mubr.f32.gmra.mxu0 %v1332
      %v1334 = vpop.f32.mrf.mxu0
      %v1335 = vadd.f32 %v1124, %v1334
      %v1336 = vpop.f32.mrf.mxu0
      %1337 = vmatprep.mubr.f32.mxu0 0.0
      %v1338 = vand.u32 %v365, 4294901760
      %1339 = vmatmul.mubr.f32.gmra.mxu0 %v1338
      %v1340 = vpop.f32.mrf.mxu0
      %v1341 = vadd.f32 %v1132, %v1340
      %v1342 = vpop.f32.mrf.mxu0
      %1343 = vmatprep.mubr.f32.mxu0 0.0
      %v1344 = vand.u32 %v368, 4294901760
      %1345 = vmatmul.mubr.f32.gmra.mxu0 %v1344
      %v1346 = vpop.f32.mrf.mxu0
      %v1347 = vadd.f32 %v1140, %v1346
      %v1348 = vpop.f32.mrf.mxu0
      %1349 = vmatprep.mubr.f32.mxu0 0.0
      %v1350 = vand.u32 %v371, 4294901760
      %1351 = vmatmul.mubr.f32.gmra.mxu0 %v1350
      %v1352 = vpop.f32.mrf.mxu0
      %v1353 = vadd.f32 %v1148, %v1352
      %v1354 = vpop.f32.mrf.mxu0
      %1355 = vmatprep.mubr.f32.mxu0 0.0
      %v1356 = vand.u32 %v374, 4294901760
      %1357 = vmatmul.mubr.f32.gmra.mxu0 %v1356
      %v1358 = vpop.f32.mrf.mxu0
      %v1359 = vadd.f32 %v1156, %v1358
      %v1360 = vpop.f32.mrf.mxu0
      %1361 = vmatprep.mubr.f32.mxu0 0.0
      %v1362 = vand.u32 %v377, 4294901760
      %1363 = vmatmul.mubr.f32.gmra.mxu0 %v1362
      %v1364 = vpop.f32.mrf.mxu0
      %v1365 = vadd.f32 %v1164, %v1364
      %v1366 = vpop.f32.mrf.mxu0
      %1367 = vmatprep.mubr.f32.mxu0 0.0
      %v1368 = vand.u32 %v380, 4294901760
      %1369 = vmatmul.mubr.f32.gmra.mxu0 %v1368
      %v1370 = vpop.f32.mrf.mxu0
      %v1371 = vadd.f32 %v1172, %v1370
      %v1372 = vpop.f32.mrf.mxu0
      %1373 = vmatprep.mubr.f32.mxu0 0.0
      %v1374 = vand.u32 %v383, 4294901760
      %1375 = vmatmul.mubr.f32.gmra.mxu0 %v1374
      %v1376 = vpop.f32.mrf.mxu0
      %v1377 = vadd.f32 %v1180, %v1376
      %v1378 = vpop.f32.mrf.mxu0
      %1379 = vmatprep.mubr.f32.mxu0 0.0
      %v1380 = vand.u32 %v386, 4294901760
      %1381 = vmatmul.mubr.f32.gmra.mxu0 %v1380
      %v1382 = vpop.f32.mrf.mxu0
      %v1383 = vadd.f32 %v1188, %v1382
      %v1384 = vpop.f32.mrf.mxu0
      %1385 = vmatprep.mubr.f32.mxu0 0.0
      %v1386 = vand.u32 %v389, 4294901760
      %1387 = vmatmul.mubr.f32.gmra.mxu0 %v1386
      %v1388 = vpop.f32.mrf.mxu0
      %v1389 = vadd.f32 %v1196, %v1388
      %v1390 = vpop.f32.mrf.mxu0
      %1391 = vmatprep.mubr.f32.mxu0 0.0
      %v1392 = vand.u32 %v392, 4294901760
      %1393 = vmatmul.mubr.f32.gmra.mxu0 %v1392
      %v1394 = vpop.f32.mrf.mxu0
      %v1395 = vadd.f32 %v1204, %v1394
      %v1396 = vpop.f32.mrf.mxu0
      %1397 = vmatprep.mubr.f32.mxu0 0.0
      %v1398 = vand.u32 %v395, 4294901760
      %1399 = vmatmul.mubr.f32.gmra.mxu0 %v1398
      %v1400 = vpop.f32.mrf.mxu0
      %v1401 = vadd.f32 %v1212, %v1400
      %v1402 = vpop.f32.mrf.mxu0
      %1403 = vmatprep.mubr.f32.mxu0 0.0
      %v1404 = vand.u32 %v398, 4294901760
      %1405 = vmatmul.mubr.f32.gmra.mxu0 %v1404
      %v1406 = vpop.f32.mrf.mxu0
      %v1407 = vadd.f32 %v1220, %v1406
      %v1408 = vpop.f32.mrf.mxu0
      %1409 = vmatprep.mubr.f32.mxu0 0.0
      %v1410 = vand.u32 %v401, 4294901760
      %1411 = vmatmul.mubr.f32.gmra.mxu0 %v1410
      %v1412 = vpop.f32.mrf.mxu0
      %v1413 = vadd.f32 %v1228, %v1412
      %v1414 = vpop.f32.mrf.mxu0
      %1415 = vdwg.mxu0
      %1416 = vmatprep.subr.mxu0 0.0
      %1417 = vmatpush1.msra.mxu0 0.0
      %1418 = vmatprep.subr.mxu0 0.0
      %1419 = vmatpush1.msra.mxu0 0.0
      %1420 = vmatprep.subr.mxu0 0.0
      %1421 = vmatpush1.msra.mxu0 0.0
      %1422 = vmatprep.subr.mxu0 0.0
      %1423 = vmatpush1.msra.mxu0 0.0
      %1424 = vmatprep.subr.mxu0 0.0
      %1425 = vmatpush1.msra.mxu0 0.0
      %1426 = vmatprep.subr.mxu0 0.0
      %1427 = vmatpush1.msra.mxu0 0.0
      %1428 = vmatprep.subr.mxu0 0.0
      %1429 = vmatpush1.msra.mxu0 0.0
      %1430 = vmatprep.subr.mxu0 0.0
      %1431 = vmatpush1.msra.mxu0 0.0
      %1432 = vmatprep.subr.mxu0 0.0
      %v1433 = vand.u32 %v353, 4294901760
      %1434 = vmatpush1.msra.mxu0 %v1433
      %1435 = vmatprep.subr.mxu0 0.0
      %v1436 = vand.u32 %v352, 4294901760
      %1437 = vmatpush1.msra.mxu0 %v1436
      %1438 = vmatprep.subr.mxu0 0.0
      %v1439 = vand.u32 %v351, 4294901760
      %1440 = vmatpush1.msra.mxu0 %v1439
      %1441 = vmatprep.subr.mxu0 0.0
      %v1442 = vand.u32 %v350, 4294901760
      %1443 = vmatpush1.msra.mxu0 %v1442
      %1444 = vmatprep.subr.mxu0 0.0
      %v1445 = vand.u32 %v349, 4294901760
      %1446 = vmatpush1.msra.mxu0 %v1445
      %1447 = vmatprep.subr.mxu0 0.0
      %v1448 = vand.u32 %v348, 4294901760
      %1449 = vmatpush1.msra.mxu0 %v1448
      %1450 = vmatprep.subr.mxu0 0.0
      %v1451 = vand.u32 %v347, 4294901760
      %1452 = vmatpush1.msra.mxu0 %v1451
      %1453 = vmatprep.subr.mxu0 0.0
      %v1454 = vand.u32 %v346, 4294901760
      %1455 = vmatpush1.msra.mxu0 %v1454
      %1456 = vmatprep.subr.mxu0 0.0
      %1457 = vmatpush2.msra.mxu0 0.0
      %1458 = vmatprep.subr.mxu0 0.0
      %1459 = vmatpush2.msra.mxu0 0.0
      %1460 = vmatprep.subr.mxu0 0.0
      %1461 = vmatpush2.msra.mxu0 0.0
      %1462 = vmatprep.subr.mxu0 0.0
      %1463 = vmatpush2.msra.mxu0 0.0
      %1464 = vmatprep.subr.mxu0 0.0
      %1465 = vmatpush2.msra.mxu0 0.0
      %1466 = vmatprep.subr.mxu0 0.0
      %1467 = vmatpush2.msra.mxu0 0.0
      %1468 = vmatprep.subr.mxu0 0.0
      %1469 = vmatpush2.msra.mxu0 0.0
      %1470 = vmatprep.subr.mxu0 0.0
      %1471 = vmatpush2.msra.mxu0 0.0
      %1472 = vmatprep.subr.mxu0 0.0
      %1473 = vmatpush2.msra.mxu0 0.0
      %1474 = vmatprep.subr.mxu0 0.0
      %1475 = vmatpush2.msra.mxu0 0.0
      %1476 = vmatprep.subr.mxu0 0.0
      %1477 = vmatpush2.msra.mxu0 0.0
      %1478 = vmatprep.subr.mxu0 0.0
      %1479 = vmatpush2.msra.mxu0 0.0
      %1480 = vmatprep.subr.mxu0 0.0
      %1481 = vmatpush2.msra.mxu0 0.0
      %1482 = vmatprep.subr.mxu0 0.0
      %1483 = vmatpush2.msra.mxu0 0.0
      %1484 = vmatprep.subr.mxu0 0.0
      %1485 = vmatpush2.msra.mxu0 0.0
      %1486 = vmatprep.subr.mxu0 0.0
      %1487 = vmatpush2.msra.mxu0 0.0
      %1488 = vmatprep.mubr.f32.mxu0 0.0
      %v1489 = vand.u32 %v356, 4294901760
      %1490 = vmatmul.mubr.f32.gmra.mxu0 %v1489
      %v1491 = vpop.f32.mrf.mxu0
      %v1492 = vadd.f32 %v1323, %v1491
      %v1493 = vpop.f32.mrf.mxu0
      %1494 = vmatprep.mubr.f32.mxu0 0.0
      %v1495 = vand.u32 %v359, 4294901760
      %1496 = vmatmul.mubr.f32.gmra.mxu0 %v1495
      %v1497 = vpop.f32.mrf.mxu0
      %v1498 = vadd.f32 %v1329, %v1497
      %v1499 = vpop.f32.mrf.mxu0
      %1500 = vmatprep.mubr.f32.mxu0 0.0
      %v1501 = vand.u32 %v362, 4294901760
      %1502 = vmatmul.mubr.f32.gmra.mxu0 %v1501
      %v1503 = vpop.f32.mrf.mxu0
      %v1504 = vadd.f32 %v1335, %v1503
      %v1505 = vpop.f32.mrf.mxu0
      %1506 = vmatprep.mubr.f32.mxu0 0.0
      %v1507 = vand.u32 %v365, 4294901760
      %1508 = vmatmul.mubr.f32.gmra.mxu0 %v1507
      %v1509 = vpop.f32.mrf.mxu0
      %v1510 = vadd.f32 %v1341, %v1509
      %v1511 = vpop.f32.mrf.mxu0
      %1512 = vmatprep.mubr.f32.mxu0 0.0
      %v1513 = vand.u32 %v368, 4294901760
      %1514 = vmatmul.mubr.f32.gmra.mxu0 %v1513
      %v1515 = vpop.f32.mrf.mxu0
      %v1516 = vadd.f32 %v1347, %v1515
      %v1517 = vpop.f32.mrf.mxu0
      %1518 = vmatprep.mubr.f32.mxu0 0.0
      %v1519 = vand.u32 %v371, 4294901760
      %1520 = vmatmul.mubr.f32.gmra.mxu0 %v1519
      %v1521 = vpop.f32.mrf.mxu0
      %v1522 = vadd.f32 %v1353, %v1521
      %v1523 = vpop.f32.mrf.mxu0
      %1524 = vmatprep.mubr.f32.mxu0 0.0
      %v1525 = vand.u32 %v374, 4294901760
      %1526 = vmatmul.mubr.f32.gmra.mxu0 %v1525
      %v1527 = vpop.f32.mrf.mxu0
      %v1528 = vadd.f32 %v1359, %v1527
      %v1529 = vpop.f32.mrf.mxu0
      %1530 = vmatprep.mubr.f32.mxu0 0.0
      %v1531 = vand.u32 %v377, 4294901760
      %1532 = vmatmul.mubr.f32.gmra.mxu0 %v1531
      %v1533 = vpop.f32.mrf.mxu0
      %v1534 = vadd.f32 %v1365, %v1533
      %v1535 = vpop.f32.mrf.mxu0
      %1536 = vmatprep.mubr.f32.mxu0 0.0
      %v1537 = vand.u32 %v380, 4294901760
      %1538 = vmatmul.mubr.f32.gmra.mxu0 %v1537
      %v1539 = vpop.f32.mrf.mxu0
      %v1540 = vadd.f32 %v1371, %v1539
      %v1541 = vpop.f32.mrf.mxu0
      %1542 = vmatprep.mubr.f32.mxu0 0.0
      %v1543 = vand.u32 %v383, 4294901760
      %1544 = vmatmul.mubr.f32.gmra.mxu0 %v1543
      %v1545 = vpop.f32.mrf.mxu0
      %v1546 = vadd.f32 %v1377, %v1545
      %v1547 = vpop.f32.mrf.mxu0
      %1548 = vmatprep.mubr.f32.mxu0 0.0
      %v1549 = vand.u32 %v386, 4294901760
      %1550 = vmatmul.mubr.f32.gmra.mxu0 %v1549
      %v1551 = vpop.f32.mrf.mxu0
      %v1552 = vadd.f32 %v1383, %v1551
      %v1553 = vpop.f32.mrf.mxu0
      %1554 = vmatprep.mubr.f32.mxu0 0.0
      %v1555 = vand.u32 %v389, 4294901760
      %1556 = vmatmul.mubr.f32.gmra.mxu0 %v1555
      %v1557 = vpop.f32.mrf.mxu0
      %v1558 = vadd.f32 %v1389, %v1557
      %v1559 = vpop.f32.mrf.mxu0
      %1560 = vmatprep.mubr.f32.mxu0 0.0
      %v1561 = vand.u32 %v392, 4294901760
      %1562 = vmatmul.mubr.f32.gmra.mxu0 %v1561
      %v1563 = vpop.f32.mrf.mxu0
      %v1564 = vadd.f32 %v1395, %v1563
      %v1565 = vpop.f32.mrf.mxu0
      %1566 = vmatprep.mubr.f32.mxu0 0.0
      %v1567 = vand.u32 %v395, 4294901760
      %1568 = vmatmul.mubr.f32.gmra.mxu0 %v1567
      %v1569 = vpop.f32.mrf.mxu0
      %v1570 = vadd.f32 %v1401, %v1569
      %v1571 = vpop.f32.mrf.mxu0
      %1572 = vmatprep.mubr.f32.mxu0 0.0
      %v1573 = vand.u32 %v398, 4294901760
      %1574 = vmatmul.mubr.f32.gmra.mxu0 %v1573
      %v1575 = vpop.f32.mrf.mxu0
      %v1576 = vadd.f32 %v1407, %v1575
      %v1577 = vpop.f32.mrf.mxu0
      %1578 = vmatprep.mubr.f32.mxu0 0.0
      %v1579 = vand.u32 %v401, 4294901760
      %1580 = vmatmul.mubr.f32.gmra.mxu0 %v1579
      %v1581 = vpop.f32.mrf.mxu0
      %v1582 = vadd.f32 %v1413, %v1581
      %v1583 = vpop.f32.mrf.mxu0
      %1584 = vdwg.mxu0
      %v1586 = vsel %vm354, %v306, 0
      %v1589 = vsel %vm354, %v307, 0
      %v1592 = vsel %vm354, %v308, 0
      %v1595 = vsel %vm354, %v309, 0
      %v1598 = vsel %vm354, %v310, 0
      %v1601 = vsel %vm354, %v311, 0
      %v1604 = vsel %vm354, %v312, 0
      %v1607 = vsel %vm354, %v313, 0
      %v1610 = vsel %vm354, %v314, 0
      %v1613 = vsel %vm354, %v315, 0
      %v1616 = vsel %vm354, %v316, 0
      %v1619 = vsel %vm354, %v317, 0
      %v1622 = vsel %vm354, %v318, 0
      %v1625 = vsel %vm354, %v319, 0
      %v1628 = vsel %vm354, %v320, 0
      %v1631 = vsel %vm354, %v321, 0
      %1633 = vmatprep.subr.mxu0 0.0
      %1634 = vmatpush1.msra.mxu0 0.0
      %1635 = vmatprep.subr.mxu0 0.0
      %1636 = vmatpush1.msra.mxu0 0.0
      %1637 = vmatprep.subr.mxu0 0.0
      %1638 = vmatpush1.msra.mxu0 0.0
      %1639 = vmatprep.subr.mxu0 0.0
      %1640 = vmatpush1.msra.mxu0 0.0
      %1641 = vmatprep.subr.mxu0 0.0
      %1642 = vmatpush1.msra.mxu0 0.0
      %1643 = vmatprep.subr.mxu0 0.0
      %1644 = vmatpush1.msra.mxu0 0.0
      %1645 = vmatprep.subr.mxu0 0.0
      %1646 = vmatpush1.msra.mxu0 0.0
      %1647 = vmatprep.subr.mxu0 0.0
      %1648 = vmatpush1.msra.mxu0 0.0
      %1649 = vmatprep.subr.mxu0 0.0
      %v1650 = vand.u32 %v345, 4294901760
      %1651 = vmatpush1.msra.mxu0 %v1650
      %1652 = vmatprep.subr.mxu0 0.0
      %v1653 = vand.u32 %v344, 4294901760
      %1654 = vmatpush1.msra.mxu0 %v1653
      %1655 = vmatprep.subr.mxu0 0.0
      %v1656 = vand.u32 %v343, 4294901760
      %1657 = vmatpush1.msra.mxu0 %v1656
      %1658 = vmatprep.subr.mxu0 0.0
      %v1659 = vand.u32 %v342, 4294901760
      %1660 = vmatpush1.msra.mxu0 %v1659
      %1661 = vmatprep.subr.mxu0 0.0
      %v1662 = vand.u32 %v341, 4294901760
      %1663 = vmatpush1.msra.mxu0 %v1662
      %1664 = vmatprep.subr.mxu0 0.0
      %v1665 = vand.u32 %v340, 4294901760
      %1666 = vmatpush1.msra.mxu0 %v1665
      %1667 = vmatprep.subr.mxu0 0.0
      %v1668 = vand.u32 %v339, 4294901760
      %1669 = vmatpush1.msra.mxu0 %v1668
      %1670 = vmatprep.subr.mxu0 0.0
      %v1671 = vand.u32 %v338, 4294901760
      %1672 = vmatpush1.msra.mxu0 %v1671
      %1673 = vmatprep.subr.mxu0 0.0
      %1674 = vmatpush2.msra.mxu0 0.0
      %1675 = vmatprep.subr.mxu0 0.0
      %1676 = vmatpush2.msra.mxu0 0.0
      %1677 = vmatprep.subr.mxu0 0.0
      %1678 = vmatpush2.msra.mxu0 0.0
      %1679 = vmatprep.subr.mxu0 0.0
      %1680 = vmatpush2.msra.mxu0 0.0
      %1681 = vmatprep.subr.mxu0 0.0
      %1682 = vmatpush2.msra.mxu0 0.0
      %1683 = vmatprep.subr.mxu0 0.0
      %1684 = vmatpush2.msra.mxu0 0.0
      %1685 = vmatprep.subr.mxu0 0.0
      %1686 = vmatpush2.msra.mxu0 0.0
      %1687 = vmatprep.subr.mxu0 0.0
      %1688 = vmatpush2.msra.mxu0 0.0
      %1689 = vmatprep.subr.mxu0 0.0
      %1690 = vmatpush2.msra.mxu0 0.0
      %1691 = vmatprep.subr.mxu0 0.0
      %1692 = vmatpush2.msra.mxu0 0.0
      %1693 = vmatprep.subr.mxu0 0.0
      %1694 = vmatpush2.msra.mxu0 0.0
      %1695 = vmatprep.subr.mxu0 0.0
      %1696 = vmatpush2.msra.mxu0 0.0
      %1697 = vmatprep.subr.mxu0 0.0
      %1698 = vmatpush2.msra.mxu0 0.0
      %1699 = vmatprep.subr.mxu0 0.0
      %1700 = vmatpush2.msra.mxu0 0.0
      %1701 = vmatprep.subr.mxu0 0.0
      %1702 = vmatpush2.msra.mxu0 0.0
      %1703 = vmatprep.subr.mxu0 0.0
      %1704 = vmatpush2.msra.mxu0 0.0
      %1705 = vmatprep.mubr.f32.mxu0 0.0
      %v1706 = vand.u32 %v1586, 4294901760
      %v1707 = vsub.f32 %v1586, %v1706
      %v1708 = vand.u32 %v1707, 4294901760
      %v1709 = vsub.f32 %v1707, %v1708
      %v1710 = vand.u32 %v1709, 4294901760
      %1711 = vmatmul.mubr.f32.gmra.mxu0 %v1710
      %v1712 = vpop.f32.mrf.mxu0
      %v1713 = vadd.f32 %v1492, %v1712
      %v1714 = vpop.f32.mrf.mxu0
      %1715 = vmatprep.mubr.f32.mxu0 0.0
      %v1716 = vand.u32 %v1589, 4294901760
      %v1717 = vsub.f32 %v1589, %v1716
      %v1718 = vand.u32 %v1717, 4294901760
      %v1719 = vsub.f32 %v1717, %v1718
      %v1720 = vand.u32 %v1719, 4294901760
      %1721 = vmatmul.mubr.f32.gmra.mxu0 %v1720
      %v1722 = vpop.f32.mrf.mxu0
      %v1723 = vadd.f32 %v1498, %v1722
      %v1724 = vpop.f32.mrf.mxu0
      %1725 = vmatprep.mubr.f32.mxu0 0.0
      %v1726 = vand.u32 %v1592, 4294901760
      %v1727 = vsub.f32 %v1592, %v1726
      %v1728 = vand.u32 %v1727, 4294901760
      %v1729 = vsub.f32 %v1727, %v1728
      %v1730 = vand.u32 %v1729, 4294901760
      %1731 = vmatmul.mubr.f32.gmra.mxu0 %v1730
      %v1732 = vpop.f32.mrf.mxu0
      %v1733 = vadd.f32 %v1504, %v1732
      %v1734 = vpop.f32.mrf.mxu0
      %1735 = vmatprep.mubr.f32.mxu0 0.0
      %v1736 = vand.u32 %v1595, 4294901760
      %v1737 = vsub.f32 %v1595, %v1736
      %v1738 = vand.u32 %v1737, 4294901760
      %v1739 = vsub.f32 %v1737, %v1738
      %v1740 = vand.u32 %v1739, 4294901760
      %1741 = vmatmul.mubr.f32.gmra.mxu0 %v1740
      %v1742 = vpop.f32.mrf.mxu0
      %v1743 = vadd.f32 %v1510, %v1742
      %v1744 = vpop.f32.mrf.mxu0
      %1745 = vmatprep.mubr.f32.mxu0 0.0
      %v1746 = vand.u32 %v1598, 4294901760
      %v1747 = vsub.f32 %v1598, %v1746
      %v1748 = vand.u32 %v1747, 4294901760
      %v1749 = vsub.f32 %v1747, %v1748
      %v1750 = vand.u32 %v1749, 4294901760
      %1751 = vmatmul.mubr.f32.gmra.mxu0 %v1750
      %v1752 = vpop.f32.mrf.mxu0
      %v1753 = vadd.f32 %v1516, %v1752
      %v1754 = vpop.f32.mrf.mxu0
      %1755 = vmatprep.mubr.f32.mxu0 0.0
      %v1756 = vand.u32 %v1601, 4294901760
      %v1757 = vsub.f32 %v1601, %v1756
      %v1758 = vand.u32 %v1757, 4294901760
      %v1759 = vsub.f32 %v1757, %v1758
      %v1760 = vand.u32 %v1759, 4294901760
      %1761 = vmatmul.mubr.f32.gmra.mxu0 %v1760
      %v1762 = vpop.f32.mrf.mxu0
      %v1763 = vadd.f32 %v1522, %v1762
      %v1764 = vpop.f32.mrf.mxu0
      %1765 = vmatprep.mubr.f32.mxu0 0.0
      %v1766 = vand.u32 %v1604, 4294901760
      %v1767 = vsub.f32 %v1604, %v1766
      %v1768 = vand.u32 %v1767, 4294901760
      %v1769 = vsub.f32 %v1767, %v1768
      %v1770 = vand.u32 %v1769, 4294901760
      %1771 = vmatmul.mubr.f32.gmra.mxu0 %v1770
      %v1772 = vpop.f32.mrf.mxu0
      %v1773 = vadd.f32 %v1528, %v1772
      %v1774 = vpop.f32.mrf.mxu0
      %1775 = vmatprep.mubr.f32.mxu0 0.0
      %v1776 = vand.u32 %v1607, 4294901760
      %v1777 = vsub.f32 %v1607, %v1776
      %v1778 = vand.u32 %v1777, 4294901760
      %v1779 = vsub.f32 %v1777, %v1778
      %v1780 = vand.u32 %v1779, 4294901760
      %1781 = vmatmul.mubr.f32.gmra.mxu0 %v1780
      %v1782 = vpop.f32.mrf.mxu0
      %v1783 = vadd.f32 %v1534, %v1782
      %v1784 = vpop.f32.mrf.mxu0
      %1785 = vmatprep.mubr.f32.mxu0 0.0
      %v1786 = vand.u32 %v1610, 4294901760
      %v1787 = vsub.f32 %v1610, %v1786
      %v1788 = vand.u32 %v1787, 4294901760
      %v1789 = vsub.f32 %v1787, %v1788
      %v1790 = vand.u32 %v1789, 4294901760
      %1791 = vmatmul.mubr.f32.gmra.mxu0 %v1790
      %v1792 = vpop.f32.mrf.mxu0
      %v1793 = vadd.f32 %v1540, %v1792
      %v1794 = vpop.f32.mrf.mxu0
      %1795 = vmatprep.mubr.f32.mxu0 0.0
      %v1796 = vand.u32 %v1613, 4294901760
      %v1797 = vsub.f32 %v1613, %v1796
      %v1798 = vand.u32 %v1797, 4294901760
      %v1799 = vsub.f32 %v1797, %v1798
      %v1800 = vand.u32 %v1799, 4294901760
      %1801 = vmatmul.mubr.f32.gmra.mxu0 %v1800
      %v1802 = vpop.f32.mrf.mxu0
      %v1803 = vadd.f32 %v1546, %v1802
      %v1804 = vpop.f32.mrf.mxu0
      %1805 = vmatprep.mubr.f32.mxu0 0.0
      %v1806 = vand.u32 %v1616, 4294901760
      %v1807 = vsub.f32 %v1616, %v1806
      %v1808 = vand.u32 %v1807, 4294901760
      %v1809 = vsub.f32 %v1807, %v1808
      %v1810 = vand.u32 %v1809, 4294901760
      %1811 = vmatmul.mubr.f32.gmra.mxu0 %v1810
      %v1812 = vpop.f32.mrf.mxu0
      %v1813 = vadd.f32 %v1552, %v1812
      %v1814 = vpop.f32.mrf.mxu0
      %1815 = vmatprep.mubr.f32.mxu0 0.0
      %v1816 = vand.u32 %v1619, 4294901760
      %v1817 = vsub.f32 %v1619, %v1816
      %v1818 = vand.u32 %v1817, 4294901760
      %v1819 = vsub.f32 %v1817, %v1818
      %v1820 = vand.u32 %v1819, 4294901760
      %1821 = vmatmul.mubr.f32.gmra.mxu0 %v1820
      %v1822 = vpop.f32.mrf.mxu0
      %v1823 = vadd.f32 %v1558, %v1822
      %v1824 = vpop.f32.mrf.mxu0
      %1825 = vmatprep.mubr.f32.mxu0 0.0
      %v1826 = vand.u32 %v1622, 4294901760
      %v1827 = vsub.f32 %v1622, %v1826
      %v1828 = vand.u32 %v1827, 4294901760
      %v1829 = vsub.f32 %v1827, %v1828
      %v1830 = vand.u32 %v1829, 4294901760
      %1831 = vmatmul.mubr.f32.gmra.mxu0 %v1830
      %v1832 = vpop.f32.mrf.mxu0
      %v1833 = vadd.f32 %v1564, %v1832
      %v1834 = vpop.f32.mrf.mxu0
      %1835 = vmatprep.mubr.f32.mxu0 0.0
      %v1836 = vand.u32 %v1625, 4294901760
      %v1837 = vsub.f32 %v1625, %v1836
      %v1838 = vand.u32 %v1837, 4294901760
      %v1839 = vsub.f32 %v1837, %v1838
      %v1840 = vand.u32 %v1839, 4294901760
      %1841 = vmatmul.mubr.f32.gmra.mxu0 %v1840
      %v1842 = vpop.f32.mrf.mxu0
      %v1843 = vadd.f32 %v1570, %v1842
      %v1844 = vpop.f32.mrf.mxu0
      %1845 = vmatprep.mubr.f32.mxu0 0.0
      %v1846 = vand.u32 %v1628, 4294901760
      %v1847 = vsub.f32 %v1628, %v1846
      %v1848 = vand.u32 %v1847, 4294901760
      %v1849 = vsub.f32 %v1847, %v1848
      %v1850 = vand.u32 %v1849, 4294901760
      %1851 = vmatmul.mubr.f32.gmra.mxu0 %v1850
      %v1852 = vpop.f32.mrf.mxu0
      %v1853 = vadd.f32 %v1576, %v1852
      %v1854 = vpop.f32.mrf.mxu0
      %1855 = vmatprep.mubr.f32.mxu0 0.0
      %v1856 = vand.u32 %v1631, 4294901760
      %v1857 = vsub.f32 %v1631, %v1856
      %v1858 = vand.u32 %v1857, 4294901760
      %v1859 = vsub.f32 %v1857, %v1858
      %v1860 = vand.u32 %v1859, 4294901760
      %1861 = vmatmul.mubr.f32.gmra.mxu0 %v1860
      %v1862 = vpop.f32.mrf.mxu0
      %v1863 = vadd.f32 %v1582, %v1862
      %v1864 = vpop.f32.mrf.mxu0
      %1865 = vdwg.mxu0
      %1866 = vmatprep.subr.mxu0 0.0
      %1867 = vmatpush1.msra.mxu0 0.0
      %1868 = vmatprep.subr.mxu0 0.0
      %1869 = vmatpush1.msra.mxu0 0.0
      %1870 = vmatprep.subr.mxu0 0.0
      %1871 = vmatpush1.msra.mxu0 0.0
      %1872 = vmatprep.subr.mxu0 0.0
      %1873 = vmatpush1.msra.mxu0 0.0
      %1874 = vmatprep.subr.mxu0 0.0
      %1875 = vmatpush1.msra.mxu0 0.0
      %1876 = vmatprep.subr.mxu0 0.0
      %1877 = vmatpush1.msra.mxu0 0.0
      %1878 = vmatprep.subr.mxu0 0.0
      %1879 = vmatpush1.msra.mxu0 0.0
      %1880 = vmatprep.subr.mxu0 0.0
      %1881 = vmatpush1.msra.mxu0 0.0
      %1882 = vmatprep.subr.mxu0 0.0
      %v1883 = vand.u32 %v345, 4294901760
      %v1884 = vsub.f32 %v345, %v1883
      %v1885 = vand.u32 %v1884, 4294901760
      %v1886 = vsub.f32 %v1884, %v1885
      %v1887 = vand.u32 %v1886, 4294901760
      %1888 = vmatpush1.msra.mxu0 %v1887
      %1889 = vmatprep.subr.mxu0 0.0
      %v1890 = vand.u32 %v344, 4294901760
      %v1891 = vsub.f32 %v344, %v1890
      %v1892 = vand.u32 %v1891, 4294901760
      %v1893 = vsub.f32 %v1891, %v1892
      %v1894 = vand.u32 %v1893, 4294901760
      %1895 = vmatpush1.msra.mxu0 %v1894
      %1896 = vmatprep.subr.mxu0 0.0
      %v1897 = vand.u32 %v343, 4294901760
      %v1898 = vsub.f32 %v343, %v1897
      %v1899 = vand.u32 %v1898, 4294901760
      %v1900 = vsub.f32 %v1898, %v1899
      %v1901 = vand.u32 %v1900, 4294901760
      %1902 = vmatpush1.msra.mxu0 %v1901
      %1903 = vmatprep.subr.mxu0 0.0
      %v1904 = vand.u32 %v342, 4294901760
      %v1905 = vsub.f32 %v342, %v1904
      %v1906 = vand.u32 %v1905, 4294901760
      %v1907 = vsub.f32 %v1905, %v1906
      %v1908 = vand.u32 %v1907, 4294901760
      %1909 = vmatpush1.msra.mxu0 %v1908
      %1910 = vmatprep.subr.mxu0 0.0
      %v1911 = vand.u32 %v341, 4294901760
      %v1912 = vsub.f32 %v341, %v1911
      %v1913 = vand.u32 %v1912, 4294901760
      %v1914 = vsub.f32 %v1912, %v1913
      %v1915 = vand.u32 %v1914, 4294901760
      %1916 = vmatpush1.msra.mxu0 %v1915
      %1917 = vmatprep.subr.mxu0 0.0
      %v1918 = vand.u32 %v340, 4294901760
      %v1919 = vsub.f32 %v340, %v1918
      %v1920 = vand.u32 %v1919, 4294901760
      %v1921 = vsub.f32 %v1919, %v1920
      %v1922 = vand.u32 %v1921, 4294901760
      %1923 = vmatpush1.msra.mxu0 %v1922
      %1924 = vmatprep.subr.mxu0 0.0
      %v1925 = vand.u32 %v339, 4294901760
      %v1926 = vsub.f32 %v339, %v1925
      %v1927 = vand.u32 %v1926, 4294901760
      %v1928 = vsub.f32 %v1926, %v1927
      %v1929 = vand.u32 %v1928, 4294901760
      %1930 = vmatpush1.msra.mxu0 %v1929
      %1931 = vmatprep.subr.mxu0 0.0
      %v1932 = vand.u32 %v338, 4294901760
      %v1933 = vsub.f32 %v338, %v1932
      %v1934 = vand.u32 %v1933, 4294901760
      %v1935 = vsub.f32 %v1933, %v1934
      %v1936 = vand.u32 %v1935, 4294901760
      %1937 = vmatpush1.msra.mxu0 %v1936
      %1938 = vmatprep.subr.mxu0 0.0
      %1939 = vmatpush2.msra.mxu0 0.0
      %1940 = vmatprep.subr.mxu0 0.0
      %1941 = vmatpush2.msra.mxu0 0.0
      %1942 = vmatprep.subr.mxu0 0.0
      %1943 = vmatpush2.msra.mxu0 0.0
      %1944 = vmatprep.subr.mxu0 0.0
      %1945 = vmatpush2.msra.mxu0 0.0
      %1946 = vmatprep.subr.mxu0 0.0
      %1947 = vmatpush2.msra.mxu0 0.0
      %1948 = vmatprep.subr.mxu0 0.0
      %1949 = vmatpush2.msra.mxu0 0.0
      %1950 = vmatprep.subr.mxu0 0.0
      %1951 = vmatpush2.msra.mxu0 0.0
      %1952 = vmatprep.subr.mxu0 0.0
      %1953 = vmatpush2.msra.mxu0 0.0
      %1954 = vmatprep.subr.mxu0 0.0
      %1955 = vmatpush2.msra.mxu0 0.0
      %1956 = vmatprep.subr.mxu0 0.0
      %1957 = vmatpush2.msra.mxu0 0.0
      %1958 = vmatprep.subr.mxu0 0.0
      %1959 = vmatpush2.msra.mxu0 0.0
      %1960 = vmatprep.subr.mxu0 0.0
      %1961 = vmatpush2.msra.mxu0 0.0
      %1962 = vmatprep.subr.mxu0 0.0
      %1963 = vmatpush2.msra.mxu0 0.0
      %1964 = vmatprep.subr.mxu0 0.0
      %1965 = vmatpush2.msra.mxu0 0.0
      %1966 = vmatprep.subr.mxu0 0.0
      %1967 = vmatpush2.msra.mxu0 0.0
      %1968 = vmatprep.subr.mxu0 0.0
      %1969 = vmatpush2.msra.mxu0 0.0
      %1970 = vmatprep.mubr.f32.mxu0 0.0
      %v1971 = vand.u32 %v1586, 4294901760
      %1972 = vmatmul.mubr.f32.gmra.mxu0 %v1971
      %v1973 = vpop.f32.mrf.mxu0
      %v1974 = vadd.f32 %v1713, %v1973
      %v1975 = vpop.f32.mrf.mxu0
      %1976 = vmatprep.mubr.f32.mxu0 0.0
      %v1977 = vand.u32 %v1589, 4294901760
      %1978 = vmatmul.mubr.f32.gmra.mxu0 %v1977
      %v1979 = vpop.f32.mrf.mxu0
      %v1980 = vadd.f32 %v1723, %v1979
      %v1981 = vpop.f32.mrf.mxu0
      %1982 = vmatprep.mubr.f32.mxu0 0.0
      %v1983 = vand.u32 %v1592, 4294901760
      %1984 = vmatmul.mubr.f32.gmra.mxu0 %v1983
      %v1985 = vpop.f32.mrf.mxu0
      %v1986 = vadd.f32 %v1733, %v1985
      %v1987 = vpop.f32.mrf.mxu0
      %1988 = vmatprep.mubr.f32.mxu0 0.0
      %v1989 = vand.u32 %v1595, 4294901760
      %1990 = vmatmul.mubr.f32.gmra.mxu0 %v1989
      %v1991 = vpop.f32.mrf.mxu0
      %v1992 = vadd.f32 %v1743, %v1991
      %v1993 = vpop.f32.mrf.mxu0
      %1994 = vmatprep.mubr.f32.mxu0 0.0
      %v1995 = vand.u32 %v1598, 4294901760
      %1996 = vmatmul.mubr.f32.gmra.mxu0 %v1995
      %v1997 = vpop.f32.mrf.mxu0
      %v1998 = vadd.f32 %v1753, %v1997
      %v1999 = vpop.f32.mrf.mxu0
      %2000 = vmatprep.mubr.f32.mxu0 0.0
      %v2001 = vand.u32 %v1601, 4294901760
      %2002 = vmatmul.mubr.f32.gmra.mxu0 %v2001
      %v2003 = vpop.f32.mrf.mxu0
      %v2004 = vadd.f32 %v1763, %v2003
      %v2005 = vpop.f32.mrf.mxu0
      %2006 = vmatprep.mubr.f32.mxu0 0.0
      %v2007 = vand.u32 %v1604, 4294901760
      %2008 = vmatmul.mubr.f32.gmra.mxu0 %v2007
      %v2009 = vpop.f32.mrf.mxu0
      %v2010 = vadd.f32 %v1773, %v2009
      %v2011 = vpop.f32.mrf.mxu0
      %2012 = vmatprep.mubr.f32.mxu0 0.0
      %v2013 = vand.u32 %v1607, 4294901760
      %2014 = vmatmul.mubr.f32.gmra.mxu0 %v2013
      %v2015 = vpop.f32.mrf.mxu0
      %v2016 = vadd.f32 %v1783, %v2015
      %v2017 = vpop.f32.mrf.mxu0
      %2018 = vmatprep.mubr.f32.mxu0 0.0
      %v2019 = vand.u32 %v1610, 4294901760
      %2020 = vmatmul.mubr.f32.gmra.mxu0 %v2019
      %v2021 = vpop.f32.mrf.mxu0
      %v2022 = vadd.f32 %v1793, %v2021
      %v2023 = vpop.f32.mrf.mxu0
      %2024 = vmatprep.mubr.f32.mxu0 0.0
      %v2025 = vand.u32 %v1613, 4294901760
      %2026 = vmatmul.mubr.f32.gmra.mxu0 %v2025
      %v2027 = vpop.f32.mrf.mxu0
      %v2028 = vadd.f32 %v1803, %v2027
      %v2029 = vpop.f32.mrf.mxu0
      %2030 = vmatprep.mubr.f32.mxu0 0.0
      %v2031 = vand.u32 %v1616, 4294901760
      %2032 = vmatmul.mubr.f32.gmra.mxu0 %v2031
      %v2033 = vpop.f32.mrf.mxu0
      %v2034 = vadd.f32 %v1813, %v2033
      %v2035 = vpop.f32.mrf.mxu0
      %2036 = vmatprep.mubr.f32.mxu0 0.0
      %v2037 = vand.u32 %v1619, 4294901760
      %2038 = vmatmul.mubr.f32.gmra.mxu0 %v2037
      %v2039 = vpop.f32.mrf.mxu0
      %v2040 = vadd.f32 %v1823, %v2039
      %v2041 = vpop.f32.mrf.mxu0
      %2042 = vmatprep.mubr.f32.mxu0 0.0
      %v2043 = vand.u32 %v1622, 4294901760
      %2044 = vmatmul.mubr.f32.gmra.mxu0 %v2043
      %v2045 = vpop.f32.mrf.mxu0
      %v2046 = vadd.f32 %v1833, %v2045
      %v2047 = vpop.f32.mrf.mxu0
      %2048 = vmatprep.mubr.f32.mxu0 0.0
      %v2049 = vand.u32 %v1625, 4294901760
      %2050 = vmatmul.mubr.f32.gmra.mxu0 %v2049
      %v2051 = vpop.f32.mrf.mxu0
      %v2052 = vadd.f32 %v1843, %v2051
      %v2053 = vpop.f32.mrf.mxu0
      %2054 = vmatprep.mubr.f32.mxu0 0.0
      %v2055 = vand.u32 %v1628, 4294901760
      %2056 = vmatmul.mubr.f32.gmra.mxu0 %v2055
      %v2057 = vpop.f32.mrf.mxu0
      %v2058 = vadd.f32 %v1853, %v2057
      %v2059 = vpop.f32.mrf.mxu0
      %2060 = vmatprep.mubr.f32.mxu0 0.0
      %v2061 = vand.u32 %v1631, 4294901760
      %2062 = vmatmul.mubr.f32.gmra.mxu0 %v2061
      %v2063 = vpop.f32.mrf.mxu0
      %v2064 = vadd.f32 %v1863, %v2063
      %v2065 = vpop.f32.mrf.mxu0
      %2066 = vdwg.mxu0
      %2067 = vmatprep.subr.mxu0 0.0
      %2068 = vmatpush1.msra.mxu0 0.0
      %2069 = vmatprep.subr.mxu0 0.0
      %2070 = vmatpush1.msra.mxu0 0.0
      %2071 = vmatprep.subr.mxu0 0.0
      %2072 = vmatpush1.msra.mxu0 0.0
      %2073 = vmatprep.subr.mxu0 0.0
      %2074 = vmatpush1.msra.mxu0 0.0
      %2075 = vmatprep.subr.mxu0 0.0
      %2076 = vmatpush1.msra.mxu0 0.0
      %2077 = vmatprep.subr.mxu0 0.0
      %2078 = vmatpush1.msra.mxu0 0.0
      %2079 = vmatprep.subr.mxu0 0.0
      %2080 = vmatpush1.msra.mxu0 0.0
      %2081 = vmatprep.subr.mxu0 0.0
      %2082 = vmatpush1.msra.mxu0 0.0
      %2083 = vmatprep.subr.mxu0 0.0
      %v2084 = vand.u32 %v345, 4294901760
      %v2085 = vsub.f32 %v345, %v2084
      %2086 = vmatpush1.msra.mxu0 %v2085
      %2087 = vmatprep.subr.mxu0 0.0
      %v2088 = vand.u32 %v344, 4294901760
      %v2089 = vsub.f32 %v344, %v2088
      %2090 = vmatpush1.msra.mxu0 %v2089
      %2091 = vmatprep.subr.mxu0 0.0
      %v2092 = vand.u32 %v343, 4294901760
      %v2093 = vsub.f32 %v343, %v2092
      %2094 = vmatpush1.msra.mxu0 %v2093
      %2095 = vmatprep.subr.mxu0 0.0
      %v2096 = vand.u32 %v342, 4294901760
      %v2097 = vsub.f32 %v342, %v2096
      %2098 = vmatpush1.msra.mxu0 %v2097
      %2099 = vmatprep.subr.mxu0 0.0
      %v2100 = vand.u32 %v341, 4294901760
      %v2101 = vsub.f32 %v341, %v2100
      %2102 = vmatpush1.msra.mxu0 %v2101
      %2103 = vmatprep.subr.mxu0 0.0
      %v2104 = vand.u32 %v340, 4294901760
      %v2105 = vsub.f32 %v340, %v2104
      %2106 = vmatpush1.msra.mxu0 %v2105
      %2107 = vmatprep.subr.mxu0 0.0
      %v2108 = vand.u32 %v339, 4294901760
      %v2109 = vsub.f32 %v339, %v2108
      %2110 = vmatpush1.msra.mxu0 %v2109
      %2111 = vmatprep.subr.mxu0 0.0
      %v2112 = vand.u32 %v338, 4294901760
      %v2113 = vsub.f32 %v338, %v2112
      %2114 = vmatpush1.msra.mxu0 %v2113
      %2115 = vmatprep.subr.mxu0 0.0
      %2116 = vmatpush2.msra.mxu0 0.0
      %2117 = vmatprep.subr.mxu0 0.0
      %2118 = vmatpush2.msra.mxu0 0.0
      %2119 = vmatprep.subr.mxu0 0.0
      %2120 = vmatpush2.msra.mxu0 0.0
      %2121 = vmatprep.subr.mxu0 0.0
      %2122 = vmatpush2.msra.mxu0 0.0
      %2123 = vmatprep.subr.mxu0 0.0
      %2124 = vmatpush2.msra.mxu0 0.0
      %2125 = vmatprep.subr.mxu0 0.0
      %2126 = vmatpush2.msra.mxu0 0.0
      %2127 = vmatprep.subr.mxu0 0.0
      %2128 = vmatpush2.msra.mxu0 0.0
      %2129 = vmatprep.subr.mxu0 0.0
      %2130 = vmatpush2.msra.mxu0 0.0
      %2131 = vmatprep.subr.mxu0 0.0
      %2132 = vmatpush2.msra.mxu0 0.0
      %2133 = vmatprep.subr.mxu0 0.0
      %2134 = vmatpush2.msra.mxu0 0.0
      %2135 = vmatprep.subr.mxu0 0.0
      %2136 = vmatpush2.msra.mxu0 0.0
      %2137 = vmatprep.subr.mxu0 0.0
      %2138 = vmatpush2.msra.mxu0 0.0
      %2139 = vmatprep.subr.mxu0 0.0
      %2140 = vmatpush2.msra.mxu0 0.0
      %2141 = vmatprep.subr.mxu0 0.0
      %2142 = vmatpush2.msra.mxu0 0.0
      %2143 = vmatprep.subr.mxu0 0.0
      %2144 = vmatpush2.msra.mxu0 0.0
      %2145 = vmatprep.subr.mxu0 0.0
      %2146 = vmatpush2.msra.mxu0 0.0
      %2147 = vmatprep.mubr.f32.mxu0 0.0
      %v2148 = vand.u32 %v1586, 4294901760
      %v2149 = vsub.f32 %v1586, %v2148
      %2150 = vmatmul.mubr.f32.gmra.mxu0 %v2149
      %v2151 = vpop.f32.mrf.mxu0
      %v2152 = vadd.f32 %v1974, %v2151
      %v2153 = vpop.f32.mrf.mxu0
      %2154 = vmatprep.mubr.f32.mxu0 0.0
      %v2155 = vand.u32 %v1589, 4294901760
      %v2156 = vsub.f32 %v1589, %v2155
      %2157 = vmatmul.mubr.f32.gmra.mxu0 %v2156
      %v2158 = vpop.f32.mrf.mxu0
      %v2159 = vadd.f32 %v1980, %v2158
      %v2160 = vpop.f32.mrf.mxu0
      %2161 = vmatprep.mubr.f32.mxu0 0.0
      %v2162 = vand.u32 %v1592, 4294901760
      %v2163 = vsub.f32 %v1592, %v2162
      %2164 = vmatmul.mubr.f32.gmra.mxu0 %v2163
      %v2165 = vpop.f32.mrf.mxu0
      %v2166 = vadd.f32 %v1986, %v2165
      %v2167 = vpop.f32.mrf.mxu0
      %2168 = vmatprep.mubr.f32.mxu0 0.0
      %v2169 = vand.u32 %v1595, 4294901760
      %v2170 = vsub.f32 %v1595, %v2169
      %2171 = vmatmul.mubr.f32.gmra.mxu0 %v2170
      %v2172 = vpop.f32.mrf.mxu0
      %v2173 = vadd.f32 %v1992, %v2172
      %v2174 = vpop.f32.mrf.mxu0
      %2175 = vmatprep.mubr.f32.mxu0 0.0
      %v2176 = vand.u32 %v1598, 4294901760
      %v2177 = vsub.f32 %v1598, %v2176
      %2178 = vmatmul.mubr.f32.gmra.mxu0 %v2177
      %v2179 = vpop.f32.mrf.mxu0
      %v2180 = vadd.f32 %v1998, %v2179
      %v2181 = vpop.f32.mrf.mxu0
      %2182 = vmatprep.mubr.f32.mxu0 0.0
      %v2183 = vand.u32 %v1601, 4294901760
      %v2184 = vsub.f32 %v1601, %v2183
      %2185 = vmatmul.mubr.f32.gmra.mxu0 %v2184
      %v2186 = vpop.f32.mrf.mxu0
      %v2187 = vadd.f32 %v2004, %v2186
      %v2188 = vpop.f32.mrf.mxu0
      %2189 = vmatprep.mubr.f32.mxu0 0.0
      %v2190 = vand.u32 %v1604, 4294901760
      %v2191 = vsub.f32 %v1604, %v2190
      %2192 = vmatmul.mubr.f32.gmra.mxu0 %v2191
      %v2193 = vpop.f32.mrf.mxu0
      %v2194 = vadd.f32 %v2010, %v2193
      %v2195 = vpop.f32.mrf.mxu0
      %2196 = vmatprep.mubr.f32.mxu0 0.0
      %v2197 = vand.u32 %v1607, 4294901760
      %v2198 = vsub.f32 %v1607, %v2197
      %2199 = vmatmul.mubr.f32.gmra.mxu0 %v2198
      %v2200 = vpop.f32.mrf.mxu0
      %v2201 = vadd.f32 %v2016, %v2200
      %v2202 = vpop.f32.mrf.mxu0
      %2203 = vmatprep.mubr.f32.mxu0 0.0
      %v2204 = vand.u32 %v1610, 4294901760
      %v2205 = vsub.f32 %v1610, %v2204
      %2206 = vmatmul.mubr.f32.gmra.mxu0 %v2205
      %v2207 = vpop.f32.mrf.mxu0
      %v2208 = vadd.f32 %v2022, %v2207
      %v2209 = vpop.f32.mrf.mxu0
      %2210 = vmatprep.mubr.f32.mxu0 0.0
      %v2211 = vand.u32 %v1613, 4294901760
      %v2212 = vsub.f32 %v1613, %v2211
      %2213 = vmatmul.mubr.f32.gmra.mxu0 %v2212
      %v2214 = vpop.f32.mrf.mxu0
      %v2215 = vadd.f32 %v2028, %v2214
      %v2216 = vpop.f32.mrf.mxu0
      %2217 = vmatprep.mubr.f32.mxu0 0.0
      %v2218 = vand.u32 %v1616, 4294901760
      %v2219 = vsub.f32 %v1616, %v2218
      %2220 = vmatmul.mubr.f32.gmra.mxu0 %v2219
      %v2221 = vpop.f32.mrf.mxu0
      %v2222 = vadd.f32 %v2034, %v2221
      %v2223 = vpop.f32.mrf.mxu0
      %2224 = vmatprep.mubr.f32.mxu0 0.0
      %v2225 = vand.u32 %v1619, 4294901760
      %v2226 = vsub.f32 %v1619, %v2225
      %2227 = vmatmul.mubr.f32.gmra.mxu0 %v2226
      %v2228 = vpop.f32.mrf.mxu0
      %v2229 = vadd.f32 %v2040, %v2228
      %v2230 = vpop.f32.mrf.mxu0
      %2231 = vmatprep.mubr.f32.mxu0 0.0
      %v2232 = vand.u32 %v1622, 4294901760
      %v2233 = vsub.f32 %v1622, %v2232
      %2234 = vmatmul.mubr.f32.gmra.mxu0 %v2233
      %v2235 = vpop.f32.mrf.mxu0
      %v2236 = vadd.f32 %v2046, %v2235
      %v2237 = vpop.f32.mrf.mxu0
      %2238 = vmatprep.mubr.f32.mxu0 0.0
      %v2239 = vand.u32 %v1625, 4294901760
      %v2240 = vsub.f32 %v1625, %v2239
      %2241 = vmatmul.mubr.f32.gmra.mxu0 %v2240
      %v2242 = vpop.f32.mrf.mxu0
      %v2243 = vadd.f32 %v2052, %v2242
      %v2244 = vpop.f32.mrf.mxu0
      %2245 = vmatprep.mubr.f32.mxu0 0.0
      %v2246 = vand.u32 %v1628, 4294901760
      %v2247 = vsub.f32 %v1628, %v2246
      %2248 = vmatmul.mubr.f32.gmra.mxu0 %v2247
      %v2249 = vpop.f32.mrf.mxu0
      %v2250 = vadd.f32 %v2058, %v2249
      %v2251 = vpop.f32.mrf.mxu0
      %2252 = vmatprep.mubr.f32.mxu0 0.0
      %v2253 = vand.u32 %v1631, 4294901760
      %v2254 = vsub.f32 %v1631, %v2253
      %2255 = vmatmul.mubr.f32.gmra.mxu0 %v2254
      %v2256 = vpop.f32.mrf.mxu0
      %v2257 = vadd.f32 %v2064, %v2256
      %v2258 = vpop.f32.mrf.mxu0
      %2259 = vdwg.mxu0
      %2260 = vmatprep.subr.mxu0 0.0
      %2261 = vmatpush1.msra.mxu0 0.0
      %2262 = vmatprep.subr.mxu0 0.0
      %2263 = vmatpush1.msra.mxu0 0.0
      %2264 = vmatprep.subr.mxu0 0.0
      %2265 = vmatpush1.msra.mxu0 0.0
      %2266 = vmatprep.subr.mxu0 0.0
      %2267 = vmatpush1.msra.mxu0 0.0
      %2268 = vmatprep.subr.mxu0 0.0
      %2269 = vmatpush1.msra.mxu0 0.0
      %2270 = vmatprep.subr.mxu0 0.0
      %2271 = vmatpush1.msra.mxu0 0.0
      %2272 = vmatprep.subr.mxu0 0.0
      %2273 = vmatpush1.msra.mxu0 0.0
      %2274 = vmatprep.subr.mxu0 0.0
      %2275 = vmatpush1.msra.mxu0 0.0
      %2276 = vmatprep.subr.mxu0 0.0
      %v2277 = vand.u32 %v345, 4294901760
      %2278 = vmatpush1.msra.mxu0 %v2277
      %2279 = vmatprep.subr.mxu0 0.0
      %v2280 = vand.u32 %v344, 4294901760
      %2281 = vmatpush1.msra.mxu0 %v2280
      %2282 = vmatprep.subr.mxu0 0.0
      %v2283 = vand.u32 %v343, 4294901760
      %2284 = vmatpush1.msra.mxu0 %v2283
      %2285 = vmatprep.subr.mxu0 0.0
      %v2286 = vand.u32 %v342, 4294901760
      %2287 = vmatpush1.msra.mxu0 %v2286
      %2288 = vmatprep.subr.mxu0 0.0
      %v2289 = vand.u32 %v341, 4294901760
      %2290 = vmatpush1.msra.mxu0 %v2289
      %2291 = vmatprep.subr.mxu0 0.0
      %v2292 = vand.u32 %v340, 4294901760
      %2293 = vmatpush1.msra.mxu0 %v2292
      %2294 = vmatprep.subr.mxu0 0.0
      %v2295 = vand.u32 %v339, 4294901760
      %2296 = vmatpush1.msra.mxu0 %v2295
      %2297 = vmatprep.subr.mxu0 0.0
      %v2298 = vand.u32 %v338, 4294901760
      %2299 = vmatpush1.msra.mxu0 %v2298
      %2300 = vmatprep.subr.mxu0 0.0
      %2301 = vmatpush2.msra.mxu0 0.0
      %2302 = vmatprep.subr.mxu0 0.0
      %2303 = vmatpush2.msra.mxu0 0.0
      %2304 = vmatprep.subr.mxu0 0.0
      %2305 = vmatpush2.msra.mxu0 0.0
      %2306 = vmatprep.subr.mxu0 0.0
      %2307 = vmatpush2.msra.mxu0 0.0
      %2308 = vmatprep.subr.mxu0 0.0
      %2309 = vmatpush2.msra.mxu0 0.0
      %2310 = vmatprep.subr.mxu0 0.0
      %2311 = vmatpush2.msra.mxu0 0.0
      %2312 = vmatprep.subr.mxu0 0.0
      %2313 = vmatpush2.msra.mxu0 0.0
      %2314 = vmatprep.subr.mxu0 0.0
      %2315 = vmatpush2.msra.mxu0 0.0
      %2316 = vmatprep.subr.mxu0 0.0
      %2317 = vmatpush2.msra.mxu0 0.0
      %2318 = vmatprep.subr.mxu0 0.0
      %2319 = vmatpush2.msra.mxu0 0.0
      %2320 = vmatprep.subr.mxu0 0.0
      %2321 = vmatpush2.msra.mxu0 0.0
      %2322 = vmatprep.subr.mxu0 0.0
      %2323 = vmatpush2.msra.mxu0 0.0
      %2324 = vmatprep.subr.mxu0 0.0
      %2325 = vmatpush2.msra.mxu0 0.0
      %2326 = vmatprep.subr.mxu0 0.0
      %2327 = vmatpush2.msra.mxu0 0.0
      %2328 = vmatprep.subr.mxu0 0.0
      %2329 = vmatpush2.msra.mxu0 0.0
      %2330 = vmatprep.subr.mxu0 0.0
      %2331 = vmatpush2.msra.mxu0 0.0
      %2332 = vmatprep.mubr.f32.mxu0 0.0
      %v2333 = vand.u32 %v1586, 4294901760
      %v2334 = vsub.f32 %v1586, %v2333
      %v2335 = vand.u32 %v2334, 4294901760
      %2336 = vmatmul.mubr.f32.gmra.mxu0 %v2335
      %v2337 = vpop.f32.mrf.mxu0
      %v2338 = vadd.f32 %v2152, %v2337
      %v2339 = vpop.f32.mrf.mxu0
      %2340 = vmatprep.mubr.f32.mxu0 0.0
      %v2341 = vand.u32 %v1589, 4294901760
      %v2342 = vsub.f32 %v1589, %v2341
      %v2343 = vand.u32 %v2342, 4294901760
      %2344 = vmatmul.mubr.f32.gmra.mxu0 %v2343
      %v2345 = vpop.f32.mrf.mxu0
      %v2346 = vadd.f32 %v2159, %v2345
      %v2347 = vpop.f32.mrf.mxu0
      %2348 = vmatprep.mubr.f32.mxu0 0.0
      %v2349 = vand.u32 %v1592, 4294901760
      %v2350 = vsub.f32 %v1592, %v2349
      %v2351 = vand.u32 %v2350, 4294901760
      %2352 = vmatmul.mubr.f32.gmra.mxu0 %v2351
      %v2353 = vpop.f32.mrf.mxu0
      %v2354 = vadd.f32 %v2166, %v2353
      %v2355 = vpop.f32.mrf.mxu0
      %2356 = vmatprep.mubr.f32.mxu0 0.0
      %v2357 = vand.u32 %v1595, 4294901760
      %v2358 = vsub.f32 %v1595, %v2357
      %v2359 = vand.u32 %v2358, 4294901760
      %2360 = vmatmul.mubr.f32.gmra.mxu0 %v2359
      %v2361 = vpop.f32.mrf.mxu0
      %v2362 = vadd.f32 %v2173, %v2361
      %v2363 = vpop.f32.mrf.mxu0
      %2364 = vmatprep.mubr.f32.mxu0 0.0
      %v2365 = vand.u32 %v1598, 4294901760
      %v2366 = vsub.f32 %v1598, %v2365
      %v2367 = vand.u32 %v2366, 4294901760
      %2368 = vmatmul.mubr.f32.gmra.mxu0 %v2367
      %v2369 = vpop.f32.mrf.mxu0
      %v2370 = vadd.f32 %v2180, %v2369
      %v2371 = vpop.f32.mrf.mxu0
      %2372 = vmatprep.mubr.f32.mxu0 0.0
      %v2373 = vand.u32 %v1601, 4294901760
      %v2374 = vsub.f32 %v1601, %v2373
      %v2375 = vand.u32 %v2374, 4294901760
      %2376 = vmatmul.mubr.f32.gmra.mxu0 %v2375
      %v2377 = vpop.f32.mrf.mxu0
      %v2378 = vadd.f32 %v2187, %v2377
      %v2379 = vpop.f32.mrf.mxu0
      %2380 = vmatprep.mubr.f32.mxu0 0.0
      %v2381 = vand.u32 %v1604, 4294901760
      %v2382 = vsub.f32 %v1604, %v2381
      %v2383 = vand.u32 %v2382, 4294901760
      %2384 = vmatmul.mubr.f32.gmra.mxu0 %v2383
      %v2385 = vpop.f32.mrf.mxu0
      %v2386 = vadd.f32 %v2194, %v2385
      %v2387 = vpop.f32.mrf.mxu0
      %2388 = vmatprep.mubr.f32.mxu0 0.0
      %v2389 = vand.u32 %v1607, 4294901760
      %v2390 = vsub.f32 %v1607, %v2389
      %v2391 = vand.u32 %v2390, 4294901760
      %2392 = vmatmul.mubr.f32.gmra.mxu0 %v2391
      %v2393 = vpop.f32.mrf.mxu0
      %v2394 = vadd.f32 %v2201, %v2393
      %v2395 = vpop.f32.mrf.mxu0
      %2396 = vmatprep.mubr.f32.mxu0 0.0
      %v2397 = vand.u32 %v1610, 4294901760
      %v2398 = vsub.f32 %v1610, %v2397
      %v2399 = vand.u32 %v2398, 4294901760
      %2400 = vmatmul.mubr.f32.gmra.mxu0 %v2399
      %v2401 = vpop.f32.mrf.mxu0
      %v2402 = vadd.f32 %v2208, %v2401
      %v2403 = vpop.f32.mrf.mxu0
      %2404 = vmatprep.mubr.f32.mxu0 0.0
      %v2405 = vand.u32 %v1613, 4294901760
      %v2406 = vsub.f32 %v1613, %v2405
      %v2407 = vand.u32 %v2406, 4294901760
      %2408 = vmatmul.mubr.f32.gmra.mxu0 %v2407
      %v2409 = vpop.f32.mrf.mxu0
      %v2410 = vadd.f32 %v2215, %v2409
      %v2411 = vpop.f32.mrf.mxu0
      %2412 = vmatprep.mubr.f32.mxu0 0.0
      %v2413 = vand.u32 %v1616, 4294901760
      %v2414 = vsub.f32 %v1616, %v2413
      %v2415 = vand.u32 %v2414, 4294901760
      %2416 = vmatmul.mubr.f32.gmra.mxu0 %v2415
      %v2417 = vpop.f32.mrf.mxu0
      %v2418 = vadd.f32 %v2222, %v2417
      %v2419 = vpop.f32.mrf.mxu0
      %2420 = vmatprep.mubr.f32.mxu0 0.0
      %v2421 = vand.u32 %v1619, 4294901760
      %v2422 = vsub.f32 %v1619, %v2421
      %v2423 = vand.u32 %v2422, 4294901760
      %2424 = vmatmul.mubr.f32.gmra.mxu0 %v2423
      %v2425 = vpop.f32.mrf.mxu0
      %v2426 = vadd.f32 %v2229, %v2425
      %v2427 = vpop.f32.mrf.mxu0
      %2428 = vmatprep.mubr.f32.mxu0 0.0
      %v2429 = vand.u32 %v1622, 4294901760
      %v2430 = vsub.f32 %v1622, %v2429
      %v2431 = vand.u32 %v2430, 4294901760
      %2432 = vmatmul.mubr.f32.gmra.mxu0 %v2431
      %v2433 = vpop.f32.mrf.mxu0
      %v2434 = vadd.f32 %v2236, %v2433
      %v2435 = vpop.f32.mrf.mxu0
      %2436 = vmatprep.mubr.f32.mxu0 0.0
      %v2437 = vand.u32 %v1625, 4294901760
      %v2438 = vsub.f32 %v1625, %v2437
      %v2439 = vand.u32 %v2438, 4294901760
      %2440 = vmatmul.mubr.f32.gmra.mxu0 %v2439
      %v2441 = vpop.f32.mrf.mxu0
      %v2442 = vadd.f32 %v2243, %v2441
      %v2443 = vpop.f32.mrf.mxu0
      %2444 = vmatprep.mubr.f32.mxu0 0.0
      %v2445 = vand.u32 %v1628, 4294901760
      %v2446 = vsub.f32 %v1628, %v2445
      %v2447 = vand.u32 %v2446, 4294901760
      %2448 = vmatmul.mubr.f32.gmra.mxu0 %v2447
      %v2449 = vpop.f32.mrf.mxu0
      %v2450 = vadd.f32 %v2250, %v2449
      %v2451 = vpop.f32.mrf.mxu0
      %2452 = vmatprep.mubr.f32.mxu0 0.0
      %v2453 = vand.u32 %v1631, 4294901760
      %v2454 = vsub.f32 %v1631, %v2453
      %v2455 = vand.u32 %v2454, 4294901760
      %2456 = vmatmul.mubr.f32.gmra.mxu0 %v2455
      %v2457 = vpop.f32.mrf.mxu0
      %v2458 = vadd.f32 %v2257, %v2457
      %v2459 = vpop.f32.mrf.mxu0
      %2460 = vdwg.mxu0
      %2461 = vmatprep.subr.mxu0 0.0
      %2462 = vmatpush1.msra.mxu0 0.0
      %2463 = vmatprep.subr.mxu0 0.0
      %2464 = vmatpush1.msra.mxu0 0.0
      %2465 = vmatprep.subr.mxu0 0.0
      %2466 = vmatpush1.msra.mxu0 0.0
      %2467 = vmatprep.subr.mxu0 0.0
      %2468 = vmatpush1.msra.mxu0 0.0
      %2469 = vmatprep.subr.mxu0 0.0
      %2470 = vmatpush1.msra.mxu0 0.0
      %2471 = vmatprep.subr.mxu0 0.0
      %2472 = vmatpush1.msra.mxu0 0.0
      %2473 = vmatprep.subr.mxu0 0.0
      %2474 = vmatpush1.msra.mxu0 0.0
      %2475 = vmatprep.subr.mxu0 0.0
      %2476 = vmatpush1.msra.mxu0 0.0
      %2477 = vmatprep.subr.mxu0 0.0
      %v2478 = vand.u32 %v345, 4294901760
      %v2479 = vsub.f32 %v345, %v2478
      %v2480 = vand.u32 %v2479, 4294901760
      %2481 = vmatpush1.msra.mxu0 %v2480
      %2482 = vmatprep.subr.mxu0 0.0
      %v2483 = vand.u32 %v344, 4294901760
      %v2484 = vsub.f32 %v344, %v2483
      %v2485 = vand.u32 %v2484, 4294901760
      %2486 = vmatpush1.msra.mxu0 %v2485
      %2487 = vmatprep.subr.mxu0 0.0
      %v2488 = vand.u32 %v343, 4294901760
      %v2489 = vsub.f32 %v343, %v2488
      %v2490 = vand.u32 %v2489, 4294901760
      %2491 = vmatpush1.msra.mxu0 %v2490
      %2492 = vmatprep.subr.mxu0 0.0
      %v2493 = vand.u32 %v342, 4294901760
      %v2494 = vsub.f32 %v342, %v2493
      %v2495 = vand.u32 %v2494, 4294901760
      %2496 = vmatpush1.msra.mxu0 %v2495
      %2497 = vmatprep.subr.mxu0 0.0
      %v2498 = vand.u32 %v341, 4294901760
      %v2499 = vsub.f32 %v341, %v2498
      %v2500 = vand.u32 %v2499, 4294901760
      %2501 = vmatpush1.msra.mxu0 %v2500
      %2502 = vmatprep.subr.mxu0 0.0
      %v2503 = vand.u32 %v340, 4294901760
      %v2504 = vsub.f32 %v340, %v2503
      %v2505 = vand.u32 %v2504, 4294901760
      %2506 = vmatpush1.msra.mxu0 %v2505
      %2507 = vmatprep.subr.mxu0 0.0
      %v2508 = vand.u32 %v339, 4294901760
      %v2509 = vsub.f32 %v339, %v2508
      %v2510 = vand.u32 %v2509, 4294901760
      %2511 = vmatpush1.msra.mxu0 %v2510
      %2512 = vmatprep.subr.mxu0 0.0
      %v2513 = vand.u32 %v338, 4294901760
      %v2514 = vsub.f32 %v338, %v2513
      %v2515 = vand.u32 %v2514, 4294901760
      %2516 = vmatpush1.msra.mxu0 %v2515
      %2517 = vmatprep.subr.mxu0 0.0
      %2518 = vmatpush2.msra.mxu0 0.0
      %2519 = vmatprep.subr.mxu0 0.0
      %2520 = vmatpush2.msra.mxu0 0.0
      %2521 = vmatprep.subr.mxu0 0.0
      %2522 = vmatpush2.msra.mxu0 0.0
      %2523 = vmatprep.subr.mxu0 0.0
      %2524 = vmatpush2.msra.mxu0 0.0
      %2525 = vmatprep.subr.mxu0 0.0
      %2526 = vmatpush2.msra.mxu0 0.0
      %2527 = vmatprep.subr.mxu0 0.0
      %2528 = vmatpush2.msra.mxu0 0.0
      %2529 = vmatprep.subr.mxu0 0.0
      %2530 = vmatpush2.msra.mxu0 0.0
      %2531 = vmatprep.subr.mxu0 0.0
      %2532 = vmatpush2.msra.mxu0 0.0
      %2533 = vmatprep.subr.mxu0 0.0
      %2534 = vmatpush2.msra.mxu0 0.0
      %2535 = vmatprep.subr.mxu0 0.0
      %2536 = vmatpush2.msra.mxu0 0.0
      %2537 = vmatprep.subr.mxu0 0.0
      %2538 = vmatpush2.msra.mxu0 0.0
      %2539 = vmatprep.subr.mxu0 0.0
      %2540 = vmatpush2.msra.mxu0 0.0
      %2541 = vmatprep.subr.mxu0 0.0
      %2542 = vmatpush2.msra.mxu0 0.0
      %2543 = vmatprep.subr.mxu0 0.0
      %2544 = vmatpush2.msra.mxu0 0.0
      %2545 = vmatprep.subr.mxu0 0.0
      %2546 = vmatpush2.msra.mxu0 0.0
      %2547 = vmatprep.subr.mxu0 0.0
      %2548 = vmatpush2.msra.mxu0 0.0
      %2549 = vmatprep.mubr.f32.mxu0 0.0
      %v2550 = vand.u32 %v1586, 4294901760
      %2551 = vmatmul.mubr.f32.gmra.mxu0 %v2550
      %v2552 = vpop.f32.mrf.mxu0
      %v2553 = vadd.f32 %v2338, %v2552
      %v2554 = vpop.f32.mrf.mxu0
      %2555 = vmatprep.mubr.f32.mxu0 0.0
      %v2556 = vand.u32 %v1589, 4294901760
      %2557 = vmatmul.mubr.f32.gmra.mxu0 %v2556
      %v2558 = vpop.f32.mrf.mxu0
      %v2559 = vadd.f32 %v2346, %v2558
      %v2560 = vpop.f32.mrf.mxu0
      %2561 = vmatprep.mubr.f32.mxu0 0.0
      %v2562 = vand.u32 %v1592, 4294901760
      %2563 = vmatmul.mubr.f32.gmra.mxu0 %v2562
      %v2564 = vpop.f32.mrf.mxu0
      %v2565 = vadd.f32 %v2354, %v2564
      %v2566 = vpop.f32.mrf.mxu0
      %2567 = vmatprep.mubr.f32.mxu0 0.0
      %v2568 = vand.u32 %v1595, 4294901760
      %2569 = vmatmul.mubr.f32.gmra.mxu0 %v2568
      %v2570 = vpop.f32.mrf.mxu0
      %v2571 = vadd.f32 %v2362, %v2570
      %v2572 = vpop.f32.mrf.mxu0
      %2573 = vmatprep.mubr.f32.mxu0 0.0
      %v2574 = vand.u32 %v1598, 4294901760
      %2575 = vmatmul.mubr.f32.gmra.mxu0 %v2574
      %v2576 = vpop.f32.mrf.mxu0
      %v2577 = vadd.f32 %v2370, %v2576
      %v2578 = vpop.f32.mrf.mxu0
      %2579 = vmatprep.mubr.f32.mxu0 0.0
      %v2580 = vand.u32 %v1601, 4294901760
      %2581 = vmatmul.mubr.f32.gmra.mxu0 %v2580
      %v2582 = vpop.f32.mrf.mxu0
      %v2583 = vadd.f32 %v2378, %v2582
      %v2584 = vpop.f32.mrf.mxu0
      %2585 = vmatprep.mubr.f32.mxu0 0.0
      %v2586 = vand.u32 %v1604, 4294901760
      %2587 = vmatmul.mubr.f32.gmra.mxu0 %v2586
      %v2588 = vpop.f32.mrf.mxu0
      %v2589 = vadd.f32 %v2386, %v2588
      %v2590 = vpop.f32.mrf.mxu0
      %2591 = vmatprep.mubr.f32.mxu0 0.0
      %v2592 = vand.u32 %v1607, 4294901760
      %2593 = vmatmul.mubr.f32.gmra.mxu0 %v2592
      %v2594 = vpop.f32.mrf.mxu0
      %v2595 = vadd.f32 %v2394, %v2594
      %v2596 = vpop.f32.mrf.mxu0
      %2597 = vmatprep.mubr.f32.mxu0 0.0
      %v2598 = vand.u32 %v1610, 4294901760
      %2599 = vmatmul.mubr.f32.gmra.mxu0 %v2598
      %v2600 = vpop.f32.mrf.mxu0
      %v2601 = vadd.f32 %v2402, %v2600
      %v2602 = vpop.f32.mrf.mxu0
      %2603 = vmatprep.mubr.f32.mxu0 0.0
      %v2604 = vand.u32 %v1613, 4294901760
      %2605 = vmatmul.mubr.f32.gmra.mxu0 %v2604
      %v2606 = vpop.f32.mrf.mxu0
      %v2607 = vadd.f32 %v2410, %v2606
      %v2608 = vpop.f32.mrf.mxu0
      %2609 = vmatprep.mubr.f32.mxu0 0.0
      %v2610 = vand.u32 %v1616, 4294901760
      %2611 = vmatmul.mubr.f32.gmra.mxu0 %v2610
      %v2612 = vpop.f32.mrf.mxu0
      %v2613 = vadd.f32 %v2418, %v2612
      %v2614 = vpop.f32.mrf.mxu0
      %2615 = vmatprep.mubr.f32.mxu0 0.0
      %v2616 = vand.u32 %v1619, 4294901760
      %2617 = vmatmul.mubr.f32.gmra.mxu0 %v2616
      %v2618 = vpop.f32.mrf.mxu0
      %v2619 = vadd.f32 %v2426, %v2618
      %v2620 = vpop.f32.mrf.mxu0
      %2621 = vmatprep.mubr.f32.mxu0 0.0
      %v2622 = vand.u32 %v1622, 4294901760
      %2623 = vmatmul.mubr.f32.gmra.mxu0 %v2622
      %v2624 = vpop.f32.mrf.mxu0
      %v2625 = vadd.f32 %v2434, %v2624
      %v2626 = vpop.f32.mrf.mxu0
      %2627 = vmatprep.mubr.f32.mxu0 0.0
      %v2628 = vand.u32 %v1625, 4294901760
      %2629 = vmatmul.mubr.f32.gmra.mxu0 %v2628
      %v2630 = vpop.f32.mrf.mxu0
      %v2631 = vadd.f32 %v2442, %v2630
      %v2632 = vpop.f32.mrf.mxu0
      %2633 = vmatprep.mubr.f32.mxu0 0.0
      %v2634 = vand.u32 %v1628, 4294901760
      %2635 = vmatmul.mubr.f32.gmra.mxu0 %v2634
      %v2636 = vpop.f32.mrf.mxu0
      %v2637 = vadd.f32 %v2450, %v2636
      %v2638 = vpop.f32.mrf.mxu0
      %2639 = vmatprep.mubr.f32.mxu0 0.0
      %v2640 = vand.u32 %v1631, 4294901760
      %2641 = vmatmul.mubr.f32.gmra.mxu0 %v2640
      %v2642 = vpop.f32.mrf.mxu0
      %v2643 = vadd.f32 %v2458, %v2642
      %v2644 = vpop.f32.mrf.mxu0
      %2645 = vdwg.mxu0
      %2646 = vmatprep.subr.mxu0 0.0
      %2647 = vmatpush1.msra.mxu0 0.0
      %2648 = vmatprep.subr.mxu0 0.0
      %2649 = vmatpush1.msra.mxu0 0.0
      %2650 = vmatprep.subr.mxu0 0.0
      %2651 = vmatpush1.msra.mxu0 0.0
      %2652 = vmatprep.subr.mxu0 0.0
      %2653 = vmatpush1.msra.mxu0 0.0
      %2654 = vmatprep.subr.mxu0 0.0
      %2655 = vmatpush1.msra.mxu0 0.0
      %2656 = vmatprep.subr.mxu0 0.0
      %2657 = vmatpush1.msra.mxu0 0.0
      %2658 = vmatprep.subr.mxu0 0.0
      %2659 = vmatpush1.msra.mxu0 0.0
      %2660 = vmatprep.subr.mxu0 0.0
      %2661 = vmatpush1.msra.mxu0 0.0
      %2662 = vmatprep.subr.mxu0 0.0
      %v2663 = vand.u32 %v345, 4294901760
      %2664 = vmatpush1.msra.mxu0 %v2663
      %2665 = vmatprep.subr.mxu0 0.0
      %v2666 = vand.u32 %v344, 4294901760
      %2667 = vmatpush1.msra.mxu0 %v2666
      %2668 = vmatprep.subr.mxu0 0.0
      %v2669 = vand.u32 %v343, 4294901760
      %2670 = vmatpush1.msra.mxu0 %v2669
      %2671 = vmatprep.subr.mxu0 0.0
      %v2672 = vand.u32 %v342, 4294901760
      %2673 = vmatpush1.msra.mxu0 %v2672
      %2674 = vmatprep.subr.mxu0 0.0
      %v2675 = vand.u32 %v341, 4294901760
      %2676 = vmatpush1.msra.mxu0 %v2675
      %2677 = vmatprep.subr.mxu0 0.0
      %v2678 = vand.u32 %v340, 4294901760
      %2679 = vmatpush1.msra.mxu0 %v2678
      %2680 = vmatprep.subr.mxu0 0.0
      %v2681 = vand.u32 %v339, 4294901760
      %2682 = vmatpush1.msra.mxu0 %v2681
      %2683 = vmatprep.subr.mxu0 0.0
      %v2684 = vand.u32 %v338, 4294901760
      %2685 = vmatpush1.msra.mxu0 %v2684
      %2686 = vmatprep.subr.mxu0 0.0
      %2687 = vmatpush2.msra.mxu0 0.0
      %2688 = vmatprep.subr.mxu0 0.0
      %2689 = vmatpush2.msra.mxu0 0.0
      %2690 = vmatprep.subr.mxu0 0.0
      %2691 = vmatpush2.msra.mxu0 0.0
      %2692 = vmatprep.subr.mxu0 0.0
      %2693 = vmatpush2.msra.mxu0 0.0
      %2694 = vmatprep.subr.mxu0 0.0
      %2695 = vmatpush2.msra.mxu0 0.0
      %2696 = vmatprep.subr.mxu0 0.0
      %2697 = vmatpush2.msra.mxu0 0.0
      %2698 = vmatprep.subr.mxu0 0.0
      %2699 = vmatpush2.msra.mxu0 0.0
      %2700 = vmatprep.subr.mxu0 0.0
      %2701 = vmatpush2.msra.mxu0 0.0
      %2702 = vmatprep.subr.mxu0 0.0
      %2703 = vmatpush2.msra.mxu0 0.0
      %2704 = vmatprep.subr.mxu0 0.0
      %2705 = vmatpush2.msra.mxu0 0.0
      %2706 = vmatprep.subr.mxu0 0.0
      %2707 = vmatpush2.msra.mxu0 0.0
      %2708 = vmatprep.subr.mxu0 0.0
      %2709 = vmatpush2.msra.mxu0 0.0
      %2710 = vmatprep.subr.mxu0 0.0
      %2711 = vmatpush2.msra.mxu0 0.0
      %2712 = vmatprep.subr.mxu0 0.0
      %2713 = vmatpush2.msra.mxu0 0.0
      %2714 = vmatprep.subr.mxu0 0.0
      %2715 = vmatpush2.msra.mxu0 0.0
      %2716 = vmatprep.subr.mxu0 0.0
      %2717 = vmatpush2.msra.mxu0 0.0
      %2718 = vmatprep.mubr.f32.mxu0 0.0
      %v2719 = vand.u32 %v1586, 4294901760
      %2720 = vmatmul.mubr.f32.gmra.mxu0 %v2719
      %v2721 = vpop.f32.mrf.mxu0
      %v2722 = vadd.f32 %v2553, %v2721
      %v2723 = vpop.f32.mrf.mxu0
      %2724 = vmatprep.mubr.f32.mxu0 0.0
      %v2725 = vand.u32 %v1589, 4294901760
      %2726 = vmatmul.mubr.f32.gmra.mxu0 %v2725
      %v2727 = vpop.f32.mrf.mxu0
      %v2728 = vadd.f32 %v2559, %v2727
      %v2729 = vpop.f32.mrf.mxu0
      %2730 = vmatprep.mubr.f32.mxu0 0.0
      %v2731 = vand.u32 %v1592, 4294901760
      %2732 = vmatmul.mubr.f32.gmra.mxu0 %v2731
      %v2733 = vpop.f32.mrf.mxu0
      %v2734 = vadd.f32 %v2565, %v2733
      %v2735 = vpop.f32.mrf.mxu0
      %2736 = vmatprep.mubr.f32.mxu0 0.0
      %v2737 = vand.u32 %v1595, 4294901760
      %2738 = vmatmul.mubr.f32.gmra.mxu0 %v2737
      %v2739 = vpop.f32.mrf.mxu0
      %v2740 = vadd.f32 %v2571, %v2739
      %v2741 = vpop.f32.mrf.mxu0
      %2742 = vmatprep.mubr.f32.mxu0 0.0
      %v2743 = vand.u32 %v1598, 4294901760
      %2744 = vmatmul.mubr.f32.gmra.mxu0 %v2743
      %v2745 = vpop.f32.mrf.mxu0
      %v2746 = vadd.f32 %v2577, %v2745
      %v2747 = vpop.f32.mrf.mxu0
      %2748 = vmatprep.mubr.f32.mxu0 0.0
      %v2749 = vand.u32 %v1601, 4294901760
      %2750 = vmatmul.mubr.f32.gmra.mxu0 %v2749
      %v2751 = vpop.f32.mrf.mxu0
      %v2752 = vadd.f32 %v2583, %v2751
      %v2753 = vpop.f32.mrf.mxu0
      %2754 = vmatprep.mubr.f32.mxu0 0.0
      %v2755 = vand.u32 %v1604, 4294901760
      %2756 = vmatmul.mubr.f32.gmra.mxu0 %v2755
      %v2757 = vpop.f32.mrf.mxu0
      %v2758 = vadd.f32 %v2589, %v2757
      %v2759 = vpop.f32.mrf.mxu0
      %2760 = vmatprep.mubr.f32.mxu0 0.0
      %v2761 = vand.u32 %v1607, 4294901760
      %2762 = vmatmul.mubr.f32.gmra.mxu0 %v2761
      %v2763 = vpop.f32.mrf.mxu0
      %v2764 = vadd.f32 %v2595, %v2763
      %v2765 = vpop.f32.mrf.mxu0
      %2766 = vmatprep.mubr.f32.mxu0 0.0
      %v2767 = vand.u32 %v1610, 4294901760
      %2768 = vmatmul.mubr.f32.gmra.mxu0 %v2767
      %v2769 = vpop.f32.mrf.mxu0
      %v2770 = vadd.f32 %v2601, %v2769
      %v2771 = vpop.f32.mrf.mxu0
      %2772 = vmatprep.mubr.f32.mxu0 0.0
      %v2773 = vand.u32 %v1613, 4294901760
      %2774 = vmatmul.mubr.f32.gmra.mxu0 %v2773
      %v2775 = vpop.f32.mrf.mxu0
      %v2776 = vadd.f32 %v2607, %v2775
      %v2777 = vpop.f32.mrf.mxu0
      %2778 = vmatprep.mubr.f32.mxu0 0.0
      %v2779 = vand.u32 %v1616, 4294901760
      %2780 = vmatmul.mubr.f32.gmra.mxu0 %v2779
      %v2781 = vpop.f32.mrf.mxu0
      %v2782 = vadd.f32 %v2613, %v2781
      %v2783 = vpop.f32.mrf.mxu0
      %2784 = vmatprep.mubr.f32.mxu0 0.0
      %v2785 = vand.u32 %v1619, 4294901760
      %2786 = vmatmul.mubr.f32.gmra.mxu0 %v2785
      %v2787 = vpop.f32.mrf.mxu0
      %v2788 = vadd.f32 %v2619, %v2787
      %v2789 = vpop.f32.mrf.mxu0
      %2790 = vmatprep.mubr.f32.mxu0 0.0
      %v2791 = vand.u32 %v1622, 4294901760
      %2792 = vmatmul.mubr.f32.gmra.mxu0 %v2791
      %v2793 = vpop.f32.mrf.mxu0
      %v2794 = vadd.f32 %v2625, %v2793
      %v2795 = vpop.f32.mrf.mxu0
      %2796 = vmatprep.mubr.f32.mxu0 0.0
      %v2797 = vand.u32 %v1625, 4294901760
      %2798 = vmatmul.mubr.f32.gmra.mxu0 %v2797
      %v2799 = vpop.f32.mrf.mxu0
      %v2800 = vadd.f32 %v2631, %v2799
      %v2801 = vpop.f32.mrf.mxu0
      %2802 = vmatprep.mubr.f32.mxu0 0.0
      %v2803 = vand.u32 %v1628, 4294901760
      %2804 = vmatmul.mubr.f32.gmra.mxu0 %v2803
      %v2805 = vpop.f32.mrf.mxu0
      %v2806 = vadd.f32 %v2637, %v2805
      %v2807 = vpop.f32.mrf.mxu0
      %2808 = vmatprep.mubr.f32.mxu0 0.0
      %v2809 = vand.u32 %v1631, 4294901760
      %2810 = vmatmul.mubr.f32.gmra.mxu0 %v2809
      %v2811 = vpop.f32.mrf.mxu0
      %v2812 = vadd.f32 %v2643, %v2811
      %v2813 = vpop.f32.mrf.mxu0
      %2814 = vdwg.mxu0
      %v2815 = vld [vmem:[%s4] sm:$0x1]
      %v2817 = vlaneseq
      %v2818 = vshrl.u32 %v2817, 7
      %v2819 = vsub.s32 0, %v2818
      %v2820 = vrot.slane %v2815, %v2819
      %v2822 = vadd.f32 %v2722, %v2820
      %v2823 = vadd.f32 %v2728, %v2820
      %v2824 = vadd.f32 %v2734, %v2820
      %v2825 = vadd.f32 %v2740, %v2820
      %v2826 = vadd.f32 %v2746, %v2820
      %v2827 = vadd.f32 %v2752, %v2820
      %v2828 = vadd.f32 %v2758, %v2820
      %v2829 = vadd.f32 %v2764, %v2820
      %v2830 = vadd.f32 %v2770, %v2820
      %v2831 = vadd.f32 %v2776, %v2820
      %v2832 = vadd.f32 %v2782, %v2820
      %v2833 = vadd.f32 %v2788, %v2820
      %v2834 = vadd.f32 %v2794, %v2820
      %v2835 = vadd.f32 %v2800, %v2820
      %v2836 = vadd.f32 %v2806, %v2820
      %v2837 = vadd.f32 %v2812, %v2820
      %v2838 = vld [vmem:[%s5] sm:$0xff]
      %v2839 = vld [vmem:[%s5 + $0x8] sm:$0xff]
      %v2840 = vld [vmem:[%s5 + $0x10] sm:$0xff]
      %v2841 = vld [vmem:[%s5 + $0x18] sm:$0xff]
      %v2842 = vld [vmem:[%s5 + $0x20] sm:$0xff]
      %v2843 = vld [vmem:[%s5 + $0x28] sm:$0xff]
      %v2844 = vld [vmem:[%s5 + $0x30] sm:$0xff]
      %v2845 = vld [vmem:[%s5 + $0x38] sm:$0xff]
      %v2846 = vld [vmem:[%s5 + $0x40] sm:$0xff]
      %v2847 = vld [vmem:[%s5 + $0x48] sm:$0xff]
      %v2848 = vld [vmem:[%s5 + $0x50] sm:$0xff]
      %v2849 = vld [vmem:[%s5 + $0x58] sm:$0xff]
      %v2850 = vld [vmem:[%s5 + $0x60] sm:$0xff]
      %v2851 = vld [vmem:[%s5 + $0x68] sm:$0xff]
      %v2852 = vld [vmem:[%s5 + $0x70] sm:$0xff]
      %v2853 = vld [vmem:[%s5 + $0x78] sm:$0xff]
      %v2854 = vld [vmem:[#allocation2] sm:$0x1]
      %v2856 = vlaneseq
      %v2857 = vshrl.u32 %v2856, 7
      %v2858 = vsub.s32 0, %v2857
      %v2859 = vrot.slane %v2854, %v2858
      %2860 = vset.pattern.permute.xlu0 0
      %2861 = vperm.xlu0 %2860, %v2859
      %v2862 = vpop.permute.xlu0 %2861
      %2864 = vmatprep.subr.mxu0 0.0
      %v2865 = vand.u32 %v2853, 4294901760
      %2866 = vmatpush1.msra.mxu0 %v2865
      %2867 = vmatprep.subr.mxu0 0.0
      %v2868 = vand.u32 %v2852, 4294901760
      %2869 = vmatpush1.msra.mxu0 %v2868
      %2870 = vmatprep.subr.mxu0 0.0
      %v2871 = vand.u32 %v2851, 4294901760
      %2872 = vmatpush1.msra.mxu0 %v2871
      %2873 = vmatprep.subr.mxu0 0.0
      %v2874 = vand.u32 %v2850, 4294901760
      %2875 = vmatpush1.msra.mxu0 %v2874
      %2876 = vmatprep.subr.mxu0 0.0
      %v2877 = vand.u32 %v2849, 4294901760
      %2878 = vmatpush1.msra.mxu0 %v2877
      %2879 = vmatprep.subr.mxu0 0.0
      %v2880 = vand.u32 %v2848, 4294901760
      %2881 = vmatpush1.msra.mxu0 %v2880
      %2882 = vmatprep.subr.mxu0 0.0
      %v2883 = vand.u32 %v2847, 4294901760
      %2884 = vmatpush1.msra.mxu0 %v2883
      %2885 = vmatprep.subr.mxu0 0.0
      %v2886 = vand.u32 %v2846, 4294901760
      %2887 = vmatpush1.msra.mxu0 %v2886
      %2888 = vmatprep.subr.mxu0 0.0
      %v2889 = vand.u32 %v2845, 4294901760
      %2890 = vmatpush1.msra.mxu0 %v2889
      %2891 = vmatprep.subr.mxu0 0.0
      %v2892 = vand.u32 %v2844, 4294901760
      %2893 = vmatpush1.msra.mxu0 %v2892
      %2894 = vmatprep.subr.mxu0 0.0
      %v2895 = vand.u32 %v2843, 4294901760
      %2896 = vmatpush1.msra.mxu0 %v2895
      %2897 = vmatprep.subr.mxu0 0.0
      %v2898 = vand.u32 %v2842, 4294901760
      %2899 = vmatpush1.msra.mxu0 %v2898
      %2900 = vmatprep.subr.mxu0 0.0
      %v2901 = vand.u32 %v2841, 4294901760
      %2902 = vmatpush1.msra.mxu0 %v2901
      %2903 = vmatprep.subr.mxu0 0.0
      %v2904 = vand.u32 %v2840, 4294901760
      %2905 = vmatpush1.msra.mxu0 %v2904
      %2906 = vmatprep.subr.mxu0 0.0
      %v2907 = vand.u32 %v2839, 4294901760
      %2908 = vmatpush1.msra.mxu0 %v2907
      %2909 = vmatprep.subr.mxu0 0.0
      %v2910 = vand.u32 %v2838, 4294901760
      %2911 = vmatpush1.msra.mxu0 %v2910
      %2912 = vmatprep.subr.mxu0 0.0
      %2913 = vmatpush2.msra.mxu0 0.0
      %2914 = vmatprep.subr.mxu0 0.0
      %2915 = vmatpush2.msra.mxu0 0.0
      %2916 = vmatprep.subr.mxu0 0.0
      %2917 = vmatpush2.msra.mxu0 0.0
      %2918 = vmatprep.subr.mxu0 0.0
      %2919 = vmatpush2.msra.mxu0 0.0
      %2920 = vmatprep.subr.mxu0 0.0
      %2921 = vmatpush2.msra.mxu0 0.0
      %2922 = vmatprep.subr.mxu0 0.0
      %2923 = vmatpush2.msra.mxu0 0.0
      %2924 = vmatprep.subr.mxu0 0.0
      %2925 = vmatpush2.msra.mxu0 0.0
      %2926 = vmatprep.subr.mxu0 0.0
      %2927 = vmatpush2.msra.mxu0 0.0
      %2928 = vmatprep.subr.mxu0 0.0
      %2929 = vmatpush2.msra.mxu0 0.0
      %2930 = vmatprep.subr.mxu0 0.0
      %2931 = vmatpush2.msra.mxu0 0.0
      %2932 = vmatprep.subr.mxu0 0.0
      %2933 = vmatpush2.msra.mxu0 0.0
      %2934 = vmatprep.subr.mxu0 0.0
      %2935 = vmatpush2.msra.mxu0 0.0
      %2936 = vmatprep.subr.mxu0 0.0
      %2937 = vmatpush2.msra.mxu0 0.0
      %2938 = vmatprep.subr.mxu0 0.0
      %2939 = vmatpush2.msra.mxu0 0.0
      %2940 = vmatprep.subr.mxu0 0.0
      %2941 = vmatpush2.msra.mxu0 0.0
      %2942 = vmatprep.subr.mxu0 0.0
      %2943 = vmatpush2.msra.mxu0 0.0
      %2944 = vmatprep.mubr.f32.mxu0 0.0
      %v2945 = vand.u32 %v2822, 4294901760
      %v2946 = vsub.f32 %v2822, %v2945
      %v2947 = vand.u32 %v2946, 4294901760
      %v2948 = vsub.f32 %v2946, %v2947
      %v2949 = vand.u32 %v2948, 4294901760
      %2950 = vmatmul.mubr.f32.gmra.mxu0 %v2949
      %v2951 = vpop.f32.mrf.mxu0
      %v2952 = vadd.f32 %v2862, %v2951
      %v2953 = vpop.f32.mrf.mxu0
      %2954 = vmatprep.mubr.f32.mxu0 0.0
      %v2955 = vand.u32 %v2823, 4294901760
      %v2956 = vsub.f32 %v2823, %v2955
      %v2957 = vand.u32 %v2956, 4294901760
      %v2958 = vsub.f32 %v2956, %v2957
      %v2959 = vand.u32 %v2958, 4294901760
      %2960 = vmatmul.mubr.f32.gmra.mxu0 %v2959
      %v2961 = vpop.f32.mrf.mxu0
      %v2962 = vadd.f32 %v2862, %v2961
      %v2963 = vpop.f32.mrf.mxu0
      %2964 = vmatprep.mubr.f32.mxu0 0.0
      %v2965 = vand.u32 %v2824, 4294901760
      %v2966 = vsub.f32 %v2824, %v2965
      %v2967 = vand.u32 %v2966, 4294901760
      %v2968 = vsub.f32 %v2966, %v2967
      %v2969 = vand.u32 %v2968, 4294901760
      %2970 = vmatmul.mubr.f32.gmra.mxu0 %v2969
      %v2971 = vpop.f32.mrf.mxu0
      %v2972 = vadd.f32 %v2862, %v2971
      %v2973 = vpop.f32.mrf.mxu0
      %2974 = vmatprep.mubr.f32.mxu0 0.0
      %v2975 = vand.u32 %v2825, 4294901760
      %v2976 = vsub.f32 %v2825, %v2975
      %v2977 = vand.u32 %v2976, 4294901760
      %v2978 = vsub.f32 %v2976, %v2977
      %v2979 = vand.u32 %v2978, 4294901760
      %2980 = vmatmul.mubr.f32.gmra.mxu0 %v2979
      %v2981 = vpop.f32.mrf.mxu0
      %v2982 = vadd.f32 %v2862, %v2981
      %v2983 = vpop.f32.mrf.mxu0
      %2984 = vmatprep.mubr.f32.mxu0 0.0
      %v2985 = vand.u32 %v2826, 4294901760
      %v2986 = vsub.f32 %v2826, %v2985
      %v2987 = vand.u32 %v2986, 4294901760
      %v2988 = vsub.f32 %v2986, %v2987
      %v2989 = vand.u32 %v2988, 4294901760
      %2990 = vmatmul.mubr.f32.gmra.mxu0 %v2989
      %v2991 = vpop.f32.mrf.mxu0
      %v2992 = vadd.f32 %v2862, %v2991
      %v2993 = vpop.f32.mrf.mxu0
      %2994 = vmatprep.mubr.f32.mxu0 0.0
      %v2995 = vand.u32 %v2827, 4294901760
      %v2996 = vsub.f32 %v2827, %v2995
      %v2997 = vand.u32 %v2996, 4294901760
      %v2998 = vsub.f32 %v2996, %v2997
      %v2999 = vand.u32 %v2998, 4294901760
      %3000 = vmatmul.mubr.f32.gmra.mxu0 %v2999
      %v3001 = vpop.f32.mrf.mxu0
      %v3002 = vadd.f32 %v2862, %v3001
      %v3003 = vpop.f32.mrf.mxu0
      %3004 = vmatprep.mubr.f32.mxu0 0.0
      %v3005 = vand.u32 %v2828, 4294901760
      %v3006 = vsub.f32 %v2828, %v3005
      %v3007 = vand.u32 %v3006, 4294901760
      %v3008 = vsub.f32 %v3006, %v3007
      %v3009 = vand.u32 %v3008, 4294901760
      %3010 = vmatmul.mubr.f32.gmra.mxu0 %v3009
      %v3011 = vpop.f32.mrf.mxu0
      %v3012 = vadd.f32 %v2862, %v3011
      %v3013 = vpop.f32.mrf.mxu0
      %3014 = vmatprep.mubr.f32.mxu0 0.0
      %v3015 = vand.u32 %v2829, 4294901760
      %v3016 = vsub.f32 %v2829, %v3015
      %v3017 = vand.u32 %v3016, 4294901760
      %v3018 = vsub.f32 %v3016, %v3017
      %v3019 = vand.u32 %v3018, 4294901760
      %3020 = vmatmul.mubr.f32.gmra.mxu0 %v3019
      %v3021 = vpop.f32.mrf.mxu0
      %v3022 = vadd.f32 %v2862, %v3021
      %v3023 = vpop.f32.mrf.mxu0
      %3024 = vmatprep.mubr.f32.mxu0 0.0
      %v3025 = vand.u32 %v2830, 4294901760
      %v3026 = vsub.f32 %v2830, %v3025
      %v3027 = vand.u32 %v3026, 4294901760
      %v3028 = vsub.f32 %v3026, %v3027
      %v3029 = vand.u32 %v3028, 4294901760
      %3030 = vmatmul.mubr.f32.gmra.mxu0 %v3029
      %v3031 = vpop.f32.mrf.mxu0
      %v3032 = vadd.f32 %v2862, %v3031
      %v3033 = vpop.f32.mrf.mxu0
      %3034 = vmatprep.mubr.f32.mxu0 0.0
      %v3035 = vand.u32 %v2831, 4294901760
      %v3036 = vsub.f32 %v2831, %v3035
      %v3037 = vand.u32 %v3036, 4294901760
      %v3038 = vsub.f32 %v3036, %v3037
      %v3039 = vand.u32 %v3038, 4294901760
      %3040 = vmatmul.mubr.f32.gmra.mxu0 %v3039
      %v3041 = vpop.f32.mrf.mxu0
      %v3042 = vadd.f32 %v2862, %v3041
      %v3043 = vpop.f32.mrf.mxu0
      %3044 = vmatprep.mubr.f32.mxu0 0.0
      %v3045 = vand.u32 %v2832, 4294901760
      %v3046 = vsub.f32 %v2832, %v3045
      %v3047 = vand.u32 %v3046, 4294901760
      %v3048 = vsub.f32 %v3046, %v3047
      %v3049 = vand.u32 %v3048, 4294901760
      %3050 = vmatmul.mubr.f32.gmra.mxu0 %v3049
      %v3051 = vpop.f32.mrf.mxu0
      %v3052 = vadd.f32 %v2862, %v3051
      %v3053 = vpop.f32.mrf.mxu0
      %3054 = vmatprep.mubr.f32.mxu0 0.0
      %v3055 = vand.u32 %v2833, 4294901760
      %v3056 = vsub.f32 %v2833, %v3055
      %v3057 = vand.u32 %v3056, 4294901760
      %v3058 = vsub.f32 %v3056, %v3057
      %v3059 = vand.u32 %v3058, 4294901760
      %3060 = vmatmul.mubr.f32.gmra.mxu0 %v3059
      %v3061 = vpop.f32.mrf.mxu0
      %v3062 = vadd.f32 %v2862, %v3061
      %v3063 = vpop.f32.mrf.mxu0
      %3064 = vmatprep.mubr.f32.mxu0 0.0
      %v3065 = vand.u32 %v2834, 4294901760
      %v3066 = vsub.f32 %v2834, %v3065
      %v3067 = vand.u32 %v3066, 4294901760
      %v3068 = vsub.f32 %v3066, %v3067
      %v3069 = vand.u32 %v3068, 4294901760
      %3070 = vmatmul.mubr.f32.gmra.mxu0 %v3069
      %v3071 = vpop.f32.mrf.mxu0
      %v3072 = vadd.f32 %v2862, %v3071
      %v3073 = vpop.f32.mrf.mxu0
      %3074 = vmatprep.mubr.f32.mxu0 0.0
      %v3075 = vand.u32 %v2835, 4294901760
      %v3076 = vsub.f32 %v2835, %v3075
      %v3077 = vand.u32 %v3076, 4294901760
      %v3078 = vsub.f32 %v3076, %v3077
      %v3079 = vand.u32 %v3078, 4294901760
      %3080 = vmatmul.mubr.f32.gmra.mxu0 %v3079
      %v3081 = vpop.f32.mrf.mxu0
      %v3082 = vadd.f32 %v2862, %v3081
      %v3083 = vpop.f32.mrf.mxu0
      %3084 = vmatprep.mubr.f32.mxu0 0.0
      %v3085 = vand.u32 %v2836, 4294901760
      %v3086 = vsub.f32 %v2836, %v3085
      %v3087 = vand.u32 %v3086, 4294901760
      %v3088 = vsub.f32 %v3086, %v3087
      %v3089 = vand.u32 %v3088, 4294901760
      %3090 = vmatmul.mubr.f32.gmra.mxu0 %v3089
      %v3091 = vpop.f32.mrf.mxu0
      %v3092 = vadd.f32 %v2862, %v3091
      %v3093 = vpop.f32.mrf.mxu0
      %3094 = vmatprep.mubr.f32.mxu0 0.0
      %v3095 = vand.u32 %v2837, 4294901760
      %v3096 = vsub.f32 %v2837, %v3095
      %v3097 = vand.u32 %v3096, 4294901760
      %v3098 = vsub.f32 %v3096, %v3097
      %v3099 = vand.u32 %v3098, 4294901760
      %3100 = vmatmul.mubr.f32.gmra.mxu0 %v3099
      %v3101 = vpop.f32.mrf.mxu0
      %v3102 = vadd.f32 %v2862, %v3101
      %v3103 = vpop.f32.mrf.mxu0
      %3104 = vdwg.mxu0
      %3105 = vmatprep.subr.mxu0 0.0
      %v3106 = vand.u32 %v2853, 4294901760
      %v3107 = vsub.f32 %v2853, %v3106
      %v3108 = vand.u32 %v3107, 4294901760
      %v3109 = vsub.f32 %v3107, %v3108
      %v3110 = vand.u32 %v3109, 4294901760
      %3111 = vmatpush1.msra.mxu0 %v3110
      %3112 = vmatprep.subr.mxu0 0.0
      %v3113 = vand.u32 %v2852, 4294901760
      %v3114 = vsub.f32 %v2852, %v3113
      %v3115 = vand.u32 %v3114, 4294901760
      %v3116 = vsub.f32 %v3114, %v3115
      %v3117 = vand.u32 %v3116, 4294901760
      %3118 = vmatpush1.msra.mxu0 %v3117
      %3119 = vmatprep.subr.mxu0 0.0
      %v3120 = vand.u32 %v2851, 4294901760
      %v3121 = vsub.f32 %v2851, %v3120
      %v3122 = vand.u32 %v3121, 4294901760
      %v3123 = vsub.f32 %v3121, %v3122
      %v3124 = vand.u32 %v3123, 4294901760
      %3125 = vmatpush1.msra.mxu0 %v3124
      %3126 = vmatprep.subr.mxu0 0.0
      %v3127 = vand.u32 %v2850, 4294901760
      %v3128 = vsub.f32 %v2850, %v3127
      %v3129 = vand.u32 %v3128, 4294901760
      %v3130 = vsub.f32 %v3128, %v3129
      %v3131 = vand.u32 %v3130, 4294901760
      %3132 = vmatpush1.msra.mxu0 %v3131
      %3133 = vmatprep.subr.mxu0 0.0
      %v3134 = vand.u32 %v2849, 4294901760
      %v3135 = vsub.f32 %v2849, %v3134
      %v3136 = vand.u32 %v3135, 4294901760
      %v3137 = vsub.f32 %v3135, %v3136
      %v3138 = vand.u32 %v3137, 4294901760
      %3139 = vmatpush1.msra.mxu0 %v3138
      %3140 = vmatprep.subr.mxu0 0.0
      %v3141 = vand.u32 %v2848, 4294901760
      %v3142 = vsub.f32 %v2848, %v3141
      %v3143 = vand.u32 %v3142, 4294901760
      %v3144 = vsub.f32 %v3142, %v3143
      %v3145 = vand.u32 %v3144, 4294901760
      %3146 = vmatpush1.msra.mxu0 %v3145
      %3147 = vmatprep.subr.mxu0 0.0
      %v3148 = vand.u32 %v2847, 4294901760
      %v3149 = vsub.f32 %v2847, %v3148
      %v3150 = vand.u32 %v3149, 4294901760
      %v3151 = vsub.f32 %v3149, %v3150
      %v3152 = vand.u32 %v3151, 4294901760
      %3153 = vmatpush1.msra.mxu0 %v3152
      %3154 = vmatprep.subr.mxu0 0.0
      %v3155 = vand.u32 %v2846, 4294901760
      %v3156 = vsub.f32 %v2846, %v3155
      %v3157 = vand.u32 %v3156, 4294901760
      %v3158 = vsub.f32 %v3156, %v3157
      %v3159 = vand.u32 %v3158, 4294901760
      %3160 = vmatpush1.msra.mxu0 %v3159
      %3161 = vmatprep.subr.mxu0 0.0
      %v3162 = vand.u32 %v2845, 4294901760
      %v3163 = vsub.f32 %v2845, %v3162
      %v3164 = vand.u32 %v3163, 4294901760
      %v3165 = vsub.f32 %v3163, %v3164
      %v3166 = vand.u32 %v3165, 4294901760
      %3167 = vmatpush1.msra.mxu0 %v3166
      %3168 = vmatprep.subr.mxu0 0.0
      %v3169 = vand.u32 %v2844, 4294901760
      %v3170 = vsub.f32 %v2844, %v3169
      %v3171 = vand.u32 %v3170, 4294901760
      %v3172 = vsub.f32 %v3170, %v3171
      %v3173 = vand.u32 %v3172, 4294901760
      %3174 = vmatpush1.msra.mxu0 %v3173
      %3175 = vmatprep.subr.mxu0 0.0
      %v3176 = vand.u32 %v2843, 4294901760
      %v3177 = vsub.f32 %v2843, %v3176
      %v3178 = vand.u32 %v3177, 4294901760
      %v3179 = vsub.f32 %v3177, %v3178
      %v3180 = vand.u32 %v3179, 4294901760
      %3181 = vmatpush1.msra.mxu0 %v3180
      %3182 = vmatprep.subr.mxu0 0.0
      %v3183 = vand.u32 %v2842, 4294901760
      %v3184 = vsub.f32 %v2842, %v3183
      %v3185 = vand.u32 %v3184, 4294901760
      %v3186 = vsub.f32 %v3184, %v3185
      %v3187 = vand.u32 %v3186, 4294901760
      %3188 = vmatpush1.msra.mxu0 %v3187
      %3189 = vmatprep.subr.mxu0 0.0
      %v3190 = vand.u32 %v2841, 4294901760
      %v3191 = vsub.f32 %v2841, %v3190
      %v3192 = vand.u32 %v3191, 4294901760
      %v3193 = vsub.f32 %v3191, %v3192
      %v3194 = vand.u32 %v3193, 4294901760
      %3195 = vmatpush1.msra.mxu0 %v3194
      %3196 = vmatprep.subr.mxu0 0.0
      %v3197 = vand.u32 %v2840, 4294901760
      %v3198 = vsub.f32 %v2840, %v3197
      %v3199 = vand.u32 %v3198, 4294901760
      %v3200 = vsub.f32 %v3198, %v3199
      %v3201 = vand.u32 %v3200, 4294901760
      %3202 = vmatpush1.msra.mxu0 %v3201
      %3203 = vmatprep.subr.mxu0 0.0
      %v3204 = vand.u32 %v2839, 4294901760
      %v3205 = vsub.f32 %v2839, %v3204
      %v3206 = vand.u32 %v3205, 4294901760
      %v3207 = vsub.f32 %v3205, %v3206
      %v3208 = vand.u32 %v3207, 4294901760
      %3209 = vmatpush1.msra.mxu0 %v3208
      %3210 = vmatprep.subr.mxu0 0.0
      %v3211 = vand.u32 %v2838, 4294901760
      %v3212 = vsub.f32 %v2838, %v3211
      %v3213 = vand.u32 %v3212, 4294901760
      %v3214 = vsub.f32 %v3212, %v3213
      %v3215 = vand.u32 %v3214, 4294901760
      %3216 = vmatpush1.msra.mxu0 %v3215
      %3217 = vmatprep.subr.mxu0 0.0
      %3218 = vmatpush2.msra.mxu0 0.0
      %3219 = vmatprep.subr.mxu0 0.0
      %3220 = vmatpush2.msra.mxu0 0.0
      %3221 = vmatprep.subr.mxu0 0.0
      %3222 = vmatpush2.msra.mxu0 0.0
      %3223 = vmatprep.subr.mxu0 0.0
      %3224 = vmatpush2.msra.mxu0 0.0
      %3225 = vmatprep.subr.mxu0 0.0
      %3226 = vmatpush2.msra.mxu0 0.0
      %3227 = vmatprep.subr.mxu0 0.0
      %3228 = vmatpush2.msra.mxu0 0.0
      %3229 = vmatprep.subr.mxu0 0.0
      %3230 = vmatpush2.msra.mxu0 0.0
      %3231 = vmatprep.subr.mxu0 0.0
      %3232 = vmatpush2.msra.mxu0 0.0
      %3233 = vmatprep.subr.mxu0 0.0
      %3234 = vmatpush2.msra.mxu0 0.0
      %3235 = vmatprep.subr.mxu0 0.0
      %3236 = vmatpush2.msra.mxu0 0.0
      %3237 = vmatprep.subr.mxu0 0.0
      %3238 = vmatpush2.msra.mxu0 0.0
      %3239 = vmatprep.subr.mxu0 0.0
      %3240 = vmatpush2.msra.mxu0 0.0
      %3241 = vmatprep.subr.mxu0 0.0
      %3242 = vmatpush2.msra.mxu0 0.0
      %3243 = vmatprep.subr.mxu0 0.0
      %3244 = vmatpush2.msra.mxu0 0.0
      %3245 = vmatprep.subr.mxu0 0.0
      %3246 = vmatpush2.msra.mxu0 0.0
      %3247 = vmatprep.subr.mxu0 0.0
      %3248 = vmatpush2.msra.mxu0 0.0
      %3249 = vmatprep.mubr.f32.mxu0 0.0
      %v3250 = vand.u32 %v2822, 4294901760
      %3251 = vmatmul.mubr.f32.gmra.mxu0 %v3250
      %v3252 = vpop.f32.mrf.mxu0
      %v3253 = vadd.f32 %v2952, %v3252
      %v3254 = vpop.f32.mrf.mxu0
      %3255 = vmatprep.mubr.f32.mxu0 0.0
      %v3256 = vand.u32 %v2823, 4294901760
      %3257 = vmatmul.mubr.f32.gmra.mxu0 %v3256
      %v3258 = vpop.f32.mrf.mxu0
      %v3259 = vadd.f32 %v2962, %v3258
      %v3260 = vpop.f32.mrf.mxu0
      %3261 = vmatprep.mubr.f32.mxu0 0.0
      %v3262 = vand.u32 %v2824, 4294901760
      %3263 = vmatmul.mubr.f32.gmra.mxu0 %v3262
      %v3264 = vpop.f32.mrf.mxu0
      %v3265 = vadd.f32 %v2972, %v3264
      %v3266 = vpop.f32.mrf.mxu0
      %3267 = vmatprep.mubr.f32.mxu0 0.0
      %v3268 = vand.u32 %v2825, 4294901760
      %3269 = vmatmul.mubr.f32.gmra.mxu0 %v3268
      %v3270 = vpop.f32.mrf.mxu0
      %v3271 = vadd.f32 %v2982, %v3270
      %v3272 = vpop.f32.mrf.mxu0
      %3273 = vmatprep.mubr.f32.mxu0 0.0
      %v3274 = vand.u32 %v2826, 4294901760
      %3275 = vmatmul.mubr.f32.gmra.mxu0 %v3274
      %v3276 = vpop.f32.mrf.mxu0
      %v3277 = vadd.f32 %v2992, %v3276
      %v3278 = vpop.f32.mrf.mxu0
      %3279 = vmatprep.mubr.f32.mxu0 0.0
      %v3280 = vand.u32 %v2827, 4294901760
      %3281 = vmatmul.mubr.f32.gmra.mxu0 %v3280
      %v3282 = vpop.f32.mrf.mxu0
      %v3283 = vadd.f32 %v3002, %v3282
      %v3284 = vpop.f32.mrf.mxu0
      %3285 = vmatprep.mubr.f32.mxu0 0.0
      %v3286 = vand.u32 %v2828, 4294901760
      %3287 = vmatmul.mubr.f32.gmra.mxu0 %v3286
      %v3288 = vpop.f32.mrf.mxu0
      %v3289 = vadd.f32 %v3012, %v3288
      %v3290 = vpop.f32.mrf.mxu0
      %3291 = vmatprep.mubr.f32.mxu0 0.0
      %v3292 = vand.u32 %v2829, 4294901760
      %3293 = vmatmul.mubr.f32.gmra.mxu0 %v3292
      %v3294 = vpop.f32.mrf.mxu0
      %v3295 = vadd.f32 %v3022, %v3294
      %v3296 = vpop.f32.mrf.mxu0
      %3297 = vmatprep.mubr.f32.mxu0 0.0
      %v3298 = vand.u32 %v2830, 4294901760
      %3299 = vmatmul.mubr.f32.gmra.mxu0 %v3298
      %v3300 = vpop.f32.mrf.mxu0
      %v3301 = vadd.f32 %v3032, %v3300
      %v3302 = vpop.f32.mrf.mxu0
      %3303 = vmatprep.mubr.f32.mxu0 0.0
      %v3304 = vand.u32 %v2831, 4294901760
      %3305 = vmatmul.mubr.f32.gmra.mxu0 %v3304
      %v3306 = vpop.f32.mrf.mxu0
      %v3307 = vadd.f32 %v3042, %v3306
      %v3308 = vpop.f32.mrf.mxu0
      %3309 = vmatprep.mubr.f32.mxu0 0.0
      %v3310 = vand.u32 %v2832, 4294901760
      %3311 = vmatmul.mubr.f32.gmra.mxu0 %v3310
      %v3312 = vpop.f32.mrf.mxu0
      %v3313 = vadd.f32 %v3052, %v3312
      %v3314 = vpop.f32.mrf.mxu0
      %3315 = vmatprep.mubr.f32.mxu0 0.0
      %v3316 = vand.u32 %v2833, 4294901760
      %3317 = vmatmul.mubr.f32.gmra.mxu0 %v3316
      %v3318 = vpop.f32.mrf.mxu0
      %v3319 = vadd.f32 %v3062, %v3318
      %v3320 = vpop.f32.mrf.mxu0
      %3321 = vmatprep.mubr.f32.mxu0 0.0
      %v3322 = vand.u32 %v2834, 4294901760
      %3323 = vmatmul.mubr.f32.gmra.mxu0 %v3322
      %v3324 = vpop.f32.mrf.mxu0
      %v3325 = vadd.f32 %v3072, %v3324
      %v3326 = vpop.f32.mrf.mxu0
      %3327 = vmatprep.mubr.f32.mxu0 0.0
      %v3328 = vand.u32 %v2835, 4294901760
      %3329 = vmatmul.mubr.f32.gmra.mxu0 %v3328
      %v3330 = vpop.f32.mrf.mxu0
      %v3331 = vadd.f32 %v3082, %v3330
      %v3332 = vpop.f32.mrf.mxu0
      %3333 = vmatprep.mubr.f32.mxu0 0.0
      %v3334 = vand.u32 %v2836, 4294901760
      %3335 = vmatmul.mubr.f32.gmra.mxu0 %v3334
      %v3336 = vpop.f32.mrf.mxu0
      %v3337 = vadd.f32 %v3092, %v3336
      %v3338 = vpop.f32.mrf.mxu0
      %3339 = vmatprep.mubr.f32.mxu0 0.0
      %v3340 = vand.u32 %v2837, 4294901760
      %3341 = vmatmul.mubr.f32.gmra.mxu0 %v3340
      %v3342 = vpop.f32.mrf.mxu0
      %v3343 = vadd.f32 %v3102, %v3342
      %v3344 = vpop.f32.mrf.mxu0
      %3345 = vdwg.mxu0
      %3346 = vmatprep.subr.mxu0 0.0
      %v3347 = vand.u32 %v2853, 4294901760
      %v3348 = vsub.f32 %v2853, %v3347
      %3349 = vmatpush1.msra.mxu0 %v3348
      %3350 = vmatprep.subr.mxu0 0.0
      %v3351 = vand.u32 %v2852, 4294901760
      %v3352 = vsub.f32 %v2852, %v3351
      %3353 = vmatpush1.msra.mxu0 %v3352
      %3354 = vmatprep.subr.mxu0 0.0
      %v3355 = vand.u32 %v2851, 4294901760
      %v3356 = vsub.f32 %v2851, %v3355
      %3357 = vmatpush1.msra.mxu0 %v3356
      %3358 = vmatprep.subr.mxu0 0.0
      %v3359 = vand.u32 %v2850, 4294901760
      %v3360 = vsub.f32 %v2850, %v3359
      %3361 = vmatpush1.msra.mxu0 %v3360
      %3362 = vmatprep.subr.mxu0 0.0
      %v3363 = vand.u32 %v2849, 4294901760
      %v3364 = vsub.f32 %v2849, %v3363
      %3365 = vmatpush1.msra.mxu0 %v3364
      %3366 = vmatprep.subr.mxu0 0.0
      %v3367 = vand.u32 %v2848, 4294901760
      %v3368 = vsub.f32 %v2848, %v3367
      %3369 = vmatpush1.msra.mxu0 %v3368
      %3370 = vmatprep.subr.mxu0 0.0
      %v3371 = vand.u32 %v2847, 4294901760
      %v3372 = vsub.f32 %v2847, %v3371
      %3373 = vmatpush1.msra.mxu0 %v3372
      %3374 = vmatprep.subr.mxu0 0.0
      %v3375 = vand.u32 %v2846, 4294901760
      %v3376 = vsub.f32 %v2846, %v3375
      %3377 = vmatpush1.msra.mxu0 %v3376
      %3378 = vmatprep.subr.mxu0 0.0
      %v3379 = vand.u32 %v2845, 4294901760
      %v3380 = vsub.f32 %v2845, %v3379
      %3381 = vmatpush1.msra.mxu0 %v3380
      %3382 = vmatprep.subr.mxu0 0.0
      %v3383 = vand.u32 %v2844, 4294901760
      %v3384 = vsub.f32 %v2844, %v3383
      %3385 = vmatpush1.msra.mxu0 %v3384
      %3386 = vmatprep.subr.mxu0 0.0
      %v3387 = vand.u32 %v2843, 4294901760
      %v3388 = vsub.f32 %v2843, %v3387
      %3389 = vmatpush1.msra.mxu0 %v3388
      %3390 = vmatprep.subr.mxu0 0.0
      %v3391 = vand.u32 %v2842, 4294901760
      %v3392 = vsub.f32 %v2842, %v3391
      %3393 = vmatpush1.msra.mxu0 %v3392
      %3394 = vmatprep.subr.mxu0 0.0
      %v3395 = vand.u32 %v2841, 4294901760
      %v3396 = vsub.f32 %v2841, %v3395
      %3397 = vmatpush1.msra.mxu0 %v3396
      %3398 = vmatprep.subr.mxu0 0.0
      %v3399 = vand.u32 %v2840, 4294901760
      %v3400 = vsub.f32 %v2840, %v3399
      %3401 = vmatpush1.msra.mxu0 %v3400
      %3402 = vmatprep.subr.mxu0 0.0
      %v3403 = vand.u32 %v2839, 4294901760
      %v3404 = vsub.f32 %v2839, %v3403
      %3405 = vmatpush1.msra.mxu0 %v3404
      %3406 = vmatprep.subr.mxu0 0.0
      %v3407 = vand.u32 %v2838, 4294901760
      %v3408 = vsub.f32 %v2838, %v3407
      %3409 = vmatpush1.msra.mxu0 %v3408
      %3410 = vmatprep.subr.mxu0 0.0
      %3411 = vmatpush2.msra.mxu0 0.0
      %3412 = vmatprep.subr.mxu0 0.0
      %3413 = vmatpush2.msra.mxu0 0.0
      %3414 = vmatprep.subr.mxu0 0.0
      %3415 = vmatpush2.msra.mxu0 0.0
      %3416 = vmatprep.subr.mxu0 0.0
      %3417 = vmatpush2.msra.mxu0 0.0
      %3418 = vmatprep.subr.mxu0 0.0
      %3419 = vmatpush2.msra.mxu0 0.0
      %3420 = vmatprep.subr.mxu0 0.0
      %3421 = vmatpush2.msra.mxu0 0.0
      %3422 = vmatprep.subr.mxu0 0.0
      %3423 = vmatpush2.msra.mxu0 0.0
      %3424 = vmatprep.subr.mxu0 0.0
      %3425 = vmatpush2.msra.mxu0 0.0
      %3426 = vmatprep.subr.mxu0 0.0
      %3427 = vmatpush2.msra.mxu0 0.0
      %3428 = vmatprep.subr.mxu0 0.0
      %3429 = vmatpush2.msra.mxu0 0.0
      %3430 = vmatprep.subr.mxu0 0.0
      %3431 = vmatpush2.msra.mxu0 0.0
      %3432 = vmatprep.subr.mxu0 0.0
      %3433 = vmatpush2.msra.mxu0 0.0
      %3434 = vmatprep.subr.mxu0 0.0
      %3435 = vmatpush2.msra.mxu0 0.0
      %3436 = vmatprep.subr.mxu0 0.0
      %3437 = vmatpush2.msra.mxu0 0.0
      %3438 = vmatprep.subr.mxu0 0.0
      %3439 = vmatpush2.msra.mxu0 0.0
      %3440 = vmatprep.subr.mxu0 0.0
      %3441 = vmatpush2.msra.mxu0 0.0
      %3442 = vmatprep.mubr.f32.mxu0 0.0
      %v3443 = vand.u32 %v2822, 4294901760
      %v3444 = vsub.f32 %v2822, %v3443
      %3445 = vmatmul.mubr.f32.gmra.mxu0 %v3444
      %v3446 = vpop.f32.mrf.mxu0
      %v3447 = vadd.f32 %v3253, %v3446
      %v3448 = vpop.f32.mrf.mxu0
      %3449 = vmatprep.mubr.f32.mxu0 0.0
      %v3450 = vand.u32 %v2823, 4294901760
      %v3451 = vsub.f32 %v2823, %v3450
      %3452 = vmatmul.mubr.f32.gmra.mxu0 %v3451
      %v3453 = vpop.f32.mrf.mxu0
      %v3454 = vadd.f32 %v3259, %v3453
      %v3455 = vpop.f32.mrf.mxu0
      %3456 = vmatprep.mubr.f32.mxu0 0.0
      %v3457 = vand.u32 %v2824, 4294901760
      %v3458 = vsub.f32 %v2824, %v3457
      %3459 = vmatmul.mubr.f32.gmra.mxu0 %v3458
      %v3460 = vpop.f32.mrf.mxu0
      %v3461 = vadd.f32 %v3265, %v3460
      %v3462 = vpop.f32.mrf.mxu0
      %3463 = vmatprep.mubr.f32.mxu0 0.0
      %v3464 = vand.u32 %v2825, 4294901760
      %v3465 = vsub.f32 %v2825, %v3464
      %3466 = vmatmul.mubr.f32.gmra.mxu0 %v3465
      %v3467 = vpop.f32.mrf.mxu0
      %v3468 = vadd.f32 %v3271, %v3467
      %v3469 = vpop.f32.mrf.mxu0
      %3470 = vmatprep.mubr.f32.mxu0 0.0
      %v3471 = vand.u32 %v2826, 4294901760
      %v3472 = vsub.f32 %v2826, %v3471
      %3473 = vmatmul.mubr.f32.gmra.mxu0 %v3472
      %v3474 = vpop.f32.mrf.mxu0
      %v3475 = vadd.f32 %v3277, %v3474
      %v3476 = vpop.f32.mrf.mxu0
      %3477 = vmatprep.mubr.f32.mxu0 0.0
      %v3478 = vand.u32 %v2827, 4294901760
      %v3479 = vsub.f32 %v2827, %v3478
      %3480 = vmatmul.mubr.f32.gmra.mxu0 %v3479
      %v3481 = vpop.f32.mrf.mxu0
      %v3482 = vadd.f32 %v3283, %v3481
      %v3483 = vpop.f32.mrf.mxu0
      %3484 = vmatprep.mubr.f32.mxu0 0.0
      %v3485 = vand.u32 %v2828, 4294901760
      %v3486 = vsub.f32 %v2828, %v3485
      %3487 = vmatmul.mubr.f32.gmra.mxu0 %v3486
      %v3488 = vpop.f32.mrf.mxu0
      %v3489 = vadd.f32 %v3289, %v3488
      %v3490 = vpop.f32.mrf.mxu0
      %3491 = vmatprep.mubr.f32.mxu0 0.0
      %v3492 = vand.u32 %v2829, 4294901760
      %v3493 = vsub.f32 %v2829, %v3492
      %3494 = vmatmul.mubr.f32.gmra.mxu0 %v3493
      %v3495 = vpop.f32.mrf.mxu0
      %v3496 = vadd.f32 %v3295, %v3495
      %v3497 = vpop.f32.mrf.mxu0
      %3498 = vmatprep.mubr.f32.mxu0 0.0
      %v3499 = vand.u32 %v2830, 4294901760
      %v3500 = vsub.f32 %v2830, %v3499
      %3501 = vmatmul.mubr.f32.gmra.mxu0 %v3500
      %v3502 = vpop.f32.mrf.mxu0
      %v3503 = vadd.f32 %v3301, %v3502
      %v3504 = vpop.f32.mrf.mxu0
      %3505 = vmatprep.mubr.f32.mxu0 0.0
      %v3506 = vand.u32 %v2831, 4294901760
      %v3507 = vsub.f32 %v2831, %v3506
      %3508 = vmatmul.mubr.f32.gmra.mxu0 %v3507
      %v3509 = vpop.f32.mrf.mxu0
      %v3510 = vadd.f32 %v3307, %v3509
      %v3511 = vpop.f32.mrf.mxu0
      %3512 = vmatprep.mubr.f32.mxu0 0.0
      %v3513 = vand.u32 %v2832, 4294901760
      %v3514 = vsub.f32 %v2832, %v3513
      %3515 = vmatmul.mubr.f32.gmra.mxu0 %v3514
      %v3516 = vpop.f32.mrf.mxu0
      %v3517 = vadd.f32 %v3313, %v3516
      %v3518 = vpop.f32.mrf.mxu0
      %3519 = vmatprep.mubr.f32.mxu0 0.0
      %v3520 = vand.u32 %v2833, 4294901760
      %v3521 = vsub.f32 %v2833, %v3520
      %3522 = vmatmul.mubr.f32.gmra.mxu0 %v3521
      %v3523 = vpop.f32.mrf.mxu0
      %v3524 = vadd.f32 %v3319, %v3523
      %v3525 = vpop.f32.mrf.mxu0
      %3526 = vmatprep.mubr.f32.mxu0 0.0
      %v3527 = vand.u32 %v2834, 4294901760
      %v3528 = vsub.f32 %v2834, %v3527
      %3529 = vmatmul.mubr.f32.gmra.mxu0 %v3528
      %v3530 = vpop.f32.mrf.mxu0
      %v3531 = vadd.f32 %v3325, %v3530
      %v3532 = vpop.f32.mrf.mxu0
      %3533 = vmatprep.mubr.f32.mxu0 0.0
      %v3534 = vand.u32 %v2835, 4294901760
      %v3535 = vsub.f32 %v2835, %v3534
      %3536 = vmatmul.mubr.f32.gmra.mxu0 %v3535
      %v3537 = vpop.f32.mrf.mxu0
      %v3538 = vadd.f32 %v3331, %v3537
      %v3539 = vpop.f32.mrf.mxu0
      %3540 = vmatprep.mubr.f32.mxu0 0.0
      %v3541 = vand.u32 %v2836, 4294901760
      %v3542 = vsub.f32 %v2836, %v3541
      %3543 = vmatmul.mubr.f32.gmra.mxu0 %v3542
      %v3544 = vpop.f32.mrf.mxu0
      %v3545 = vadd.f32 %v3337, %v3544
      %v3546 = vpop.f32.mrf.mxu0
      %3547 = vmatprep.mubr.f32.mxu0 0.0
      %v3548 = vand.u32 %v2837, 4294901760
      %v3549 = vsub.f32 %v2837, %v3548
      %3550 = vmatmul.mubr.f32.gmra.mxu0 %v3549
      %v3551 = vpop.f32.mrf.mxu0
      %v3552 = vadd.f32 %v3343, %v3551
      %v3553 = vpop.f32.mrf.mxu0
      %3554 = vdwg.mxu0
      %3555 = vmatprep.subr.mxu0 0.0
      %v3556 = vand.u32 %v2853, 4294901760
      %3557 = vmatpush1.msra.mxu0 %v3556
      %3558 = vmatprep.subr.mxu0 0.0
      %v3559 = vand.u32 %v2852, 4294901760
      %3560 = vmatpush1.msra.mxu0 %v3559
      %3561 = vmatprep.subr.mxu0 0.0
      %v3562 = vand.u32 %v2851, 4294901760
      %3563 = vmatpush1.msra.mxu0 %v3562
      %3564 = vmatprep.subr.mxu0 0.0
      %v3565 = vand.u32 %v2850, 4294901760
      %3566 = vmatpush1.msra.mxu0 %v3565
      %3567 = vmatprep.subr.mxu0 0.0
      %v3568 = vand.u32 %v2849, 4294901760
      %3569 = vmatpush1.msra.mxu0 %v3568
      %3570 = vmatprep.subr.mxu0 0.0
      %v3571 = vand.u32 %v2848, 4294901760
      %3572 = vmatpush1.msra.mxu0 %v3571
      %3573 = vmatprep.subr.mxu0 0.0
      %v3574 = vand.u32 %v2847, 4294901760
      %3575 = vmatpush1.msra.mxu0 %v3574
      %3576 = vmatprep.subr.mxu0 0.0
      %v3577 = vand.u32 %v2846, 4294901760
      %3578 = vmatpush1.msra.mxu0 %v3577
      %3579 = vmatprep.subr.mxu0 0.0
      %v3580 = vand.u32 %v2845, 4294901760
      %3581 = vmatpush1.msra.mxu0 %v3580
      %3582 = vmatprep.subr.mxu0 0.0
      %v3583 = vand.u32 %v2844, 4294901760
      %3584 = vmatpush1.msra.mxu0 %v3583
      %3585 = vmatprep.subr.mxu0 0.0
      %v3586 = vand.u32 %v2843, 4294901760
      %3587 = vmatpush1.msra.mxu0 %v3586
      %3588 = vmatprep.subr.mxu0 0.0
      %v3589 = vand.u32 %v2842, 4294901760
      %3590 = vmatpush1.msra.mxu0 %v3589
      %3591 = vmatprep.subr.mxu0 0.0
      %v3592 = vand.u32 %v2841, 4294901760
      %3593 = vmatpush1.msra.mxu0 %v3592
      %3594 = vmatprep.subr.mxu0 0.0
      %v3595 = vand.u32 %v2840, 4294901760
      %3596 = vmatpush1.msra.mxu0 %v3595
      %3597 = vmatprep.subr.mxu0 0.0
      %v3598 = vand.u32 %v2839, 4294901760
      %3599 = vmatpush1.msra.mxu0 %v3598
      %3600 = vmatprep.subr.mxu0 0.0
      %v3601 = vand.u32 %v2838, 4294901760
      %3602 = vmatpush1.msra.mxu0 %v3601
      %3603 = vmatprep.subr.mxu0 0.0
      %3604 = vmatpush2.msra.mxu0 0.0
      %3605 = vmatprep.subr.mxu0 0.0
      %3606 = vmatpush2.msra.mxu0 0.0
      %3607 = vmatprep.subr.mxu0 0.0
      %3608 = vmatpush2.msra.mxu0 0.0
      %3609 = vmatprep.subr.mxu0 0.0
      %3610 = vmatpush2.msra.mxu0 0.0
      %3611 = vmatprep.subr.mxu0 0.0
      %3612 = vmatpush2.msra.mxu0 0.0
      %3613 = vmatprep.subr.mxu0 0.0
      %3614 = vmatpush2.msra.mxu0 0.0
      %3615 = vmatprep.subr.mxu0 0.0
      %3616 = vmatpush2.msra.mxu0 0.0
      %3617 = vmatprep.subr.mxu0 0.0
      %3618 = vmatpush2.msra.mxu0 0.0
      %3619 = vmatprep.subr.mxu0 0.0
      %3620 = vmatpush2.msra.mxu0 0.0
      %3621 = vmatprep.subr.mxu0 0.0
      %3622 = vmatpush2.msra.mxu0 0.0
      %3623 = vmatprep.subr.mxu0 0.0
      %3624 = vmatpush2.msra.mxu0 0.0
      %3625 = vmatprep.subr.mxu0 0.0
      %3626 = vmatpush2.msra.mxu0 0.0
      %3627 = vmatprep.subr.mxu0 0.0
      %3628 = vmatpush2.msra.mxu0 0.0
      %3629 = vmatprep.subr.mxu0 0.0
      %3630 = vmatpush2.msra.mxu0 0.0
      %3631 = vmatprep.subr.mxu0 0.0
      %3632 = vmatpush2.msra.mxu0 0.0
      %3633 = vmatprep.subr.mxu0 0.0
      %3634 = vmatpush2.msra.mxu0 0.0
      %3635 = vmatprep.mubr.f32.mxu0 0.0
      %v3636 = vand.u32 %v2822, 4294901760
      %v3637 = vsub.f32 %v2822, %v3636
      %v3638 = vand.u32 %v3637, 4294901760
      %3639 = vmatmul.mubr.f32.gmra.mxu0 %v3638
      %v3640 = vpop.f32.mrf.mxu0
      %v3641 = vadd.f32 %v3447, %v3640
      %v3642 = vpop.f32.mrf.mxu0
      %3643 = vmatprep.mubr.f32.mxu0 0.0
      %v3644 = vand.u32 %v2823, 4294901760
      %v3645 = vsub.f32 %v2823, %v3644
      %v3646 = vand.u32 %v3645, 4294901760
      %3647 = vmatmul.mubr.f32.gmra.mxu0 %v3646
      %v3648 = vpop.f32.mrf.mxu0
      %v3649 = vadd.f32 %v3454, %v3648
      %v3650 = vpop.f32.mrf.mxu0
      %3651 = vmatprep.mubr.f32.mxu0 0.0
      %v3652 = vand.u32 %v2824, 4294901760
      %v3653 = vsub.f32 %v2824, %v3652
      %v3654 = vand.u32 %v3653, 4294901760
      %3655 = vmatmul.mubr.f32.gmra.mxu0 %v3654
      %v3656 = vpop.f32.mrf.mxu0
      %v3657 = vadd.f32 %v3461, %v3656
      %v3658 = vpop.f32.mrf.mxu0
      %3659 = vmatprep.mubr.f32.mxu0 0.0
      %v3660 = vand.u32 %v2825, 4294901760
      %v3661 = vsub.f32 %v2825, %v3660
      %v3662 = vand.u32 %v3661, 4294901760
      %3663 = vmatmul.mubr.f32.gmra.mxu0 %v3662
      %v3664 = vpop.f32.mrf.mxu0
      %v3665 = vadd.f32 %v3468, %v3664
      %v3666 = vpop.f32.mrf.mxu0
      %3667 = vmatprep.mubr.f32.mxu0 0.0
      %v3668 = vand.u32 %v2826, 4294901760
      %v3669 = vsub.f32 %v2826, %v3668
      %v3670 = vand.u32 %v3669, 4294901760
      %3671 = vmatmul.mubr.f32.gmra.mxu0 %v3670
      %v3672 = vpop.f32.mrf.mxu0
      %v3673 = vadd.f32 %v3475, %v3672
      %v3674 = vpop.f32.mrf.mxu0
      %3675 = vmatprep.mubr.f32.mxu0 0.0
      %v3676 = vand.u32 %v2827, 4294901760
      %v3677 = vsub.f32 %v2827, %v3676
      %v3678 = vand.u32 %v3677, 4294901760
      %3679 = vmatmul.mubr.f32.gmra.mxu0 %v3678
      %v3680 = vpop.f32.mrf.mxu0
      %v3681 = vadd.f32 %v3482, %v3680
      %v3682 = vpop.f32.mrf.mxu0
      %3683 = vmatprep.mubr.f32.mxu0 0.0
      %v3684 = vand.u32 %v2828, 4294901760
      %v3685 = vsub.f32 %v2828, %v3684
      %v3686 = vand.u32 %v3685, 4294901760
      %3687 = vmatmul.mubr.f32.gmra.mxu0 %v3686
      %v3688 = vpop.f32.mrf.mxu0
      %v3689 = vadd.f32 %v3489, %v3688
      %v3690 = vpop.f32.mrf.mxu0
      %3691 = vmatprep.mubr.f32.mxu0 0.0
      %v3692 = vand.u32 %v2829, 4294901760
      %v3693 = vsub.f32 %v2829, %v3692
      %v3694 = vand.u32 %v3693, 4294901760
      %3695 = vmatmul.mubr.f32.gmra.mxu0 %v3694
      %v3696 = vpop.f32.mrf.mxu0
      %v3697 = vadd.f32 %v3496, %v3696
      %v3698 = vpop.f32.mrf.mxu0
      %3699 = vmatprep.mubr.f32.mxu0 0.0
      %v3700 = vand.u32 %v2830, 4294901760
      %v3701 = vsub.f32 %v2830, %v3700
      %v3702 = vand.u32 %v3701, 4294901760
      %3703 = vmatmul.mubr.f32.gmra.mxu0 %v3702
      %v3704 = vpop.f32.mrf.mxu0
      %v3705 = vadd.f32 %v3503, %v3704
      %v3706 = vpop.f32.mrf.mxu0
      %3707 = vmatprep.mubr.f32.mxu0 0.0
      %v3708 = vand.u32 %v2831, 4294901760
      %v3709 = vsub.f32 %v2831, %v3708
      %v3710 = vand.u32 %v3709, 4294901760
      %3711 = vmatmul.mubr.f32.gmra.mxu0 %v3710
      %v3712 = vpop.f32.mrf.mxu0
      %v3713 = vadd.f32 %v3510, %v3712
      %v3714 = vpop.f32.mrf.mxu0
      %3715 = vmatprep.mubr.f32.mxu0 0.0
      %v3716 = vand.u32 %v2832, 4294901760
      %v3717 = vsub.f32 %v2832, %v3716
      %v3718 = vand.u32 %v3717, 4294901760
      %3719 = vmatmul.mubr.f32.gmra.mxu0 %v3718
      %v3720 = vpop.f32.mrf.mxu0
      %v3721 = vadd.f32 %v3517, %v3720
      %v3722 = vpop.f32.mrf.mxu0
      %3723 = vmatprep.mubr.f32.mxu0 0.0
      %v3724 = vand.u32 %v2833, 4294901760
      %v3725 = vsub.f32 %v2833, %v3724
      %v3726 = vand.u32 %v3725, 4294901760
      %3727 = vmatmul.mubr.f32.gmra.mxu0 %v3726
      %v3728 = vpop.f32.mrf.mxu0
      %v3729 = vadd.f32 %v3524, %v3728
      %v3730 = vpop.f32.mrf.mxu0
      %3731 = vmatprep.mubr.f32.mxu0 0.0
      %v3732 = vand.u32 %v2834, 4294901760
      %v3733 = vsub.f32 %v2834, %v3732
      %v3734 = vand.u32 %v3733, 4294901760
      %3735 = vmatmul.mubr.f32.gmra.mxu0 %v3734
      %v3736 = vpop.f32.mrf.mxu0
      %v3737 = vadd.f32 %v3531, %v3736
      %v3738 = vpop.f32.mrf.mxu0
      %3739 = vmatprep.mubr.f32.mxu0 0.0
      %v3740 = vand.u32 %v2835, 4294901760
      %v3741 = vsub.f32 %v2835, %v3740
      %v3742 = vand.u32 %v3741, 4294901760
      %3743 = vmatmul.mubr.f32.gmra.mxu0 %v3742
      %v3744 = vpop.f32.mrf.mxu0
      %v3745 = vadd.f32 %v3538, %v3744
      %v3746 = vpop.f32.mrf.mxu0
      %3747 = vmatprep.mubr.f32.mxu0 0.0
      %v3748 = vand.u32 %v2836, 4294901760
      %v3749 = vsub.f32 %v2836, %v3748
      %v3750 = vand.u32 %v3749, 4294901760
      %3751 = vmatmul.mubr.f32.gmra.mxu0 %v3750
      %v3752 = vpop.f32.mrf.mxu0
      %v3753 = vadd.f32 %v3545, %v3752
      %v3754 = vpop.f32.mrf.mxu0
      %3755 = vmatprep.mubr.f32.mxu0 0.0
      %v3756 = vand.u32 %v2837, 4294901760
      %v3757 = vsub.f32 %v2837, %v3756
      %v3758 = vand.u32 %v3757, 4294901760
      %3759 = vmatmul.mubr.f32.gmra.mxu0 %v3758
      %v3760 = vpop.f32.mrf.mxu0
      %v3761 = vadd.f32 %v3552, %v3760
      %v3762 = vpop.f32.mrf.mxu0
      %3763 = vdwg.mxu0
      %3764 = vmatprep.subr.mxu0 0.0
      %v3765 = vand.u32 %v2853, 4294901760
      %v3766 = vsub.f32 %v2853, %v3765
      %v3767 = vand.u32 %v3766, 4294901760
      %3768 = vmatpush1.msra.mxu0 %v3767
      %3769 = vmatprep.subr.mxu0 0.0
      %v3770 = vand.u32 %v2852, 4294901760
      %v3771 = vsub.f32 %v2852, %v3770
      %v3772 = vand.u32 %v3771, 4294901760
      %3773 = vmatpush1.msra.mxu0 %v3772
      %3774 = vmatprep.subr.mxu0 0.0
      %v3775 = vand.u32 %v2851, 4294901760
      %v3776 = vsub.f32 %v2851, %v3775
      %v3777 = vand.u32 %v3776, 4294901760
      %3778 = vmatpush1.msra.mxu0 %v3777
      %3779 = vmatprep.subr.mxu0 0.0
      %v3780 = vand.u32 %v2850, 4294901760
      %v3781 = vsub.f32 %v2850, %v3780
      %v3782 = vand.u32 %v3781, 4294901760
      %3783 = vmatpush1.msra.mxu0 %v3782
      %3784 = vmatprep.subr.mxu0 0.0
      %v3785 = vand.u32 %v2849, 4294901760
      %v3786 = vsub.f32 %v2849, %v3785
      %v3787 = vand.u32 %v3786, 4294901760
      %3788 = vmatpush1.msra.mxu0 %v3787
      %3789 = vmatprep.subr.mxu0 0.0
      %v3790 = vand.u32 %v2848, 4294901760
      %v3791 = vsub.f32 %v2848, %v3790
      %v3792 = vand.u32 %v3791, 4294901760
      %3793 = vmatpush1.msra.mxu0 %v3792
      %3794 = vmatprep.subr.mxu0 0.0
      %v3795 = vand.u32 %v2847, 4294901760
      %v3796 = vsub.f32 %v2847, %v3795
      %v3797 = vand.u32 %v3796, 4294901760
      %3798 = vmatpush1.msra.mxu0 %v3797
      %3799 = vmatprep.subr.mxu0 0.0
      %v3800 = vand.u32 %v2846, 4294901760
      %v3801 = vsub.f32 %v2846, %v3800
      %v3802 = vand.u32 %v3801, 4294901760
      %3803 = vmatpush1.msra.mxu0 %v3802
      %3804 = vmatprep.subr.mxu0 0.0
      %v3805 = vand.u32 %v2845, 4294901760
      %v3806 = vsub.f32 %v2845, %v3805
      %v3807 = vand.u32 %v3806, 4294901760
      %3808 = vmatpush1.msra.mxu0 %v3807
      %3809 = vmatprep.subr.mxu0 0.0
      %v3810 = vand.u32 %v2844, 4294901760
      %v3811 = vsub.f32 %v2844, %v3810
      %v3812 = vand.u32 %v3811, 4294901760
      %3813 = vmatpush1.msra.mxu0 %v3812
      %3814 = vmatprep.subr.mxu0 0.0
      %v3815 = vand.u32 %v2843, 4294901760
      %v3816 = vsub.f32 %v2843, %v3815
      %v3817 = vand.u32 %v3816, 4294901760
      %3818 = vmatpush1.msra.mxu0 %v3817
      %3819 = vmatprep.subr.mxu0 0.0
      %v3820 = vand.u32 %v2842, 4294901760
      %v3821 = vsub.f32 %v2842, %v3820
      %v3822 = vand.u32 %v3821, 4294901760
      %3823 = vmatpush1.msra.mxu0 %v3822
      %3824 = vmatprep.subr.mxu0 0.0
      %v3825 = vand.u32 %v2841, 4294901760
      %v3826 = vsub.f32 %v2841, %v3825
      %v3827 = vand.u32 %v3826, 4294901760
      %3828 = vmatpush1.msra.mxu0 %v3827
      %3829 = vmatprep.subr.mxu0 0.0
      %v3830 = vand.u32 %v2840, 4294901760
      %v3831 = vsub.f32 %v2840, %v3830
      %v3832 = vand.u32 %v3831, 4294901760
      %3833 = vmatpush1.msra.mxu0 %v3832
      %3834 = vmatprep.subr.mxu0 0.0
      %v3835 = vand.u32 %v2839, 4294901760
      %v3836 = vsub.f32 %v2839, %v3835
      %v3837 = vand.u32 %v3836, 4294901760
      %3838 = vmatpush1.msra.mxu0 %v3837
      %3839 = vmatprep.subr.mxu0 0.0
      %v3840 = vand.u32 %v2838, 4294901760
      %v3841 = vsub.f32 %v2838, %v3840
      %v3842 = vand.u32 %v3841, 4294901760
      %3843 = vmatpush1.msra.mxu0 %v3842
      %3844 = vmatprep.subr.mxu0 0.0
      %3845 = vmatpush2.msra.mxu0 0.0
      %3846 = vmatprep.subr.mxu0 0.0
      %3847 = vmatpush2.msra.mxu0 0.0
      %3848 = vmatprep.subr.mxu0 0.0
      %3849 = vmatpush2.msra.mxu0 0.0
      %3850 = vmatprep.subr.mxu0 0.0
      %3851 = vmatpush2.msra.mxu0 0.0
      %3852 = vmatprep.subr.mxu0 0.0
      %3853 = vmatpush2.msra.mxu0 0.0
      %3854 = vmatprep.subr.mxu0 0.0
      %3855 = vmatpush2.msra.mxu0 0.0
      %3856 = vmatprep.subr.mxu0 0.0
      %3857 = vmatpush2.msra.mxu0 0.0
      %3858 = vmatprep.subr.mxu0 0.0
      %3859 = vmatpush2.msra.mxu0 0.0
      %3860 = vmatprep.subr.mxu0 0.0
      %3861 = vmatpush2.msra.mxu0 0.0
      %3862 = vmatprep.subr.mxu0 0.0
      %3863 = vmatpush2.msra.mxu0 0.0
      %3864 = vmatprep.subr.mxu0 0.0
      %3865 = vmatpush2.msra.mxu0 0.0
      %3866 = vmatprep.subr.mxu0 0.0
      %3867 = vmatpush2.msra.mxu0 0.0
      %3868 = vmatprep.subr.mxu0 0.0
      %3869 = vmatpush2.msra.mxu0 0.0
      %3870 = vmatprep.subr.mxu0 0.0
      %3871 = vmatpush2.msra.mxu0 0.0
      %3872 = vmatprep.subr.mxu0 0.0
      %3873 = vmatpush2.msra.mxu0 0.0
      %3874 = vmatprep.subr.mxu0 0.0
      %3875 = vmatpush2.msra.mxu0 0.0
      %3876 = vmatprep.mubr.f32.mxu0 0.0
      %v3877 = vand.u32 %v2822, 4294901760
      %3878 = vmatmul.mubr.f32.gmra.mxu0 %v3877
      %v3879 = vpop.f32.mrf.mxu0
      %v3880 = vadd.f32 %v3641, %v3879
      %v3881 = vpop.f32.mrf.mxu0
      %3882 = vmatprep.mubr.f32.mxu0 0.0
      %v3883 = vand.u32 %v2823, 4294901760
      %3884 = vmatmul.mubr.f32.gmra.mxu0 %v3883
      %v3885 = vpop.f32.mrf.mxu0
      %v3886 = vadd.f32 %v3649, %v3885
      %v3887 = vpop.f32.mrf.mxu0
      %3888 = vmatprep.mubr.f32.mxu0 0.0
      %v3889 = vand.u32 %v2824, 4294901760
      %3890 = vmatmul.mubr.f32.gmra.mxu0 %v3889
      %v3891 = vpop.f32.mrf.mxu0
      %v3892 = vadd.f32 %v3657, %v3891
      %v3893 = vpop.f32.mrf.mxu0
      %3894 = vmatprep.mubr.f32.mxu0 0.0
      %v3895 = vand.u32 %v2825, 4294901760
      %3896 = vmatmul.mubr.f32.gmra.mxu0 %v3895
      %v3897 = vpop.f32.mrf.mxu0
      %v3898 = vadd.f32 %v3665, %v3897
      %v3899 = vpop.f32.mrf.mxu0
      %3900 = vmatprep.mubr.f32.mxu0 0.0
      %v3901 = vand.u32 %v2826, 4294901760
      %3902 = vmatmul.mubr.f32.gmra.mxu0 %v3901
      %v3903 = vpop.f32.mrf.mxu0
      %v3904 = vadd.f32 %v3673, %v3903
      %v3905 = vpop.f32.mrf.mxu0
      %3906 = vmatprep.mubr.f32.mxu0 0.0
      %v3907 = vand.u32 %v2827, 4294901760
      %3908 = vmatmul.mubr.f32.gmra.mxu0 %v3907
      %v3909 = vpop.f32.mrf.mxu0
      %v3910 = vadd.f32 %v3681, %v3909
      %v3911 = vpop.f32.mrf.mxu0
      %3912 = vmatprep.mubr.f32.mxu0 0.0
      %v3913 = vand.u32 %v2828, 4294901760
      %3914 = vmatmul.mubr.f32.gmra.mxu0 %v3913
      %v3915 = vpop.f32.mrf.mxu0
      %v3916 = vadd.f32 %v3689, %v3915
      %v3917 = vpop.f32.mrf.mxu0
      %3918 = vmatprep.mubr.f32.mxu0 0.0
      %v3919 = vand.u32 %v2829, 4294901760
      %3920 = vmatmul.mubr.f32.gmra.mxu0 %v3919
      %v3921 = vpop.f32.mrf.mxu0
      %v3922 = vadd.f32 %v3697, %v3921
      %v3923 = vpop.f32.mrf.mxu0
      %3924 = vmatprep.mubr.f32.mxu0 0.0
      %v3925 = vand.u32 %v2830, 4294901760
      %3926 = vmatmul.mubr.f32.gmra.mxu0 %v3925
      %v3927 = vpop.f32.mrf.mxu0
      %v3928 = vadd.f32 %v3705, %v3927
      %v3929 = vpop.f32.mrf.mxu0
      %3930 = vmatprep.mubr.f32.mxu0 0.0
      %v3931 = vand.u32 %v2831, 4294901760
      %3932 = vmatmul.mubr.f32.gmra.mxu0 %v3931
      %v3933 = vpop.f32.mrf.mxu0
      %v3934 = vadd.f32 %v3713, %v3933
      %v3935 = vpop.f32.mrf.mxu0
      %3936 = vmatprep.mubr.f32.mxu0 0.0
      %v3937 = vand.u32 %v2832, 4294901760
      %3938 = vmatmul.mubr.f32.gmra.mxu0 %v3937
      %v3939 = vpop.f32.mrf.mxu0
      %v3940 = vadd.f32 %v3721, %v3939
      %v3941 = vpop.f32.mrf.mxu0
      %3942 = vmatprep.mubr.f32.mxu0 0.0
      %v3943 = vand.u32 %v2833, 4294901760
      %3944 = vmatmul.mubr.f32.gmra.mxu0 %v3943
      %v3945 = vpop.f32.mrf.mxu0
      %v3946 = vadd.f32 %v3729, %v3945
      %v3947 = vpop.f32.mrf.mxu0
      %3948 = vmatprep.mubr.f32.mxu0 0.0
      %v3949 = vand.u32 %v2834, 4294901760
      %3950 = vmatmul.mubr.f32.gmra.mxu0 %v3949
      %v3951 = vpop.f32.mrf.mxu0
      %v3952 = vadd.f32 %v3737, %v3951
      %v3953 = vpop.f32.mrf.mxu0
      %3954 = vmatprep.mubr.f32.mxu0 0.0
      %v3955 = vand.u32 %v2835, 4294901760
      %3956 = vmatmul.mubr.f32.gmra.mxu0 %v3955
      %v3957 = vpop.f32.mrf.mxu0
      %v3958 = vadd.f32 %v3745, %v3957
      %v3959 = vpop.f32.mrf.mxu0
      %3960 = vmatprep.mubr.f32.mxu0 0.0
      %v3961 = vand.u32 %v2836, 4294901760
      %3962 = vmatmul.mubr.f32.gmra.mxu0 %v3961
      %v3963 = vpop.f32.mrf.mxu0
      %v3964 = vadd.f32 %v3753, %v3963
      %v3965 = vpop.f32.mrf.mxu0
      %3966 = vmatprep.mubr.f32.mxu0 0.0
      %v3967 = vand.u32 %v2837, 4294901760
      %3968 = vmatmul.mubr.f32.gmra.mxu0 %v3967
      %v3969 = vpop.f32.mrf.mxu0
      %v3970 = vadd.f32 %v3761, %v3969
      %v3971 = vpop.f32.mrf.mxu0
      %3972 = vdwg.mxu0
      %3973 = vmatprep.subr.mxu0 0.0
      %v3974 = vand.u32 %v2853, 4294901760
      %3975 = vmatpush1.msra.mxu0 %v3974
      %3976 = vmatprep.subr.mxu0 0.0
      %v3977 = vand.u32 %v2852, 4294901760
      %3978 = vmatpush1.msra.mxu0 %v3977
      %3979 = vmatprep.subr.mxu0 0.0
      %v3980 = vand.u32 %v2851, 4294901760
      %3981 = vmatpush1.msra.mxu0 %v3980
      %3982 = vmatprep.subr.mxu0 0.0
      %v3983 = vand.u32 %v2850, 4294901760
      %3984 = vmatpush1.msra.mxu0 %v3983
      %3985 = vmatprep.subr.mxu0 0.0
      %v3986 = vand.u32 %v2849, 4294901760
      %3987 = vmatpush1.msra.mxu0 %v3986
      %3988 = vmatprep.subr.mxu0 0.0
      %v3989 = vand.u32 %v2848, 4294901760
      %3990 = vmatpush1.msra.mxu0 %v3989
      %3991 = vmatprep.subr.mxu0 0.0
      %v3992 = vand.u32 %v2847, 4294901760
      %3993 = vmatpush1.msra.mxu0 %v3992
      %3994 = vmatprep.subr.mxu0 0.0
      %v3995 = vand.u32 %v2846, 4294901760
      %3996 = vmatpush1.msra.mxu0 %v3995
      %3997 = vmatprep.subr.mxu0 0.0
      %v3998 = vand.u32 %v2845, 4294901760
      %3999 = vmatpush1.msra.mxu0 %v3998
      %4000 = vmatprep.subr.mxu0 0.0
      %v4001 = vand.u32 %v2844, 4294901760
      %4002 = vmatpush1.msra.mxu0 %v4001
      %4003 = vmatprep.subr.mxu0 0.0
      %v4004 = vand.u32 %v2843, 4294901760
      %4005 = vmatpush1.msra.mxu0 %v4004
      %4006 = vmatprep.subr.mxu0 0.0
      %v4007 = vand.u32 %v2842, 4294901760
      %4008 = vmatpush1.msra.mxu0 %v4007
      %4009 = vmatprep.subr.mxu0 0.0
      %v4010 = vand.u32 %v2841, 4294901760
      %4011 = vmatpush1.msra.mxu0 %v4010
      %4012 = vmatprep.subr.mxu0 0.0
      %v4013 = vand.u32 %v2840, 4294901760
      %4014 = vmatpush1.msra.mxu0 %v4013
      %4015 = vmatprep.subr.mxu0 0.0
      %v4016 = vand.u32 %v2839, 4294901760
      %4017 = vmatpush1.msra.mxu0 %v4016
      %4018 = vmatprep.subr.mxu0 0.0
      %v4019 = vand.u32 %v2838, 4294901760
      %4020 = vmatpush1.msra.mxu0 %v4019
      %4021 = vmatprep.subr.mxu0 0.0
      %4022 = vmatpush2.msra.mxu0 0.0
      %4023 = vmatprep.subr.mxu0 0.0
      %4024 = vmatpush2.msra.mxu0 0.0
      %4025 = vmatprep.subr.mxu0 0.0
      %4026 = vmatpush2.msra.mxu0 0.0
      %4027 = vmatprep.subr.mxu0 0.0
      %4028 = vmatpush2.msra.mxu0 0.0
      %4029 = vmatprep.subr.mxu0 0.0
      %4030 = vmatpush2.msra.mxu0 0.0
      %4031 = vmatprep.subr.mxu0 0.0
      %4032 = vmatpush2.msra.mxu0 0.0
      %4033 = vmatprep.subr.mxu0 0.0
      %4034 = vmatpush2.msra.mxu0 0.0
      %4035 = vmatprep.subr.mxu0 0.0
      %4036 = vmatpush2.msra.mxu0 0.0
      %4037 = vmatprep.subr.mxu0 0.0
      %4038 = vmatpush2.msra.mxu0 0.0
      %4039 = vmatprep.subr.mxu0 0.0
      %4040 = vmatpush2.msra.mxu0 0.0
      %4041 = vmatprep.subr.mxu0 0.0
      %4042 = vmatpush2.msra.mxu0 0.0
      %4043 = vmatprep.subr.mxu0 0.0
      %4044 = vmatpush2.msra.mxu0 0.0
      %4045 = vmatprep.subr.mxu0 0.0
      %4046 = vmatpush2.msra.mxu0 0.0
      %4047 = vmatprep.subr.mxu0 0.0
      %4048 = vmatpush2.msra.mxu0 0.0
      %4049 = vmatprep.subr.mxu0 0.0
      %4050 = vmatpush2.msra.mxu0 0.0
      %4051 = vmatprep.subr.mxu0 0.0
      %4052 = vmatpush2.msra.mxu0 0.0
      %4053 = vmatprep.mubr.f32.mxu0 0.0
      %v4054 = vand.u32 %v2822, 4294901760
      %4055 = vmatmul.mubr.f32.gmra.mxu0 %v4054
      %v4056 = vpop.f32.mrf.mxu0
      %v4057 = vadd.f32 %v3880, %v4056
      %v4058 = vpop.f32.mrf.mxu0
      %4059 = vmatprep.mubr.f32.mxu0 0.0
      %v4060 = vand.u32 %v2823, 4294901760
      %4061 = vmatmul.mubr.f32.gmra.mxu0 %v4060
      %v4062 = vpop.f32.mrf.mxu0
      %v4063 = vadd.f32 %v3886, %v4062
      %v4064 = vpop.f32.mrf.mxu0
      %4065 = vmatprep.mubr.f32.mxu0 0.0
      %v4066 = vand.u32 %v2824, 4294901760
      %4067 = vmatmul.mubr.f32.gmra.mxu0 %v4066
      %v4068 = vpop.f32.mrf.mxu0
      %v4069 = vadd.f32 %v3892, %v4068
      %v4070 = vpop.f32.mrf.mxu0
      %4071 = vmatprep.mubr.f32.mxu0 0.0
      %v4072 = vand.u32 %v2825, 4294901760
      %4073 = vmatmul.mubr.f32.gmra.mxu0 %v4072
      %v4074 = vpop.f32.mrf.mxu0
      %v4075 = vadd.f32 %v3898, %v4074
      %v4076 = vpop.f32.mrf.mxu0
      %4077 = vmatprep.mubr.f32.mxu0 0.0
      %v4078 = vand.u32 %v2826, 4294901760
      %4079 = vmatmul.mubr.f32.gmra.mxu0 %v4078
      %v4080 = vpop.f32.mrf.mxu0
      %v4081 = vadd.f32 %v3904, %v4080
      %v4082 = vpop.f32.mrf.mxu0
      %4083 = vmatprep.mubr.f32.mxu0 0.0
      %v4084 = vand.u32 %v2827, 4294901760
      %4085 = vmatmul.mubr.f32.gmra.mxu0 %v4084
      %v4086 = vpop.f32.mrf.mxu0
      %v4087 = vadd.f32 %v3910, %v4086
      %v4088 = vpop.f32.mrf.mxu0
      %4089 = vmatprep.mubr.f32.mxu0 0.0
      %v4090 = vand.u32 %v2828, 4294901760
      %4091 = vmatmul.mubr.f32.gmra.mxu0 %v4090
      %v4092 = vpop.f32.mrf.mxu0
      %v4093 = vadd.f32 %v3916, %v4092
      %v4094 = vpop.f32.mrf.mxu0
      %4095 = vmatprep.mubr.f32.mxu0 0.0
      %v4096 = vand.u32 %v2829, 4294901760
      %4097 = vmatmul.mubr.f32.gmra.mxu0 %v4096
      %v4098 = vpop.f32.mrf.mxu0
      %v4099 = vadd.f32 %v3922, %v4098
      %v4100 = vpop.f32.mrf.mxu0
      %4101 = vmatprep.mubr.f32.mxu0 0.0
      %v4102 = vand.u32 %v2830, 4294901760
      %4103 = vmatmul.mubr.f32.gmra.mxu0 %v4102
      %v4104 = vpop.f32.mrf.mxu0
      %v4105 = vadd.f32 %v3928, %v4104
      %v4106 = vpop.f32.mrf.mxu0
      %4107 = vmatprep.mubr.f32.mxu0 0.0
      %v4108 = vand.u32 %v2831, 4294901760
      %4109 = vmatmul.mubr.f32.gmra.mxu0 %v4108
      %v4110 = vpop.f32.mrf.mxu0
      %v4111 = vadd.f32 %v3934, %v4110
      %v4112 = vpop.f32.mrf.mxu0
      %4113 = vmatprep.mubr.f32.mxu0 0.0
      %v4114 = vand.u32 %v2832, 4294901760
      %4115 = vmatmul.mubr.f32.gmra.mxu0 %v4114
      %v4116 = vpop.f32.mrf.mxu0
      %v4117 = vadd.f32 %v3940, %v4116
      %v4118 = vpop.f32.mrf.mxu0
      %4119 = vmatprep.mubr.f32.mxu0 0.0
      %v4120 = vand.u32 %v2833, 4294901760
      %4121 = vmatmul.mubr.f32.gmra.mxu0 %v4120
      %v4122 = vpop.f32.mrf.mxu0
      %v4123 = vadd.f32 %v3946, %v4122
      %v4124 = vpop.f32.mrf.mxu0
      %4125 = vmatprep.mubr.f32.mxu0 0.0
      %v4126 = vand.u32 %v2834, 4294901760
      %4127 = vmatmul.mubr.f32.gmra.mxu0 %v4126
      %v4128 = vpop.f32.mrf.mxu0
      %v4129 = vadd.f32 %v3952, %v4128
      %v4130 = vpop.f32.mrf.mxu0
      %4131 = vmatprep.mubr.f32.mxu0 0.0
      %v4132 = vand.u32 %v2835, 4294901760
      %4133 = vmatmul.mubr.f32.gmra.mxu0 %v4132
      %v4134 = vpop.f32.mrf.mxu0
      %v4135 = vadd.f32 %v3958, %v4134
      %v4136 = vpop.f32.mrf.mxu0
      %4137 = vmatprep.mubr.f32.mxu0 0.0
      %v4138 = vand.u32 %v2836, 4294901760
      %4139 = vmatmul.mubr.f32.gmra.mxu0 %v4138
      %v4140 = vpop.f32.mrf.mxu0
      %v4141 = vadd.f32 %v3964, %v4140
      %v4142 = vpop.f32.mrf.mxu0
      %4143 = vmatprep.mubr.f32.mxu0 0.0
      %v4144 = vand.u32 %v2837, 4294901760
      %4145 = vmatmul.mubr.f32.gmra.mxu0 %v4144
      %v4146 = vpop.f32.mrf.mxu0
      %v4147 = vadd.f32 %v3970, %v4146
      %v4148 = vpop.f32.mrf.mxu0
      %4149 = vdwg.mxu0
      %vm4150 = vcmask 31744
      %4151 = vst.msk [vmem:[%s304] sm:$0xff] %vm4150, %v4057
      %4152 = vst.msk [vmem:[%s304 + $0x8] sm:$0xff] %vm4150, %v4063
      %4153 = vst.msk [vmem:[%s304 + $0x10] sm:$0xff] %vm4150, %v4069
      %4154 = vst.msk [vmem:[%s304 + $0x18] sm:$0xff] %vm4150, %v4075
      %4155 = vst.msk [vmem:[%s304 + $0x20] sm:$0xff] %vm4150, %v4081
      %4156 = vst.msk [vmem:[%s304 + $0x28] sm:$0xff] %vm4150, %v4087
      %4157 = vst.msk [vmem:[%s304 + $0x30] sm:$0xff] %vm4150, %v4093
      %4158 = vst.msk [vmem:[%s304 + $0x38] sm:$0xff] %vm4150, %v4099
      %4159 = vst.msk [vmem:[%s304 + $0x40] sm:$0xff] %vm4150, %v4105
      %4160 = vst.msk [vmem:[%s304 + $0x48] sm:$0xff] %vm4150, %v4111
      %4161 = vst.msk [vmem:[%s304 + $0x50] sm:$0xff] %vm4150, %v4117
      %4162 = vst.msk [vmem:[%s304 + $0x58] sm:$0xff] %vm4150, %v4123
      %4163 = vst.msk [vmem:[%s304 + $0x60] sm:$0xff] %vm4150, %v4129
      %4164 = vst.msk [vmem:[%s304 + $0x68] sm:$0xff] %vm4150, %v4135
      %4165 = vst.msk [vmem:[%s304 + $0x70] sm:$0xff] %vm4150, %v4141
      %4166 = vst.msk [vmem:[%s304 + $0x78] sm:$0xff] %vm4150, %v4147
      %s4167 = smul.u32 16, %s20
      %p4168 = scmp.lt.s32.totalorder %s4167, 31
      %s4169 = scalar_select %p4168, %s4167, 31
      %s4170 = smul.addr %s4169, 8
      %s4171 = scalar_lea.vmem %s7, %s4170
      // Predicated region
      $region49: #{tpu_custom_call.1} parent=47 // pred_check
        %p4172 = pneg %p195
      $region50: #{tpu_custom_call.1} parent=47 // pred_check_branch
        %4174 = sbr.rel (%p4172) target = $region52
      $region51: #{tpu_custom_call.1} parent=47 // pred_region
        %s4175 = smul.u32 16, %s20
      $region52: #{tpu_custom_call.1} parent=47 // pred_fallthru
        _
    $region48: #{tpu_custom_call.1} parent=5 // pred_fallthru
      _
    %p4176 = scmp.le.s32.totalorder 2, %s15
    // Predicated region
    $region53: #{tpu_custom_call.1} parent=5 // pred_check
      %p4177 = pneg %p4176
    $region54: #{tpu_custom_call.1} parent=5 // pred_check_branch
      %4179 = sbr.rel (%p4177) target = $region56
    $region55: #{tpu_custom_call.1} parent=5 // pred_region
      %s4180 = ssub.s32 %s15, 2
      // Predicated region
      $region57: #{tpu_custom_call.1} parent=55 // pred_check
        %p4181 = pneg %p201
      $region58: #{tpu_custom_call.1} parent=55 // pred_check_branch
        %4183 = sbr.rel (%p4181) target = $region60
      $region59: #{tpu_custom_call.1} parent=55 // pred_region
        %s4184 = smul.u32 16, %s21
        %p4185 = scmp.lt.s32.totalorder %s4184, 31
        %s4186 = scalar_select %p4185, %s4184, 31
        %s4187 = smul.addr %s4186, 8
        %s4188 = scalar_lea.vmem %s7, %s4187
      $region60: #{tpu_custom_call.1} parent=55 // pred_fallthru
        _
    $region56: #{tpu_custom_call.1} parent=5 // pred_fallthru
      _
  $region6: #{tpu_custom_call.1} parent=0 // loop_footer
    %s19 = sadd.s32 1, %s15
  $region7: #{tpu_custom_call.1} parent=0 // loop_footer_branch
    %14 = sbr.rel target = $region3
  $region8: #{tpu_custom_call.1} parent=0 // loop_exit
    _

</llo_original>
